<compile_context>
chip_gen: v7x
topology: tpu7x:2x2x1
jax: 0.10.0
libtpu: 0.0.40
codegen_flags: <defaults>
</compile_context>

<pallas_src>
import jax
import jax.numpy as jnp
from jax import lax
from jax.experimental import pallas as pl
from jax.experimental.pallas import tpu as pltpu

# ---- small GPT-2-like config (synthetic, deterministic weights) -------------
D = 128          # hidden size (padded to a full 128-lane vreg)
H = 4            # attention heads
HD = D // H      # head dim
F = 256          # MLP hidden
V = 128          # vocab size (lane-dense logits)
S = 8            # max_length (padded sequence length)
NLAYER = 2
EPS = 1e-5
SCALE = 1.0 / (HD ** 0.5)
NEG_INF = -1e9


def _layer_norm(x, g, b):
    mu = jnp.mean(x, axis=-1, keepdims=True)
    var = jnp.mean((x - mu) ** 2, axis=-1, keepdims=True)
    return (x - mu) * lax.rsqrt(var + EPS) * g + b


# ---- single fused Pallas kernel: whole greedy autoregressive decode ----------
def decode_kernel(ids_ref, plen_ref,
                  wte_ref, wte_t_ref, wpe_ref, lnf_g_ref, lnf_b_ref,
                  ln1g_ref, ln1b_ref,
                  wq_ref, wk_ref, wv_ref, bq_ref, bk_ref, bv_ref,
                  wo_ref, bo_ref, ln2g_ref, ln2b_ref,
                  w1_ref, b1_ref, w2_ref, b2_ref,
                  out_ref):
    # constants built once in-kernel (no mask / one-hot DMA per layer/token)
    row_i = lax.broadcasted_iota(jnp.int32, (S, S), 0)
    col_i = lax.broadcasted_iota(jnp.int32, (S, S), 1)
    causal = jnp.where(col_i <= row_i, 0.0, NEG_INF).astype(jnp.float32)   # (S,S)
    vocab_iota = lax.broadcasted_iota(jnp.int32, (S, V), 1)                # (S,V)
    seq_iota_sd = lax.broadcasted_iota(jnp.int32, (S, D), 0)               # (S,D)
    lane_iota_v = lax.broadcasted_iota(jnp.int32, (1, V), 1)               # (1,V)
    seq_iota_s1 = lax.broadcasted_iota(jnp.int32, (S, 1), 0)               # (S,1)

    wte = wte_ref[...]        # (V, D) bf16
    wte_t = wte_t_ref[...]    # (D, V) bf16, tied LM head (transposed once)
    wpe = wpe_ref[...]        # (S, D) f32
    lnf_g = lnf_g_ref[...]
    lnf_b = lnf_b_ref[...]

    def forward_hidden(ids):  # ids: (S,1) int32  ->  hidden states (S,D) f32
        # embedding lookup as one-hot matmul (MXU, no dynamic VMEM gather)
        onehot = (ids == vocab_iota).astype(jnp.bfloat16)                   # (S,V)
        x = jnp.dot(onehot, wte, preferred_element_type=jnp.float32) + wpe  # (S,D)

        for l in range(NLAYER):                  # short fixed loop: unrolled
            # --- causal multi-head self-attention (pre-LN) ---
            xn = _layer_norm(x, ln1g_ref[l], ln1b_ref[l]).astype(jnp.bfloat16)
            attn = jnp.zeros((S, D), jnp.float32)
            for h in range(H):                   # per-head weights pre-split
                qh = jnp.dot(xn, wq_ref[l, h],
                             preferred_element_type=jnp.float32) + bq_ref[l, h]
                kh = jnp.dot(xn, wk_ref[l, h],
                             preferred_element_type=jnp.float32) + bk_ref[l, h]
                vh = jnp.dot(xn, wv_ref[l, h],
                             preferred_element_type=jnp.float32) + bv_ref[l, h]
                s = jnp.einsum('qd,kd->qk',
                               qh.astype(jnp.bfloat16), kh.astype(jnp.bfloat16),
                               preferred_element_type=jnp.float32)
                s = s * SCALE + causal                                      # (S,S)
                m = jnp.max(s, axis=-1, keepdims=True)
                p = jnp.exp(s - m)
                p = p * pl.reciprocal(jnp.sum(p, axis=-1, keepdims=True),
                                      approx=True)
                oh = jnp.dot(p.astype(jnp.bfloat16), vh.astype(jnp.bfloat16),
                             preferred_element_type=jnp.float32)            # (S,HD)
                # fold head back through its slice of W_o (no concat)
                attn = attn + jnp.dot(oh.astype(jnp.bfloat16), wo_ref[l, h],
                                      preferred_element_type=jnp.float32)   # (S,D)
            x = x + attn + bo_ref[l]

            # --- MLP (pre-LN, tanh-GELU like GPT-2) ---
            xn2 = _layer_norm(x, ln2g_ref[l], ln2b_ref[l]).astype(jnp.bfloat16)
            h1 = jnp.dot(xn2, w1_ref[l],
                         preferred_element_type=jnp.float32) + b1_ref[l]
            h1 = jax.nn.gelu(h1, approximate=True).astype(jnp.bfloat16)
            h2 = jnp.dot(h1, w2_ref[l],
                         preferred_element_type=jnp.float32) + b2_ref[l]
            x = x + h2
        return x                                                            # (S,D)

    def step(t, ids):         # greedily generate the token at position t
        x = forward_hidden(ids)
        pos = t - 1
        # select ONLY the hidden row at `pos` (vectorized select + reduce, no
        # scalar extraction) -> (1,D); final LN / LM head / argmax run on one
        # row instead of the full (S,*) slab.
        xrow = jnp.sum(jnp.where(seq_iota_sd == pos, x, 0.0),
                       axis=0, keepdims=True)                               # (1,D)
        xf = _layer_norm(xrow, lnf_g, lnf_b).astype(jnp.bfloat16)           # (1,D)
        row = jnp.dot(xf, wte_t, preferred_element_type=jnp.float32)        # (1,V)
        # argmax (first max, matching jnp/torch tie-break) via max + min-index
        row_max = jnp.max(row, axis=-1, keepdims=True)
        nxt = jnp.min(jnp.where(row == row_max, lane_iota_v, V),
                      axis=-1, keepdims=True)                               # (1,1)
        return jnp.where(seq_iota_s1 == t, jnp.broadcast_to(nxt, (S, 1)), ids)

    ids0 = ids_ref[...]                  # (S,1) int32 prompt (padded)
    plen = plen_ref[0]                   # scalar prompt length (SMEM)
    out_ref[...] = lax.fori_loop(plen, S, step, ids0)


# ---- deterministic parameter init (synthetic GPT-2-like weights) -------------
def init_params(key):
    def normal(k, shape, dtype=jnp.bfloat16, scale=0.02):
        return (scale * jax.random.normal(k, shape, dtype=jnp.float32)).astype(dtype)

    ks = jax.random.split(key, 8)
    return {
        "wte": normal(ks[0], (V, D)),                       # bf16, tied LM head
        "wpe": normal(ks[1], (S, D), dtype=jnp.float32),
        "lnf_g": jnp.ones((1, D), jnp.float32),
        "lnf_b": jnp.zeros((1, D), jnp.float32),
        "ln1_g": jnp.ones((NLAYER, 1, D), jnp.float32),
        "ln1_b": jnp.zeros((NLAYER, 1, D), jnp.float32),
        "w_q": normal(ks[2], (NLAYER, H, D, HD)),           # per-head, pre-split
        "w_k": normal(ks[3], (NLAYER, H, D, HD)),
        "w_v": normal(ks[4], (NLAYER, H, D, HD)),
        "b_q": jnp.zeros((NLAYER, H, 1, HD), jnp.float32),
        "b_k": jnp.zeros((NLAYER, H, 1, HD), jnp.float32),
        "b_v": jnp.zeros((NLAYER, H, 1, HD), jnp.float32),
        "w_o": normal(ks[5], (NLAYER, H, HD, D)),           # per-head rows of W_o
        "b_o": jnp.zeros((NLAYER, 1, D), jnp.float32),
        "ln2_g": jnp.ones((NLAYER, 1, D), jnp.float32),
        "ln2_b": jnp.zeros((NLAYER, 1, D), jnp.float32),
        "w_1": normal(ks[6], (NLAYER, D, F)),
        "b_1": jnp.zeros((NLAYER, 1, F), jnp.float32),
        "w_2": normal(ks[7], (NLAYER, F, D)),
        "b_2": jnp.zeros((NLAYER, 1, D), jnp.float32),
    }


# ---- greedy generation: ONE fused pallas_call per call ------------------------
@jax.jit
def generate(params, ids_init, prompt_len):
    wte_t = params["wte"].T            # tied head, transposed once (hoisted)
    args = (
        ids_init.reshape(S, 1).astype(jnp.int32),
        prompt_len.astype(jnp.int32),
        params["wte"], wte_t, params["wpe"], params["lnf_g"], params["lnf_b"],
        params["ln1_g"], params["ln1_b"],
        params["w_q"], params["w_k"], params["w_v"],
        params["b_q"], params["b_k"], params["b_v"],
        params["w_o"], params["b_o"], params["ln2_g"], params["ln2_b"],
        params["w_1"], params["b_1"], params["w_2"], params["b_2"],
    )
    vmem = pl.BlockSpec(memory_space=pltpu.MemorySpace.VMEM)
    smem = pl.BlockSpec(memory_space=pltpu.MemorySpace.SMEM)
    out = pl.pallas_call(
        decode_kernel,
        out_shape=jax.ShapeDtypeStruct((S, 1), jnp.int32),
        in_specs=[vmem, smem] + [vmem] * (len(args) - 2),
        out_specs=vmem,
        input_output_aliases={0: 0},   # reuse the ids buffer for the output
        # TODO(synk): for batched prompts, add a leading batch grid axis with
        # dimension_semantics=("parallel",) so both v7x TensorCores are used.
    )(*args)
    return out.reshape(S)


if __name__ == "__main__":
    key = jax.random.PRNGKey(0)
    pkey, ikey = jax.random.split(key)
    params = init_params(pkey)

    # synthetic prompt ids (stand-in for tokenize("What is " + inputs + "?"))
    prompt = jax.random.randint(ikey, (4,), 0, V, dtype=jnp.int32)
    ids_init = jnp.zeros((S,), jnp.int32).at[: prompt.shape[0]].set(prompt)
    prompt_len = jnp.array([prompt.shape[0]], jnp.int32)

    generated = generate(params, ids_init, prompt_len)
    generated = jax.block_until_ready(generated)

    assert generated.shape == (S,)
    assert bool(jnp.all(generated[: prompt.shape[0]] == prompt))   # prompt preserved
    assert bool(jnp.all((generated >= 0) & (generated < V)))       # valid token ids
    print("KERNEL_OK")
</pallas_src>

<mosaic_0001>
module attributes {stable_mosaic.version = 11 : i64} {
  func.func @decode_kernel(%arg0: memref<8x1xi32, #tpu.memory_space<vmem>>, %arg1: memref<1xi32, #tpu.memory_space<smem>>, %arg2: memref<128x128xbf16, #tpu.memory_space<vmem>>, %arg3: memref<128x128xbf16, #tpu.memory_space<vmem>>, %arg4: memref<8x128xf32, #tpu.memory_space<vmem>>, %arg5: memref<1x128xf32, #tpu.memory_space<vmem>>, %arg6: memref<1x128xf32, #tpu.memory_space<vmem>>, %arg7: memref<2x1x128xf32, #tpu.memory_space<vmem>>, %arg8: memref<2x1x128xf32, #tpu.memory_space<vmem>>, %arg9: memref<2x4x128x32xbf16, #tpu.memory_space<vmem>>, %arg10: memref<2x4x128x32xbf16, #tpu.memory_space<vmem>>, %arg11: memref<2x4x128x32xbf16, #tpu.memory_space<vmem>>, %arg12: memref<2x4x1x32xf32, #tpu.memory_space<vmem>>, %arg13: memref<2x4x1x32xf32, #tpu.memory_space<vmem>>, %arg14: memref<2x4x1x32xf32, #tpu.memory_space<vmem>>, %arg15: memref<2x4x32x128xbf16, #tpu.memory_space<vmem>>, %arg16: memref<2x1x128xf32, #tpu.memory_space<vmem>>, %arg17: memref<2x1x128xf32, #tpu.memory_space<vmem>>, %arg18: memref<2x1x128xf32, #tpu.memory_space<vmem>>, %arg19: memref<2x128x256xbf16, #tpu.memory_space<vmem>>, %arg20: memref<2x1x256xf32, #tpu.memory_space<vmem>>, %arg21: memref<2x256x128xbf16, #tpu.memory_space<vmem>>, %arg22: memref<2x1x128xf32, #tpu.memory_space<vmem>>, %arg23: memref<8x1xi32, #tpu.memory_space<vmem>>) attributes {dimension_semantics = [], scalar_prefetch = 0 : i64, scratch_operands = 0 : i64, tpu.core_type = #tpu.core_type<tc>} {
    %0 = tpu.iota {dimensions = array<i32: 0>} : vector<8x8xi32>
    %1 = tpu.iota {dimensions = array<i32: 1>} : vector<8x8xi32>
    %2 = arith.cmpi sle, %1, %0 : vector<8x8xi32>
    %cst = arith.constant 0.000000e+00 : f32
    %cst_0 = arith.constant -1.000000e+09 : f32
    %3 = vector.broadcast %cst : f32 to vector<8x8xf32>
    %4 = vector.broadcast %cst_0 : f32 to vector<8x8xf32>
    %5 = arith.select %2, %3, %4 : vector<8x8xi1>, vector<8x8xf32>
    %6 = tpu.iota {dimensions = array<i32: 1>} : vector<8x128xi32>
    %7 = tpu.iota {dimensions = array<i32: 0>} : vector<8x128xi32>
    %8 = tpu.iota {dimensions = array<i32: 1>} : vector<1x128xi32>
    %9 = tpu.iota {dimensions = array<i32: 0>} : vector<8x1xi32>
    %c0 = arith.constant 0 : index
    %c0_1 = arith.constant 0 : index
    %10 = vector.load %arg2[%c0, %c0_1] : memref<128x128xbf16, #tpu.memory_space<vmem>>, vector<128x128xbf16>
    %c0_2 = arith.constant 0 : index
    %c0_3 = arith.constant 0 : index
    %11 = vector.load %arg3[%c0_2, %c0_3] : memref<128x128xbf16, #tpu.memory_space<vmem>>, vector<128x128xbf16>
    %c0_4 = arith.constant 0 : index
    %c0_5 = arith.constant 0 : index
    %12 = vector.load %arg4[%c0_4, %c0_5] : memref<8x128xf32, #tpu.memory_space<vmem>>, vector<8x128xf32>
    %c0_6 = arith.constant 0 : index
    %c0_7 = arith.constant 0 : index
    %13 = vector.load %arg5[%c0_6, %c0_7] : memref<1x128xf32, #tpu.memory_space<vmem>>, vector<1x128xf32>
    %c0_8 = arith.constant 0 : index
    %c0_9 = arith.constant 0 : index
    %14 = vector.load %arg6[%c0_8, %c0_9] : memref<1x128xf32, #tpu.memory_space<vmem>>, vector<1x128xf32>
    %c0_10 = arith.constant 0 : index
    %c0_11 = arith.constant 0 : index
    %15 = vector.load %arg0[%c0_10, %c0_11] : memref<8x1xi32, #tpu.memory_space<vmem>>, vector<8x1xi32>
    %c0_12 = arith.constant 0 : index
    %16 = memref.load %arg1[%c0_12] : memref<1xi32, #tpu.memory_space<smem>>
    %c8_i32 = arith.constant 8 : i32
    %17 = arith.subi %c8_i32, %16 : i32
    %18 = arith.addi %16, %17 : i32
    %c1_i32 = arith.constant 1 : i32
    %19 = scf.for %arg24 = %16 to %18 step %c1_i32 iter_args(%arg25 = %15) -> (vector<8x1xi32>)  : i32 {
      %21 = vector.broadcast %arg25 : vector<8x1xi32> to vector<8x128xi32>
      %22 = arith.cmpi eq, %21, %6 : vector<8x128xi32>
      %23 = arith.extui %22 : vector<8x128xi1> to vector<8x128xi32>
      %24 = arith.sitofp %23 : vector<8x128xi32> to vector<8x128xf32>
      %25 = arith.truncf %24 : vector<8x128xf32> to vector<8x128xbf16>
      %cst_15 = arith.constant dense<0.000000e+00> : vector<8x128xf32>
      %26 = tpu.matmul %25, %10, %cst_15 {dimension_numbers = #tpu.dot_dimension_numbers<[1], [0], [0], [1], [0, 0, 1, 1], [], []>} : vector<8x128xbf16>, vector<128x128xbf16>, vector<8x128xf32> -> vector<8x128xf32>
      %27 = arith.addf %26, %12 : vector<8x128xf32>
      %c0_16 = arith.constant 0 : index
      %c0_17 = arith.constant 0 : index
      %c0_18 = arith.constant 0 : index
      %28 = vector.load %arg7[%c0_16, %c0_17, %c0_18] : memref<2x1x128xf32, #tpu.memory_space<vmem>>, vector<1x1x128xf32>
      %29 = vector.shape_cast %28 : vector<1x1x128xf32> to vector<1x128xf32>
      %c0_19 = arith.constant 0 : index
      %c0_20 = arith.constant 0 : index
      %c0_21 = arith.constant 0 : index
      %30 = vector.load %arg8[%c0_19, %c0_20, %c0_21] : memref<2x1x128xf32, #tpu.memory_space<vmem>>, vector<1x1x128xf32>
      %31 = vector.shape_cast %30 : vector<1x1x128xf32> to vector<1x128xf32>
      %cst_22 = arith.constant dense<0.000000e+00> : vector<8xf32>
      %32 = vector.multi_reduction <add>, %27, %cst_22 [1] : vector<8x128xf32> to vector<8xf32>
      %33 = vector.shape_cast %32 : vector<8xf32> to vector<8x1xf32>
      %cst_23 = arith.constant 1.280000e+02 : f32
      %34 = vector.broadcast %cst_23 : f32 to vector<8x1xf32>
      %35 = arith.divf %33, %34 : vector<8x1xf32>
      %36 = vector.broadcast %35 : vector<8x1xf32> to vector<8x128xf32>
      %37 = arith.subf %27, %36 : vector<8x128xf32>
      %38 = arith.mulf %37, %37 : vector<8x128xf32>
      %cst_24 = arith.constant dense<0.000000e+00> : vector<8xf32>
      %39 = vector.multi_reduction <add>, %38, %cst_24 [1] : vector<8x128xf32> to vector<8xf32>
      %40 = vector.shape_cast %39 : vector<8xf32> to vector<8x1xf32>
      %cst_25 = arith.constant 1.280000e+02 : f32
      %41 = vector.broadcast %cst_25 : f32 to vector<8x1xf32>
      %42 = arith.divf %40, %41 : vector<8x1xf32>
      %43 = vector.broadcast %35 : vector<8x1xf32> to vector<8x128xf32>
      %44 = arith.subf %27, %43 : vector<8x128xf32>
      %cst_26 = arith.constant 9.99999974E-6 : f32
      %45 = vector.broadcast %cst_26 : f32 to vector<8x1xf32>
      %46 = arith.addf %42, %45 : vector<8x1xf32>
      %47 = math.rsqrt %46 : vector<8x1xf32>
      %48 = vector.broadcast %47 : vector<8x1xf32> to vector<8x128xf32>
      %49 = arith.mulf %44, %48 : vector<8x128xf32>
      %50 = vector.broadcast %29 : vector<1x128xf32> to vector<8x128xf32>
      %51 = arith.mulf %49, %50 : vector<8x128xf32>
      %52 = vector.broadcast %31 : vector<1x128xf32> to vector<8x128xf32>
      %53 = arith.addf %51, %52 : vector<8x128xf32>
      %54 = arith.truncf %53 : vector<8x128xf32> to vector<8x128xbf16>
      %cst_27 = arith.constant 0.000000e+00 : f32
      %55 = vector.broadcast %cst_27 : f32 to vector<8x128xf32>
      %c0_28 = arith.constant 0 : index
      %c0_29 = arith.constant 0 : index
      %c0_30 = arith.constant 0 : index
      %c0_31 = arith.constant 0 : index
      %56 = vector.load %arg9[%c0_28, %c0_29, %c0_30, %c0_31] : memref<2x4x128x32xbf16, #tpu.memory_space<vmem>>, vector<1x1x128x32xbf16>
      %57 = vector.shape_cast %56 : vector<1x1x128x32xbf16> to vector<128x32xbf16>
      %cst_32 = arith.constant dense<0.000000e+00> : vector<8x32xf32>
      %58 = tpu.matmul %54, %57, %cst_32 {dimension_numbers = #tpu.dot_dimension_numbers<[1], [0], [0], [1], [0, 0, 1, 1], [], []>} : vector<8x128xbf16>, vector<128x32xbf16>, vector<8x32xf32> -> vector<8x32xf32>
      %c0_33 = arith.constant 0 : index
      %c0_34 = arith.constant 0 : index
      %c0_35 = arith.constant 0 : index
      %c0_36 = arith.constant 0 : index
      %59 = vector.load %arg12[%c0_33, %c0_34, %c0_35, %c0_36] : memref<2x4x1x32xf32, #tpu.memory_space<vmem>>, vector<1x1x1x32xf32>
      %60 = vector.shape_cast %59 : vector<1x1x1x32xf32> to vector<1x32xf32>
      %61 = vector.broadcast %60 : vector<1x32xf32> to vector<8x32xf32>
      %62 = arith.addf %58, %61 : vector<8x32xf32>
      %c0_37 = arith.constant 0 : index
      %c0_38 = arith.constant 0 : index
      %c0_39 = arith.constant 0 : index
      %c0_40 = arith.constant 0 : index
      %63 = vector.load %arg10[%c0_37, %c0_38, %c0_39, %c0_40] : memref<2x4x128x32xbf16, #tpu.memory_space<vmem>>, vector<1x1x128x32xbf16>
      %64 = vector.shape_cast %63 : vector<1x1x128x32xbf16> to vector<128x32xbf16>
      %cst_41 = arith.constant dense<0.000000e+00> : vector<8x32xf32>
      %65 = tpu.matmul %54, %64, %cst_41 {dimension_numbers = #tpu.dot_dimension_numbers<[1], [0], [0], [1], [0, 0, 1, 1], [], []>} : vector<8x128xbf16>, vector<128x32xbf16>, vector<8x32xf32> -> vector<8x32xf32>
      %c0_42 = arith.constant 0 : index
      %c0_43 = arith.constant 0 : index
      %c0_44 = arith.constant 0 : index
      %c0_45 = arith.constant 0 : index
      %66 = vector.load %arg13[%c0_42, %c0_43, %c0_44, %c0_45] : memref<2x4x1x32xf32, #tpu.memory_space<vmem>>, vector<1x1x1x32xf32>
      %67 = vector.shape_cast %66 : vector<1x1x1x32xf32> to vector<1x32xf32>
      %68 = vector.broadcast %67 : vector<1x32xf32> to vector<8x32xf32>
      %69 = arith.addf %65, %68 : vector<8x32xf32>
      %c0_46 = arith.constant 0 : index
      %c0_47 = arith.constant 0 : index
      %c0_48 = arith.constant 0 : index
      %c0_49 = arith.constant 0 : index
      %70 = vector.load %arg11[%c0_46, %c0_47, %c0_48, %c0_49] : memref<2x4x128x32xbf16, #tpu.memory_space<vmem>>, vector<1x1x128x32xbf16>
      %71 = vector.shape_cast %70 : vector<1x1x128x32xbf16> to vector<128x32xbf16>
      %cst_50 = arith.constant dense<0.000000e+00> : vector<8x32xf32>
      %72 = tpu.matmul %54, %71, %cst_50 {dimension_numbers = #tpu.dot_dimension_numbers<[1], [0], [0], [1], [0, 0, 1, 1], [], []>} : vector<8x128xbf16>, vector<128x32xbf16>, vector<8x32xf32> -> vector<8x32xf32>
      %c0_51 = arith.constant 0 : index
      %c0_52 = arith.constant 0 : index
      %c0_53 = arith.constant 0 : index
      %c0_54 = arith.constant 0 : index
      %73 = vector.load %arg14[%c0_51, %c0_52, %c0_53, %c0_54] : memref<2x4x1x32xf32, #tpu.memory_space<vmem>>, vector<1x1x1x32xf32>
      %74 = vector.shape_cast %73 : vector<1x1x1x32xf32> to vector<1x32xf32>
      %75 = vector.broadcast %74 : vector<1x32xf32> to vector<8x32xf32>
      %76 = arith.addf %72, %75 : vector<8x32xf32>
      %77 = arith.truncf %62 : vector<8x32xf32> to vector<8x32xbf16>
      %78 = arith.truncf %69 : vector<8x32xf32> to vector<8x32xbf16>
      "tpu.trace_start"() <{level = 10 : i32, message = "qd,kd->qk"}> : () -> ()
      %cst_55 = arith.constant dense<0.000000e+00> : vector<8x8xf32>
      %79 = tpu.matmul %77, %78, %cst_55 {dimension_numbers = #tpu.dot_dimension_numbers<[1], [1], [0], [0], [0, 0, 1, 0], [], []>} : vector<8x32xbf16>, vector<8x32xbf16>, vector<8x8xf32> -> vector<8x8xf32>
      "tpu.trace_stop"() : () -> ()
      %cst_56 = arith.constant 0.176776692 : f32
      %80 = vector.broadcast %cst_56 : f32 to vector<8x8xf32>
      %81 = arith.mulf %79, %80 : vector<8x8xf32>
      %82 = arith.addf %81, %5 : vector<8x8xf32>
      %cst_57 = arith.constant dense<0xFF800000> : vector<8xf32>
      %83 = vector.multi_reduction <maximumf>, %82, %cst_57 [1] : vector<8x8xf32> to vector<8xf32>
      %84 = vector.shape_cast %83 : vector<8xf32> to vector<8x1xf32>
      %85 = vector.broadcast %84 : vector<8x1xf32> to vector<8x8xf32>
      %86 = arith.subf %82, %85 : vector<8x8xf32>
      %87 = math.exp %86 : vector<8x8xf32>
      %cst_58 = arith.constant dense<0.000000e+00> : vector<8xf32>
      %88 = vector.multi_reduction <add>, %87, %cst_58 [1] : vector<8x8xf32> to vector<8xf32>
      %89 = vector.shape_cast %88 : vector<8xf32> to vector<8x1xf32>
      %90 = tpu.reciprocal %89 {approx = true} : vector<8x1xf32> -> vector<8x1xf32>
      %91 = vector.broadcast %90 : vector<8x1xf32> to vector<8x8xf32>
      %92 = arith.mulf %87, %91 : vector<8x8xf32>
      %93 = arith.truncf %92 : vector<8x8xf32> to vector<8x8xbf16>
      %94 = arith.truncf %76 : vector<8x32xf32> to vector<8x32xbf16>
      %cst_59 = arith.constant dense<0.000000e+00> : vector<8x32xf32>
      %95 = tpu.matmul %93, %94, %cst_59 {dimension_numbers = #tpu.dot_dimension_numbers<[1], [0], [0], [1], [0, 0, 1, 1], [], []>} : vector<8x8xbf16>, vector<8x32xbf16>, vector<8x32xf32> -> vector<8x32xf32>
      %96 = arith.truncf %95 : vector<8x32xf32> to vector<8x32xbf16>
      %c0_60 = arith.constant 0 : index
      %c0_61 = arith.constant 0 : index
      %c0_62 = arith.constant 0 : index
      %c0_63 = arith.constant 0 : index
      %97 = vector.load %arg15[%c0_60, %c0_61, %c0_62, %c0_63] : memref<2x4x32x128xbf16, #tpu.memory_space<vmem>>, vector<1x1x32x128xbf16>
      %98 = vector.shape_cast %97 : vector<1x1x32x128xbf16> to vector<32x128xbf16>
      %cst_64 = arith.constant dense<0.000000e+00> : vector<8x128xf32>
      %99 = tpu.matmul %96, %98, %cst_64 {dimension_numbers = #tpu.dot_dimension_numbers<[1], [0], [0], [1], [0, 0, 1, 1], [], []>} : vector<8x32xbf16>, vector<32x128xbf16>, vector<8x128xf32> -> vector<8x128xf32>
      %100 = arith.addf %55, %99 : vector<8x128xf32>
      %c0_65 = arith.constant 0 : index
      %c1 = arith.constant 1 : index
      %c0_66 = arith.constant 0 : index
      %c0_67 = arith.constant 0 : index
      %101 = vector.load %arg9[%c0_65, %c1, %c0_66, %c0_67] : memref<2x4x128x32xbf16, #tpu.memory_space<vmem>>, vector<1x1x128x32xbf16>
      %102 = vector.shape_cast %101 : vector<1x1x128x32xbf16> to vector<128x32xbf16>
      %cst_68 = arith.constant dense<0.000000e+00> : vector<8x32xf32>
      %103 = tpu.matmul %54, %102, %cst_68 {dimension_numbers = #tpu.dot_dimension_numbers<[1], [0], [0], [1], [0, 0, 1, 1], [], []>} : vector<8x128xbf16>, vector<128x32xbf16>, vector<8x32xf32> -> vector<8x32xf32>
      %c0_69 = arith.constant 0 : index
      %c1_70 = arith.constant 1 : index
      %c0_71 = arith.constant 0 : index
      %c0_72 = arith.constant 0 : index
      %104 = vector.load %arg12[%c0_69, %c1_70, %c0_71, %c0_72] : memref<2x4x1x32xf32, #tpu.memory_space<vmem>>, vector<1x1x1x32xf32>
      %105 = vector.shape_cast %104 : vector<1x1x1x32xf32> to vector<1x32xf32>
      %106 = vector.broadcast %105 : vector<1x32xf32> to vector<8x32xf32>
      %107 = arith.addf %103, %106 : vector<8x32xf32>
      %c0_73 = arith.constant 0 : index
      %c1_74 = arith.constant 1 : index
      %c0_75 = arith.constant 0 : index
      %c0_76 = arith.constant 0 : index
      %108 = vector.load %arg10[%c0_73, %c1_74, %c0_75, %c0_76] : memref<2x4x128x32xbf16, #tpu.memory_space<vmem>>, vector<1x1x128x32xbf16>
      %109 = vector.shape_cast %108 : vector<1x1x128x32xbf16> to vector<128x32xbf16>
      %cst_77 = arith.constant dense<0.000000e+00> : vector<8x32xf32>
      %110 = tpu.matmul %54, %109, %cst_77 {dimension_numbers = #tpu.dot_dimension_numbers<[1], [0], [0], [1], [0, 0, 1, 1], [], []>} : vector<8x128xbf16>, vector<128x32xbf16>, vector<8x32xf32> -> vector<8x32xf32>
      %c0_78 = arith.constant 0 : index
      %c1_79 = arith.constant 1 : index
      %c0_80 = arith.constant 0 : index
      %c0_81 = arith.constant 0 : index
      %111 = vector.load %arg13[%c0_78, %c1_79, %c0_80, %c0_81] : memref<2x4x1x32xf32, #tpu.memory_space<vmem>>, vector<1x1x1x32xf32>
      %112 = vector.shape_cast %111 : vector<1x1x1x32xf32> to vector<1x32xf32>
      %113 = vector.broadcast %112 : vector<1x32xf32> to vector<8x32xf32>
      %114 = arith.addf %110, %113 : vector<8x32xf32>
      %c0_82 = arith.constant 0 : index
      %c1_83 = arith.constant 1 : index
      %c0_84 = arith.constant 0 : index
      %c0_85 = arith.constant 0 : index
      %115 = vector.load %arg11[%c0_82, %c1_83, %c0_84, %c0_85] : memref<2x4x128x32xbf16, #tpu.memory_space<vmem>>, vector<1x1x128x32xbf16>
      %116 = vector.shape_cast %115 : vector<1x1x128x32xbf16> to vector<128x32xbf16>
      %cst_86 = arith.constant dense<0.000000e+00> : vector<8x32xf32>
      %117 = tpu.matmul %54, %116, %cst_86 {dimension_numbers = #tpu.dot_dimension_numbers<[1], [0], [0], [1], [0, 0, 1, 1], [], []>} : vector<8x128xbf16>, vector<128x32xbf16>, vector<8x32xf32> -> vector<8x32xf32>
      %c0_87 = arith.constant 0 : index
      %c1_88 = arith.constant 1 : index
      %c0_89 = arith.constant 0 : index
      %c0_90 = arith.constant 0 : index
      %118 = vector.load %arg14[%c0_87, %c1_88, %c0_89, %c0_90] : memref<2x4x1x32xf32, #tpu.memory_space<vmem>>, vector<1x1x1x32xf32>
      %119 = vector.shape_cast %118 : vector<1x1x1x32xf32> to vector<1x32xf32>
      %120 = vector.broadcast %119 : vector<1x32xf32> to vector<8x32xf32>
      %121 = arith.addf %117, %120 : vector<8x32xf32>
      %122 = arith.truncf %107 : vector<8x32xf32> to vector<8x32xbf16>
      %123 = arith.truncf %114 : vector<8x32xf32> to vector<8x32xbf16>
      "tpu.trace_start"() <{level = 10 : i32, message = "qd,kd->qk"}> : () -> ()
      %cst_91 = arith.constant dense<0.000000e+00> : vector<8x8xf32>
      %124 = tpu.matmul %122, %123, %cst_91 {dimension_numbers = #tpu.dot_dimension_numbers<[1], [1], [0], [0], [0, 0, 1, 0], [], []>} : vector<8x32xbf16>, vector<8x32xbf16>, vector<8x8xf32> -> vector<8x8xf32>
      "tpu.trace_stop"() : () -> ()
      %cst_92 = arith.constant 0.176776692 : f32
      %125 = vector.broadcast %cst_92 : f32 to vector<8x8xf32>
      %126 = arith.mulf %124, %125 : vector<8x8xf32>
      %127 = arith.addf %126, %5 : vector<8x8xf32>
      %cst_93 = arith.constant dense<0xFF800000> : vector<8xf32>
      %128 = vector.multi_reduction <maximumf>, %127, %cst_93 [1] : vector<8x8xf32> to vector<8xf32>
      %129 = vector.shape_cast %128 : vector<8xf32> to vector<8x1xf32>
      %130 = vector.broadcast %129 : vector<8x1xf32> to vector<8x8xf32>
      %131 = arith.subf %127, %130 : vector<8x8xf32>
      %132 = math.exp %131 : vector<8x8xf32>
      %cst_94 = arith.constant dense<0.000000e+00> : vector<8xf32>
      %133 = vector.multi_reduction <add>, %132, %cst_94 [1] : vector<8x8xf32> to vector<8xf32>
      %134 = vector.shape_cast %133 : vector<8xf32> to vector<8x1xf32>
      %135 = tpu.reciprocal %134 {approx = true} : vector<8x1xf32> -> vector<8x1xf32>
      %136 = vector.broadcast %135 : vector<8x1xf32> to vector<8x8xf32>
      %137 = arith.mulf %132, %136 : vector<8x8xf32>
      %138 = arith.truncf %137 : vector<8x8xf32> to vector<8x8xbf16>
      %139 = arith.truncf %121 : vector<8x32xf32> to vector<8x32xbf16>
      %cst_95 = arith.constant dense<0.000000e+00> : vector<8x32xf32>
      %140 = tpu.matmul %138, %139, %cst_95 {dimension_numbers = #tpu.dot_dimension_numbers<[1], [0], [0], [1], [0, 0, 1, 1], [], []>} : vector<8x8xbf16>, vector<8x32xbf16>, vector<8x32xf32> -> vector<8x32xf32>
      %141 = arith.truncf %140 : vector<8x32xf32> to vector<8x32xbf16>
      %c0_96 = arith.constant 0 : index
      %c1_97 = arith.constant 1 : index
      %c0_98 = arith.constant 0 : index
      %c0_99 = arith.constant 0 : index
      %142 = vector.load %arg15[%c0_96, %c1_97, %c0_98, %c0_99] : memref<2x4x32x128xbf16, #tpu.memory_space<vmem>>, vector<1x1x32x128xbf16>
      %143 = vector.shape_cast %142 : vector<1x1x32x128xbf16> to vector<32x128xbf16>
      %cst_100 = arith.constant dense<0.000000e+00> : vector<8x128xf32>
      %144 = tpu.matmul %141, %143, %cst_100 {dimension_numbers = #tpu.dot_dimension_numbers<[1], [0], [0], [1], [0, 0, 1, 1], [], []>} : vector<8x32xbf16>, vector<32x128xbf16>, vector<8x128xf32> -> vector<8x128xf32>
      %145 = arith.addf %100, %144 : vector<8x128xf32>
      %c0_101 = arith.constant 0 : index
      %c2 = arith.constant 2 : index
      %c0_102 = arith.constant 0 : index
      %c0_103 = arith.constant 0 : index
      %146 = vector.load %arg9[%c0_101, %c2, %c0_102, %c0_103] : memref<2x4x128x32xbf16, #tpu.memory_space<vmem>>, vector<1x1x128x32xbf16>
      %147 = vector.shape_cast %146 : vector<1x1x128x32xbf16> to vector<128x32xbf16>
      %cst_104 = arith.constant dense<0.000000e+00> : vector<8x32xf32>
      %148 = tpu.matmul %54, %147, %cst_104 {dimension_numbers = #tpu.dot_dimension_numbers<[1], [0], [0], [1], [0, 0, 1, 1], [], []>} : vector<8x128xbf16>, vector<128x32xbf16>, vector<8x32xf32> -> vector<8x32xf32>
      %c0_105 = arith.constant 0 : index
      %c2_106 = arith.constant 2 : index
      %c0_107 = arith.constant 0 : index
      %c0_108 = arith.constant 0 : index
      %149 = vector.load %arg12[%c0_105, %c2_106, %c0_107, %c0_108] : memref<2x4x1x32xf32, #tpu.memory_space<vmem>>, vector<1x1x1x32xf32>
      %150 = vector.shape_cast %149 : vector<1x1x1x32xf32> to vector<1x32xf32>
      %151 = vector.broadcast %150 : vector<1x32xf32> to vector<8x32xf32>
      %152 = arith.addf %148, %151 : vector<8x32xf32>
      %c0_109 = arith.constant 0 : index
      %c2_110 = arith.constant 2 : index
      %c0_111 = arith.constant 0 : index
      %c0_112 = arith.constant 0 : index
      %153 = vector.load %arg10[%c0_109, %c2_110, %c0_111, %c0_112] : memref<2x4x128x32xbf16, #tpu.memory_space<vmem>>, vector<1x1x128x32xbf16>
      %154 = vector.shape_cast %153 : vector<1x1x128x32xbf16> to vector<128x32xbf16>
      %cst_113 = arith.constant dense<0.000000e+00> : vector<8x32xf32>
      %155 = tpu.matmul %54, %154, %cst_113 {dimension_numbers = #tpu.dot_dimension_numbers<[1], [0], [0], [1], [0, 0, 1, 1], [], []>} : vector<8x128xbf16>, vector<128x32xbf16>, vector<8x32xf32> -> vector<8x32xf32>
      %c0_114 = arith.constant 0 : index
      %c2_115 = arith.constant 2 : index
      %c0_116 = arith.constant 0 : index
      %c0_117 = arith.constant 0 : index
      %156 = vector.load %arg13[%c0_114, %c2_115, %c0_116, %c0_117] : memref<2x4x1x32xf32, #tpu.memory_space<vmem>>, vector<1x1x1x32xf32>
      %157 = vector.shape_cast %156 : vector<1x1x1x32xf32> to vector<1x32xf32>
      %158 = vector.broadcast %157 : vector<1x32xf32> to vector<8x32xf32>
      %159 = arith.addf %155, %158 : vector<8x32xf32>
      %c0_118 = arith.constant 0 : index
      %c2_119 = arith.constant 2 : index
      %c0_120 = arith.constant 0 : index
      %c0_121 = arith.constant 0 : index
      %160 = vector.load %arg11[%c0_118, %c2_119, %c0_120, %c0_121] : memref<2x4x128x32xbf16, #tpu.memory_space<vmem>>, vector<1x1x128x32xbf16>
      %161 = vector.shape_cast %160 : vector<1x1x128x32xbf16> to vector<128x32xbf16>
      %cst_122 = arith.constant dense<0.000000e+00> : vector<8x32xf32>
      %162 = tpu.matmul %54, %161, %cst_122 {dimension_numbers = #tpu.dot_dimension_numbers<[1], [0], [0], [1], [0, 0, 1, 1], [], []>} : vector<8x128xbf16>, vector<128x32xbf16>, vector<8x32xf32> -> vector<8x32xf32>
      %c0_123 = arith.constant 0 : index
      %c2_124 = arith.constant 2 : index
      %c0_125 = arith.constant 0 : index
      %c0_126 = arith.constant 0 : index
      %163 = vector.load %arg14[%c0_123, %c2_124, %c0_125, %c0_126] : memref<2x4x1x32xf32, #tpu.memory_space<vmem>>, vector<1x1x1x32xf32>
      %164 = vector.shape_cast %163 : vector<1x1x1x32xf32> to vector<1x32xf32>
      %165 = vector.broadcast %164 : vector<1x32xf32> to vector<8x32xf32>
      %166 = arith.addf %162, %165 : vector<8x32xf32>
      %167 = arith.truncf %152 : vector<8x32xf32> to vector<8x32xbf16>
      %168 = arith.truncf %159 : vector<8x32xf32> to vector<8x32xbf16>
      "tpu.trace_start"() <{level = 10 : i32, message = "qd,kd->qk"}> : () -> ()
      %cst_127 = arith.constant dense<0.000000e+00> : vector<8x8xf32>
      %169 = tpu.matmul %167, %168, %cst_127 {dimension_numbers = #tpu.dot_dimension_numbers<[1], [1], [0], [0], [0, 0, 1, 0], [], []>} : vector<8x32xbf16>, vector<8x32xbf16>, vector<8x8xf32> -> vector<8x8xf32>
      "tpu.trace_stop"() : () -> ()
      %cst_128 = arith.constant 0.176776692 : f32
      %170 = vector.broadcast %cst_128 : f32 to vector<8x8xf32>
      %171 = arith.mulf %169, %170 : vector<8x8xf32>
      %172 = arith.addf %171, %5 : vector<8x8xf32>
      %cst_129 = arith.constant dense<0xFF800000> : vector<8xf32>
      %173 = vector.multi_reduction <maximumf>, %172, %cst_129 [1] : vector<8x8xf32> to vector<8xf32>
      %174 = vector.shape_cast %173 : vector<8xf32> to vector<8x1xf32>
      %175 = vector.broadcast %174 : vector<8x1xf32> to vector<8x8xf32>
      %176 = arith.subf %172, %175 : vector<8x8xf32>
      %177 = math.exp %176 : vector<8x8xf32>
      %cst_130 = arith.constant dense<0.000000e+00> : vector<8xf32>
      %178 = vector.multi_reduction <add>, %177, %cst_130 [1] : vector<8x8xf32> to vector<8xf32>
      %179 = vector.shape_cast %178 : vector<8xf32> to vector<8x1xf32>
      %180 = tpu.reciprocal %179 {approx = true} : vector<8x1xf32> -> vector<8x1xf32>
      %181 = vector.broadcast %180 : vector<8x1xf32> to vector<8x8xf32>
      %182 = arith.mulf %177, %181 : vector<8x8xf32>
      %183 = arith.truncf %182 : vector<8x8xf32> to vector<8x8xbf16>
      %184 = arith.truncf %166 : vector<8x32xf32> to vector<8x32xbf16>
      %cst_131 = arith.constant dense<0.000000e+00> : vector<8x32xf32>
      %185 = tpu.matmul %183, %184, %cst_131 {dimension_numbers = #tpu.dot_dimension_numbers<[1], [0], [0], [1], [0, 0, 1, 1], [], []>} : vector<8x8xbf16>, vector<8x32xbf16>, vector<8x32xf32> -> vector<8x32xf32>
      %186 = arith.truncf %185 : vector<8x32xf32> to vector<8x32xbf16>
      %c0_132 = arith.constant 0 : index
      %c2_133 = arith.constant 2 : index
      %c0_134 = arith.constant 0 : index
      %c0_135 = arith.constant 0 : index
      %187 = vector.load %arg15[%c0_132, %c2_133, %c0_134, %c0_135] : memref<2x4x32x128xbf16, #tpu.memory_space<vmem>>, vector<1x1x32x128xbf16>
      %188 = vector.shape_cast %187 : vector<1x1x32x128xbf16> to vector<32x128xbf16>
      %cst_136 = arith.constant dense<0.000000e+00> : vector<8x128xf32>
      %189 = tpu.matmul %186, %188, %cst_136 {dimension_numbers = #tpu.dot_dimension_numbers<[1], [0], [0], [1], [0, 0, 1, 1], [], []>} : vector<8x32xbf16>, vector<32x128xbf16>, vector<8x128xf32> -> vector<8x128xf32>
      %190 = arith.addf %145, %189 : vector<8x128xf32>
      %c0_137 = arith.constant 0 : index
      %c3 = arith.constant 3 : index
      %c0_138 = arith.constant 0 : index
      %c0_139 = arith.constant 0 : index
      %191 = vector.load %arg9[%c0_137, %c3, %c0_138, %c0_139] : memref<2x4x128x32xbf16, #tpu.memory_space<vmem>>, vector<1x1x128x32xbf16>
      %192 = vector.shape_cast %191 : vector<1x1x128x32xbf16> to vector<128x32xbf16>
      %cst_140 = arith.constant dense<0.000000e+00> : vector<8x32xf32>
      %193 = tpu.matmul %54, %192, %cst_140 {dimension_numbers = #tpu.dot_dimension_numbers<[1], [0], [0], [1], [0, 0, 1, 1], [], []>} : vector<8x128xbf16>, vector<128x32xbf16>, vector<8x32xf32> -> vector<8x32xf32>
      %c0_141 = arith.constant 0 : index
      %c3_142 = arith.constant 3 : index
      %c0_143 = arith.constant 0 : index
      %c0_144 = arith.constant 0 : index
      %194 = vector.load %arg12[%c0_141, %c3_142, %c0_143, %c0_144] : memref<2x4x1x32xf32, #tpu.memory_space<vmem>>, vector<1x1x1x32xf32>
      %195 = vector.shape_cast %194 : vector<1x1x1x32xf32> to vector<1x32xf32>
      %196 = vector.broadcast %195 : vector<1x32xf32> to vector<8x32xf32>
      %197 = arith.addf %193, %196 : vector<8x32xf32>
      %c0_145 = arith.constant 0 : index
      %c3_146 = arith.constant 3 : index
      %c0_147 = arith.constant 0 : index
      %c0_148 = arith.constant 0 : index
      %198 = vector.load %arg10[%c0_145, %c3_146, %c0_147, %c0_148] : memref<2x4x128x32xbf16, #tpu.memory_space<vmem>>, vector<1x1x128x32xbf16>
      %199 = vector.shape_cast %198 : vector<1x1x128x32xbf16> to vector<128x32xbf16>
      %cst_149 = arith.constant dense<0.000000e+00> : vector<8x32xf32>
      %200 = tpu.matmul %54, %199, %cst_149 {dimension_numbers = #tpu.dot_dimension_numbers<[1], [0], [0], [1], [0, 0, 1, 1], [], []>} : vector<8x128xbf16>, vector<128x32xbf16>, vector<8x32xf32> -> vector<8x32xf32>
      %c0_150 = arith.constant 0 : index
      %c3_151 = arith.constant 3 : index
      %c0_152 = arith.constant 0 : index
      %c0_153 = arith.constant 0 : index
      %201 = vector.load %arg13[%c0_150, %c3_151, %c0_152, %c0_153] : memref<2x4x1x32xf32, #tpu.memory_space<vmem>>, vector<1x1x1x32xf32>
      %202 = vector.shape_cast %201 : vector<1x1x1x32xf32> to vector<1x32xf32>
      %203 = vector.broadcast %202 : vector<1x32xf32> to vector<8x32xf32>
      %204 = arith.addf %200, %203 : vector<8x32xf32>
      %c0_154 = arith.constant 0 : index
      %c3_155 = arith.constant 3 : index
      %c0_156 = arith.constant 0 : index
      %c0_157 = arith.constant 0 : index
      %205 = vector.load %arg11[%c0_154, %c3_155, %c0_156, %c0_157] : memref<2x4x128x32xbf16, #tpu.memory_space<vmem>>, vector<1x1x128x32xbf16>
      %206 = vector.shape_cast %205 : vector<1x1x128x32xbf16> to vector<128x32xbf16>
      %cst_158 = arith.constant dense<0.000000e+00> : vector<8x32xf32>
      %207 = tpu.matmul %54, %206, %cst_158 {dimension_numbers = #tpu.dot_dimension_numbers<[1], [0], [0], [1], [0, 0, 1, 1], [], []>} : vector<8x128xbf16>, vector<128x32xbf16>, vector<8x32xf32> -> vector<8x32xf32>
      %c0_159 = arith.constant 0 : index
      %c3_160 = arith.constant 3 : index
      %c0_161 = arith.constant 0 : index
      %c0_162 = arith.constant 0 : index
      %208 = vector.load %arg14[%c0_159, %c3_160, %c0_161, %c0_162] : memref<2x4x1x32xf32, #tpu.memory_space<vmem>>, vector<1x1x1x32xf32>
      %209 = vector.shape_cast %208 : vector<1x1x1x32xf32> to vector<1x32xf32>
      %210 = vector.broadcast %209 : vector<1x32xf32> to vector<8x32xf32>
      %211 = arith.addf %207, %210 : vector<8x32xf32>
      %212 = arith.truncf %197 : vector<8x32xf32> to vector<8x32xbf16>
      %213 = arith.truncf %204 : vector<8x32xf32> to vector<8x32xbf16>
      "tpu.trace_start"() <{level = 10 : i32, message = "qd,kd->qk"}> : () -> ()
      %cst_163 = arith.constant dense<0.000000e+00> : vector<8x8xf32>
      %214 = tpu.matmul %212, %213, %cst_163 {dimension_numbers = #tpu.dot_dimension_numbers<[1], [1], [0], [0], [0, 0, 1, 0], [], []>} : vector<8x32xbf16>, vector<8x32xbf16>, vector<8x8xf32> -> vector<8x8xf32>
      "tpu.trace_stop"() : () -> ()
      %cst_164 = arith.constant 0.176776692 : f32
      %215 = vector.broadcast %cst_164 : f32 to vector<8x8xf32>
      %216 = arith.mulf %214, %215 : vector<8x8xf32>
      %217 = arith.addf %216, %5 : vector<8x8xf32>
      %cst_165 = arith.constant dense<0xFF800000> : vector<8xf32>
      %218 = vector.multi_reduction <maximumf>, %217, %cst_165 [1] : vector<8x8xf32> to vector<8xf32>
      %219 = vector.shape_cast %218 : vector<8xf32> to vector<8x1xf32>
      %220 = vector.broadcast %219 : vector<8x1xf32> to vector<8x8xf32>
      %221 = arith.subf %217, %220 : vector<8x8xf32>
      %222 = math.exp %221 : vector<8x8xf32>
      %cst_166 = arith.constant dense<0.000000e+00> : vector<8xf32>
      %223 = vector.multi_reduction <add>, %222, %cst_166 [1] : vector<8x8xf32> to vector<8xf32>
      %224 = vector.shape_cast %223 : vector<8xf32> to vector<8x1xf32>
      %225 = tpu.reciprocal %224 {approx = true} : vector<8x1xf32> -> vector<8x1xf32>
      %226 = vector.broadcast %225 : vector<8x1xf32> to vector<8x8xf32>
      %227 = arith.mulf %222, %226 : vector<8x8xf32>
      %228 = arith.truncf %227 : vector<8x8xf32> to vector<8x8xbf16>
      %229 = arith.truncf %211 : vector<8x32xf32> to vector<8x32xbf16>
      %cst_167 = arith.constant dense<0.000000e+00> : vector<8x32xf32>
      %230 = tpu.matmul %228, %229, %cst_167 {dimension_numbers = #tpu.dot_dimension_numbers<[1], [0], [0], [1], [0, 0, 1, 1], [], []>} : vector<8x8xbf16>, vector<8x32xbf16>, vector<8x32xf32> -> vector<8x32xf32>
      %231 = arith.truncf %230 : vector<8x32xf32> to vector<8x32xbf16>
      %c0_168 = arith.constant 0 : index
      %c3_169 = arith.constant 3 : index
      %c0_170 = arith.constant 0 : index
      %c0_171 = arith.constant 0 : index
      %232 = vector.load %arg15[%c0_168, %c3_169, %c0_170, %c0_171] : memref<2x4x32x128xbf16, #tpu.memory_space<vmem>>, vector<1x1x32x128xbf16>
      %233 = vector.shape_cast %232 : vector<1x1x32x128xbf16> to vector<32x128xbf16>
      %cst_172 = arith.constant dense<0.000000e+00> : vector<8x128xf32>
      %234 = tpu.matmul %231, %233, %cst_172 {dimension_numbers = #tpu.dot_dimension_numbers<[1], [0], [0], [1], [0, 0, 1, 1], [], []>} : vector<8x32xbf16>, vector<32x128xbf16>, vector<8x128xf32> -> vector<8x128xf32>
      %235 = arith.addf %190, %234 : vector<8x128xf32>
      %236 = arith.addf %27, %235 : vector<8x128xf32>
      %c0_173 = arith.constant 0 : index
      %c0_174 = arith.constant 0 : index
      %c0_175 = arith.constant 0 : index
      %237 = vector.load %arg16[%c0_173, %c0_174, %c0_175] : memref<2x1x128xf32, #tpu.memory_space<vmem>>, vector<1x1x128xf32>
      %238 = vector.shape_cast %237 : vector<1x1x128xf32> to vector<1x128xf32>
      %239 = vector.broadcast %238 : vector<1x128xf32> to vector<8x128xf32>
      %240 = arith.addf %236, %239 : vector<8x128xf32>
      %c0_176 = arith.constant 0 : index
      %c0_177 = arith.constant 0 : index
      %c0_178 = arith.constant 0 : index
      %241 = vector.load %arg17[%c0_176, %c0_177, %c0_178] : memref<2x1x128xf32, #tpu.memory_space<vmem>>, vector<1x1x128xf32>
      %242 = vector.shape_cast %241 : vector<1x1x128xf32> to vector<1x128xf32>
      %c0_179 = arith.constant 0 : index
      %c0_180 = arith.constant 0 : index
      %c0_181 = arith.constant 0 : index
      %243 = vector.load %arg18[%c0_179, %c0_180, %c0_181] : memref<2x1x128xf32, #tpu.memory_space<vmem>>, vector<1x1x128xf32>
      %244 = vector.shape_cast %243 : vector<1x1x128xf32> to vector<1x128xf32>
      %cst_182 = arith.constant dense<0.000000e+00> : vector<8xf32>
      %245 = vector.multi_reduction <add>, %240, %cst_182 [1] : vector<8x128xf32> to vector<8xf32>
      %246 = vector.shape_cast %245 : vector<8xf32> to vector<8x1xf32>
      %cst_183 = arith.constant 1.280000e+02 : f32
      %247 = vector.broadcast %cst_183 : f32 to vector<8x1xf32>
      %248 = arith.divf %246, %247 : vector<8x1xf32>
      %249 = vector.broadcast %248 : vector<8x1xf32> to vector<8x128xf32>
      %250 = arith.subf %240, %249 : vector<8x128xf32>
      %251 = arith.mulf %250, %250 : vector<8x128xf32>
      %cst_184 = arith.constant dense<0.000000e+00> : vector<8xf32>
      %252 = vector.multi_reduction <add>, %251, %cst_184 [1] : vector<8x128xf32> to vector<8xf32>
      %253 = vector.shape_cast %252 : vector<8xf32> to vector<8x1xf32>
      %cst_185 = arith.constant 1.280000e+02 : f32
      %254 = vector.broadcast %cst_185 : f32 to vector<8x1xf32>
      %255 = arith.divf %253, %254 : vector<8x1xf32>
      %256 = vector.broadcast %248 : vector<8x1xf32> to vector<8x128xf32>
      %257 = arith.subf %240, %256 : vector<8x128xf32>
      %cst_186 = arith.constant 9.99999974E-6 : f32
      %258 = vector.broadcast %cst_186 : f32 to vector<8x1xf32>
      %259 = arith.addf %255, %258 : vector<8x1xf32>
      %260 = math.rsqrt %259 : vector<8x1xf32>
      %261 = vector.broadcast %260 : vector<8x1xf32> to vector<8x128xf32>
      %262 = arith.mulf %257, %261 : vector<8x128xf32>
      %263 = vector.broadcast %242 : vector<1x128xf32> to vector<8x128xf32>
      %264 = arith.mulf %262, %263 : vector<8x128xf32>
      %265 = vector.broadcast %244 : vector<1x128xf32> to vector<8x128xf32>
      %266 = arith.addf %264, %265 : vector<8x128xf32>
      %267 = arith.truncf %266 : vector<8x128xf32> to vector<8x128xbf16>
      %c0_187 = arith.constant 0 : index
      %c0_188 = arith.constant 0 : index
      %c0_189 = arith.constant 0 : index
      %268 = vector.load %arg19[%c0_187, %c0_188, %c0_189] : memref<2x128x256xbf16, #tpu.memory_space<vmem>>, vector<1x128x256xbf16>
      %269 = vector.shape_cast %268 : vector<1x128x256xbf16> to vector<128x256xbf16>
      %cst_190 = arith.constant dense<0.000000e+00> : vector<8x256xf32>
      %270 = tpu.matmul %267, %269, %cst_190 {dimension_numbers = #tpu.dot_dimension_numbers<[1], [0], [0], [1], [0, 0, 1, 1], [], []>} : vector<8x128xbf16>, vector<128x256xbf16>, vector<8x256xf32> -> vector<8x256xf32>
      %c0_191 = arith.constant 0 : index
      %c0_192 = arith.constant 0 : index
      %c0_193 = arith.constant 0 : index
      %271 = vector.load %arg20[%c0_191, %c0_192, %c0_193] : memref<2x1x256xf32, #tpu.memory_space<vmem>>, vector<1x1x256xf32>
      %272 = vector.shape_cast %271 : vector<1x1x256xf32> to vector<1x256xf32>
      %273 = vector.broadcast %272 : vector<1x256xf32> to vector<8x256xf32>
      %274 = arith.addf %270, %273 : vector<8x256xf32>
      %275 = arith.mulf %274, %274 : vector<8x256xf32>
      %276 = arith.mulf %274, %275 : vector<8x256xf32>
      %cst_194 = arith.constant 4.471500e-02 : f32
      %277 = vector.broadcast %cst_194 : f32 to vector<8x256xf32>
      %278 = arith.mulf %277, %276 : vector<8x256xf32>
      %279 = arith.addf %274, %278 : vector<8x256xf32>
      %cst_195 = arith.constant 0.797884583 : f32
      %280 = vector.broadcast %cst_195 : f32 to vector<8x256xf32>
      %281 = arith.mulf %280, %279 : vector<8x256xf32>
      %282 = math.tanh %281 : vector<8x256xf32>
      %cst_196 = arith.constant 1.000000e+00 : f32
      %283 = vector.broadcast %cst_196 : f32 to vector<8x256xf32>
      %284 = arith.addf %283, %282 : vector<8x256xf32>
      %cst_197 = arith.constant 5.000000e-01 : f32
      %285 = vector.broadcast %cst_197 : f32 to vector<8x256xf32>
      %286 = arith.mulf %285, %284 : vector<8x256xf32>
      %287 = arith.mulf %274, %286 : vector<8x256xf32>
      %288 = arith.truncf %287 : vector<8x256xf32> to vector<8x256xbf16>
      %c0_198 = arith.constant 0 : index
      %c0_199 = arith.constant 0 : index
      %c0_200 = arith.constant 0 : index
      %289 = vector.load %arg21[%c0_198, %c0_199, %c0_200] : memref<2x256x128xbf16, #tpu.memory_space<vmem>>, vector<1x256x128xbf16>
      %290 = vector.shape_cast %289 : vector<1x256x128xbf16> to vector<256x128xbf16>
      %cst_201 = arith.constant dense<0.000000e+00> : vector<8x128xf32>
      %291 = tpu.matmul %288, %290, %cst_201 {dimension_numbers = #tpu.dot_dimension_numbers<[1], [0], [0], [1], [0, 0, 1, 1], [], []>} : vector<8x256xbf16>, vector<256x128xbf16>, vector<8x128xf32> -> vector<8x128xf32>
      %c0_202 = arith.constant 0 : index
      %c0_203 = arith.constant 0 : index
      %c0_204 = arith.constant 0 : index
      %292 = vector.load %arg22[%c0_202, %c0_203, %c0_204] : memref<2x1x128xf32, #tpu.memory_space<vmem>>, vector<1x1x128xf32>
      %293 = vector.shape_cast %292 : vector<1x1x128xf32> to vector<1x128xf32>
      %294 = vector.broadcast %293 : vector<1x128xf32> to vector<8x128xf32>
      %295 = arith.addf %291, %294 : vector<8x128xf32>
      %296 = arith.addf %240, %295 : vector<8x128xf32>
      %c1_205 = arith.constant 1 : index
      %c0_206 = arith.constant 0 : index
      %c0_207 = arith.constant 0 : index
      %297 = vector.load %arg7[%c1_205, %c0_206, %c0_207] : memref<2x1x128xf32, #tpu.memory_space<vmem>>, vector<1x1x128xf32>
      %298 = vector.shape_cast %297 : vector<1x1x128xf32> to vector<1x128xf32>
      %c1_208 = arith.constant 1 : index
      %c0_209 = arith.constant 0 : index
      %c0_210 = arith.constant 0 : index
      %299 = vector.load %arg8[%c1_208, %c0_209, %c0_210] : memref<2x1x128xf32, #tpu.memory_space<vmem>>, vector<1x1x128xf32>
      %300 = vector.shape_cast %299 : vector<1x1x128xf32> to vector<1x128xf32>
      %cst_211 = arith.constant dense<0.000000e+00> : vector<8xf32>
      %301 = vector.multi_reduction <add>, %296, %cst_211 [1] : vector<8x128xf32> to vector<8xf32>
      %302 = vector.shape_cast %301 : vector<8xf32> to vector<8x1xf32>
      %cst_212 = arith.constant 1.280000e+02 : f32
      %303 = vector.broadcast %cst_212 : f32 to vector<8x1xf32>
      %304 = arith.divf %302, %303 : vector<8x1xf32>
      %305 = vector.broadcast %304 : vector<8x1xf32> to vector<8x128xf32>
      %306 = arith.subf %296, %305 : vector<8x128xf32>
      %307 = arith.mulf %306, %306 : vector<8x128xf32>
      %cst_213 = arith.constant dense<0.000000e+00> : vector<8xf32>
      %308 = vector.multi_reduction <add>, %307, %cst_213 [1] : vector<8x128xf32> to vector<8xf32>
      %309 = vector.shape_cast %308 : vector<8xf32> to vector<8x1xf32>
      %cst_214 = arith.constant 1.280000e+02 : f32
      %310 = vector.broadcast %cst_214 : f32 to vector<8x1xf32>
      %311 = arith.divf %309, %310 : vector<8x1xf32>
      %312 = vector.broadcast %304 : vector<8x1xf32> to vector<8x128xf32>
      %313 = arith.subf %296, %312 : vector<8x128xf32>
      %cst_215 = arith.constant 9.99999974E-6 : f32
      %314 = vector.broadcast %cst_215 : f32 to vector<8x1xf32>
      %315 = arith.addf %311, %314 : vector<8x1xf32>
      %316 = math.rsqrt %315 : vector<8x1xf32>
      %317 = vector.broadcast %316 : vector<8x1xf32> to vector<8x128xf32>
      %318 = arith.mulf %313, %317 : vector<8x128xf32>
      %319 = vector.broadcast %298 : vector<1x128xf32> to vector<8x128xf32>
      %320 = arith.mulf %318, %319 : vector<8x128xf32>
      %321 = vector.broadcast %300 : vector<1x128xf32> to vector<8x128xf32>
      %322 = arith.addf %320, %321 : vector<8x128xf32>
      %323 = arith.truncf %322 : vector<8x128xf32> to vector<8x128xbf16>
      %cst_216 = arith.constant 0.000000e+00 : f32
      %324 = vector.broadcast %cst_216 : f32 to vector<8x128xf32>
      %c1_217 = arith.constant 1 : index
      %c0_218 = arith.constant 0 : index
      %c0_219 = arith.constant 0 : index
      %c0_220 = arith.constant 0 : index
      %325 = vector.load %arg9[%c1_217, %c0_218, %c0_219, %c0_220] : memref<2x4x128x32xbf16, #tpu.memory_space<vmem>>, vector<1x1x128x32xbf16>
      %326 = vector.shape_cast %325 : vector<1x1x128x32xbf16> to vector<128x32xbf16>
      %cst_221 = arith.constant dense<0.000000e+00> : vector<8x32xf32>
      %327 = tpu.matmul %323, %326, %cst_221 {dimension_numbers = #tpu.dot_dimension_numbers<[1], [0], [0], [1], [0, 0, 1, 1], [], []>} : vector<8x128xbf16>, vector<128x32xbf16>, vector<8x32xf32> -> vector<8x32xf32>
      %c1_222 = arith.constant 1 : index
      %c0_223 = arith.constant 0 : index
      %c0_224 = arith.constant 0 : index
      %c0_225 = arith.constant 0 : index
      %328 = vector.load %arg12[%c1_222, %c0_223, %c0_224, %c0_225] : memref<2x4x1x32xf32, #tpu.memory_space<vmem>>, vector<1x1x1x32xf32>
      %329 = vector.shape_cast %328 : vector<1x1x1x32xf32> to vector<1x32xf32>
      %330 = vector.broadcast %329 : vector<1x32xf32> to vector<8x32xf32>
      %331 = arith.addf %327, %330 : vector<8x32xf32>
      %c1_226 = arith.constant 1 : index
      %c0_227 = arith.constant 0 : index
      %c0_228 = arith.constant 0 : index
      %c0_229 = arith.constant 0 : index
      %332 = vector.load %arg10[%c1_226, %c0_227, %c0_228, %c0_229] : memref<2x4x128x32xbf16, #tpu.memory_space<vmem>>, vector<1x1x128x32xbf16>
      %333 = vector.shape_cast %332 : vector<1x1x128x32xbf16> to vector<128x32xbf16>
      %cst_230 = arith.constant dense<0.000000e+00> : vector<8x32xf32>
      %334 = tpu.matmul %323, %333, %cst_230 {dimension_numbers = #tpu.dot_dimension_numbers<[1], [0], [0], [1], [0, 0, 1, 1], [], []>} : vector<8x128xbf16>, vector<128x32xbf16>, vector<8x32xf32> -> vector<8x32xf32>
      %c1_231 = arith.constant 1 : index
      %c0_232 = arith.constant 0 : index
      %c0_233 = arith.constant 0 : index
      %c0_234 = arith.constant 0 : index
      %335 = vector.load %arg13[%c1_231, %c0_232, %c0_233, %c0_234] : memref<2x4x1x32xf32, #tpu.memory_space<vmem>>, vector<1x1x1x32xf32>
      %336 = vector.shape_cast %335 : vector<1x1x1x32xf32> to vector<1x32xf32>
      %337 = vector.broadcast %336 : vector<1x32xf32> to vector<8x32xf32>
      %338 = arith.addf %334, %337 : vector<8x32xf32>
      %c1_235 = arith.constant 1 : index
      %c0_236 = arith.constant 0 : index
      %c0_237 = arith.constant 0 : index
      %c0_238 = arith.constant 0 : index
      %339 = vector.load %arg11[%c1_235, %c0_236, %c0_237, %c0_238] : memref<2x4x128x32xbf16, #tpu.memory_space<vmem>>, vector<1x1x128x32xbf16>
      %340 = vector.shape_cast %339 : vector<1x1x128x32xbf16> to vector<128x32xbf16>
      %cst_239 = arith.constant dense<0.000000e+00> : vector<8x32xf32>
      %341 = tpu.matmul %323, %340, %cst_239 {dimension_numbers = #tpu.dot_dimension_numbers<[1], [0], [0], [1], [0, 0, 1, 1], [], []>} : vector<8x128xbf16>, vector<128x32xbf16>, vector<8x32xf32> -> vector<8x32xf32>
      %c1_240 = arith.constant 1 : index
      %c0_241 = arith.constant 0 : index
      %c0_242 = arith.constant 0 : index
      %c0_243 = arith.constant 0 : index
      %342 = vector.load %arg14[%c1_240, %c0_241, %c0_242, %c0_243] : memref<2x4x1x32xf32, #tpu.memory_space<vmem>>, vector<1x1x1x32xf32>
      %343 = vector.shape_cast %342 : vector<1x1x1x32xf32> to vector<1x32xf32>
      %344 = vector.broadcast %343 : vector<1x32xf32> to vector<8x32xf32>
      %345 = arith.addf %341, %344 : vector<8x32xf32>
      %346 = arith.truncf %331 : vector<8x32xf32> to vector<8x32xbf16>
      %347 = arith.truncf %338 : vector<8x32xf32> to vector<8x32xbf16>
      "tpu.trace_start"() <{level = 10 : i32, message = "qd,kd->qk"}> : () -> ()
      %cst_244 = arith.constant dense<0.000000e+00> : vector<8x8xf32>
      %348 = tpu.matmul %346, %347, %cst_244 {dimension_numbers = #tpu.dot_dimension_numbers<[1], [1], [0], [0], [0, 0, 1, 0], [], []>} : vector<8x32xbf16>, vector<8x32xbf16>, vector<8x8xf32> -> vector<8x8xf32>
      "tpu.trace_stop"() : () -> ()
      %cst_245 = arith.constant 0.176776692 : f32
      %349 = vector.broadcast %cst_245 : f32 to vector<8x8xf32>
      %350 = arith.mulf %348, %349 : vector<8x8xf32>
      %351 = arith.addf %350, %5 : vector<8x8xf32>
      %cst_246 = arith.constant dense<0xFF800000> : vector<8xf32>
      %352 = vector.multi_reduction <maximumf>, %351, %cst_246 [1] : vector<8x8xf32> to vector<8xf32>
      %353 = vector.shape_cast %352 : vector<8xf32> to vector<8x1xf32>
      %354 = vector.broadcast %353 : vector<8x1xf32> to vector<8x8xf32>
      %355 = arith.subf %351, %354 : vector<8x8xf32>
      %356 = math.exp %355 : vector<8x8xf32>
      %cst_247 = arith.constant dense<0.000000e+00> : vector<8xf32>
      %357 = vector.multi_reduction <add>, %356, %cst_247 [1] : vector<8x8xf32> to vector<8xf32>
      %358 = vector.shape_cast %357 : vector<8xf32> to vector<8x1xf32>
      %359 = tpu.reciprocal %358 {approx = true} : vector<8x1xf32> -> vector<8x1xf32>
      %360 = vector.broadcast %359 : vector<8x1xf32> to vector<8x8xf32>
      %361 = arith.mulf %356, %360 : vector<8x8xf32>
      %362 = arith.truncf %361 : vector<8x8xf32> to vector<8x8xbf16>
      %363 = arith.truncf %345 : vector<8x32xf32> to vector<8x32xbf16>
      %cst_248 = arith.constant dense<0.000000e+00> : vector<8x32xf32>
      %364 = tpu.matmul %362, %363, %cst_248 {dimension_numbers = #tpu.dot_dimension_numbers<[1], [0], [0], [1], [0, 0, 1, 1], [], []>} : vector<8x8xbf16>, vector<8x32xbf16>, vector<8x32xf32> -> vector<8x32xf32>
      %365 = arith.truncf %364 : vector<8x32xf32> to vector<8x32xbf16>
      %c1_249 = arith.constant 1 : index
      %c0_250 = arith.constant 0 : index
      %c0_251 = arith.constant 0 : index
      %c0_252 = arith.constant 0 : index
      %366 = vector.load %arg15[%c1_249, %c0_250, %c0_251, %c0_252] : memref<2x4x32x128xbf16, #tpu.memory_space<vmem>>, vector<1x1x32x128xbf16>
      %367 = vector.shape_cast %366 : vector<1x1x32x128xbf16> to vector<32x128xbf16>
      %cst_253 = arith.constant dense<0.000000e+00> : vector<8x128xf32>
      %368 = tpu.matmul %365, %367, %cst_253 {dimension_numbers = #tpu.dot_dimension_numbers<[1], [0], [0], [1], [0, 0, 1, 1], [], []>} : vector<8x32xbf16>, vector<32x128xbf16>, vector<8x128xf32> -> vector<8x128xf32>
      %369 = arith.addf %324, %368 : vector<8x128xf32>
      %c1_254 = arith.constant 1 : index
      %c1_255 = arith.constant 1 : index
      %c0_256 = arith.constant 0 : index
      %c0_257 = arith.constant 0 : index
      %370 = vector.load %arg9[%c1_254, %c1_255, %c0_256, %c0_257] : memref<2x4x128x32xbf16, #tpu.memory_space<vmem>>, vector<1x1x128x32xbf16>
      %371 = vector.shape_cast %370 : vector<1x1x128x32xbf16> to vector<128x32xbf16>
      %cst_258 = arith.constant dense<0.000000e+00> : vector<8x32xf32>
      %372 = tpu.matmul %323, %371, %cst_258 {dimension_numbers = #tpu.dot_dimension_numbers<[1], [0], [0], [1], [0, 0, 1, 1], [], []>} : vector<8x128xbf16>, vector<128x32xbf16>, vector<8x32xf32> -> vector<8x32xf32>
      %c1_259 = arith.constant 1 : index
      %c1_260 = arith.constant 1 : index
      %c0_261 = arith.constant 0 : index
      %c0_262 = arith.constant 0 : index
      %373 = vector.load %arg12[%c1_259, %c1_260, %c0_261, %c0_262] : memref<2x4x1x32xf32, #tpu.memory_space<vmem>>, vector<1x1x1x32xf32>
      %374 = vector.shape_cast %373 : vector<1x1x1x32xf32> to vector<1x32xf32>
      %375 = vector.broadcast %374 : vector<1x32xf32> to vector<8x32xf32>
      %376 = arith.addf %372, %375 : vector<8x32xf32>
      %c1_263 = arith.constant 1 : index
      %c1_264 = arith.constant 1 : index
      %c0_265 = arith.constant 0 : index
      %c0_266 = arith.constant 0 : index
      %377 = vector.load %arg10[%c1_263, %c1_264, %c0_265, %c0_266] : memref<2x4x128x32xbf16, #tpu.memory_space<vmem>>, vector<1x1x128x32xbf16>
      %378 = vector.shape_cast %377 : vector<1x1x128x32xbf16> to vector<128x32xbf16>
      %cst_267 = arith.constant dense<0.000000e+00> : vector<8x32xf32>
      %379 = tpu.matmul %323, %378, %cst_267 {dimension_numbers = #tpu.dot_dimension_numbers<[1], [0], [0], [1], [0, 0, 1, 1], [], []>} : vector<8x128xbf16>, vector<128x32xbf16>, vector<8x32xf32> -> vector<8x32xf32>
      %c1_268 = arith.constant 1 : index
      %c1_269 = arith.constant 1 : index
      %c0_270 = arith.constant 0 : index
      %c0_271 = arith.constant 0 : index
      %380 = vector.load %arg13[%c1_268, %c1_269, %c0_270, %c0_271] : memref<2x4x1x32xf32, #tpu.memory_space<vmem>>, vector<1x1x1x32xf32>
      %381 = vector.shape_cast %380 : vector<1x1x1x32xf32> to vector<1x32xf32>
      %382 = vector.broadcast %381 : vector<1x32xf32> to vector<8x32xf32>
      %383 = arith.addf %379, %382 : vector<8x32xf32>
      %c1_272 = arith.constant 1 : index
      %c1_273 = arith.constant 1 : index
      %c0_274 = arith.constant 0 : index
      %c0_275 = arith.constant 0 : index
      %384 = vector.load %arg11[%c1_272, %c1_273, %c0_274, %c0_275] : memref<2x4x128x32xbf16, #tpu.memory_space<vmem>>, vector<1x1x128x32xbf16>
      %385 = vector.shape_cast %384 : vector<1x1x128x32xbf16> to vector<128x32xbf16>
      %cst_276 = arith.constant dense<0.000000e+00> : vector<8x32xf32>
      %386 = tpu.matmul %323, %385, %cst_276 {dimension_numbers = #tpu.dot_dimension_numbers<[1], [0], [0], [1], [0, 0, 1, 1], [], []>} : vector<8x128xbf16>, vector<128x32xbf16>, vector<8x32xf32> -> vector<8x32xf32>
      %c1_277 = arith.constant 1 : index
      %c1_278 = arith.constant 1 : index
      %c0_279 = arith.constant 0 : index
      %c0_280 = arith.constant 0 : index
      %387 = vector.load %arg14[%c1_277, %c1_278, %c0_279, %c0_280] : memref<2x4x1x32xf32, #tpu.memory_space<vmem>>, vector<1x1x1x32xf32>
      %388 = vector.shape_cast %387 : vector<1x1x1x32xf32> to vector<1x32xf32>
      %389 = vector.broadcast %388 : vector<1x32xf32> to vector<8x32xf32>
      %390 = arith.addf %386, %389 : vector<8x32xf32>
      %391 = arith.truncf %376 : vector<8x32xf32> to vector<8x32xbf16>
      %392 = arith.truncf %383 : vector<8x32xf32> to vector<8x32xbf16>
      "tpu.trace_start"() <{level = 10 : i32, message = "qd,kd->qk"}> : () -> ()
      %cst_281 = arith.constant dense<0.000000e+00> : vector<8x8xf32>
      %393 = tpu.matmul %391, %392, %cst_281 {dimension_numbers = #tpu.dot_dimension_numbers<[1], [1], [0], [0], [0, 0, 1, 0], [], []>} : vector<8x32xbf16>, vector<8x32xbf16>, vector<8x8xf32> -> vector<8x8xf32>
      "tpu.trace_stop"() : () -> ()
      %cst_282 = arith.constant 0.176776692 : f32
      %394 = vector.broadcast %cst_282 : f32 to vector<8x8xf32>
      %395 = arith.mulf %393, %394 : vector<8x8xf32>
      %396 = arith.addf %395, %5 : vector<8x8xf32>
      %cst_283 = arith.constant dense<0xFF800000> : vector<8xf32>
      %397 = vector.multi_reduction <maximumf>, %396, %cst_283 [1] : vector<8x8xf32> to vector<8xf32>
      %398 = vector.shape_cast %397 : vector<8xf32> to vector<8x1xf32>
      %399 = vector.broadcast %398 : vector<8x1xf32> to vector<8x8xf32>
      %400 = arith.subf %396, %399 : vector<8x8xf32>
      %401 = math.exp %400 : vector<8x8xf32>
      %cst_284 = arith.constant dense<0.000000e+00> : vector<8xf32>
      %402 = vector.multi_reduction <add>, %401, %cst_284 [1] : vector<8x8xf32> to vector<8xf32>
      %403 = vector.shape_cast %402 : vector<8xf32> to vector<8x1xf32>
      %404 = tpu.reciprocal %403 {approx = true} : vector<8x1xf32> -> vector<8x1xf32>
      %405 = vector.broadcast %404 : vector<8x1xf32> to vector<8x8xf32>
      %406 = arith.mulf %401, %405 : vector<8x8xf32>
      %407 = arith.truncf %406 : vector<8x8xf32> to vector<8x8xbf16>
      %408 = arith.truncf %390 : vector<8x32xf32> to vector<8x32xbf16>
      %cst_285 = arith.constant dense<0.000000e+00> : vector<8x32xf32>
      %409 = tpu.matmul %407, %408, %cst_285 {dimension_numbers = #tpu.dot_dimension_numbers<[1], [0], [0], [1], [0, 0, 1, 1], [], []>} : vector<8x8xbf16>, vector<8x32xbf16>, vector<8x32xf32> -> vector<8x32xf32>
      %410 = arith.truncf %409 : vector<8x32xf32> to vector<8x32xbf16>
      %c1_286 = arith.constant 1 : index
      %c1_287 = arith.constant 1 : index
      %c0_288 = arith.constant 0 : index
      %c0_289 = arith.constant 0 : index
      %411 = vector.load %arg15[%c1_286, %c1_287, %c0_288, %c0_289] : memref<2x4x32x128xbf16, #tpu.memory_space<vmem>>, vector<1x1x32x128xbf16>
      %412 = vector.shape_cast %411 : vector<1x1x32x128xbf16> to vector<32x128xbf16>
      %cst_290 = arith.constant dense<0.000000e+00> : vector<8x128xf32>
      %413 = tpu.matmul %410, %412, %cst_290 {dimension_numbers = #tpu.dot_dimension_numbers<[1], [0], [0], [1], [0, 0, 1, 1], [], []>} : vector<8x32xbf16>, vector<32x128xbf16>, vector<8x128xf32> -> vector<8x128xf32>
      %414 = arith.addf %369, %413 : vector<8x128xf32>
      %c1_291 = arith.constant 1 : index
      %c2_292 = arith.constant 2 : index
      %c0_293 = arith.constant 0 : index
      %c0_294 = arith.constant 0 : index
      %415 = vector.load %arg9[%c1_291, %c2_292, %c0_293, %c0_294] : memref<2x4x128x32xbf16, #tpu.memory_space<vmem>>, vector<1x1x128x32xbf16>
      %416 = vector.shape_cast %415 : vector<1x1x128x32xbf16> to vector<128x32xbf16>
      %cst_295 = arith.constant dense<0.000000e+00> : vector<8x32xf32>
      %417 = tpu.matmul %323, %416, %cst_295 {dimension_numbers = #tpu.dot_dimension_numbers<[1], [0], [0], [1], [0, 0, 1, 1], [], []>} : vector<8x128xbf16>, vector<128x32xbf16>, vector<8x32xf32> -> vector<8x32xf32>
      %c1_296 = arith.constant 1 : index
      %c2_297 = arith.constant 2 : index
      %c0_298 = arith.constant 0 : index
      %c0_299 = arith.constant 0 : index
      %418 = vector.load %arg12[%c1_296, %c2_297, %c0_298, %c0_299] : memref<2x4x1x32xf32, #tpu.memory_space<vmem>>, vector<1x1x1x32xf32>
      %419 = vector.shape_cast %418 : vector<1x1x1x32xf32> to vector<1x32xf32>
      %420 = vector.broadcast %419 : vector<1x32xf32> to vector<8x32xf32>
      %421 = arith.addf %417, %420 : vector<8x32xf32>
      %c1_300 = arith.constant 1 : index
      %c2_301 = arith.constant 2 : index
      %c0_302 = arith.constant 0 : index
      %c0_303 = arith.constant 0 : index
      %422 = vector.load %arg10[%c1_300, %c2_301, %c0_302, %c0_303] : memref<2x4x128x32xbf16, #tpu.memory_space<vmem>>, vector<1x1x128x32xbf16>
      %423 = vector.shape_cast %422 : vector<1x1x128x32xbf16> to vector<128x32xbf16>
      %cst_304 = arith.constant dense<0.000000e+00> : vector<8x32xf32>
      %424 = tpu.matmul %323, %423, %cst_304 {dimension_numbers = #tpu.dot_dimension_numbers<[1], [0], [0], [1], [0, 0, 1, 1], [], []>} : vector<8x128xbf16>, vector<128x32xbf16>, vector<8x32xf32> -> vector<8x32xf32>
      %c1_305 = arith.constant 1 : index
      %c2_306 = arith.constant 2 : index
      %c0_307 = arith.constant 0 : index
      %c0_308 = arith.constant 0 : index
      %425 = vector.load %arg13[%c1_305, %c2_306, %c0_307, %c0_308] : memref<2x4x1x32xf32, #tpu.memory_space<vmem>>, vector<1x1x1x32xf32>
      %426 = vector.shape_cast %425 : vector<1x1x1x32xf32> to vector<1x32xf32>
      %427 = vector.broadcast %426 : vector<1x32xf32> to vector<8x32xf32>
      %428 = arith.addf %424, %427 : vector<8x32xf32>
      %c1_309 = arith.constant 1 : index
      %c2_310 = arith.constant 2 : index
      %c0_311 = arith.constant 0 : index
      %c0_312 = arith.constant 0 : index
      %429 = vector.load %arg11[%c1_309, %c2_310, %c0_311, %c0_312] : memref<2x4x128x32xbf16, #tpu.memory_space<vmem>>, vector<1x1x128x32xbf16>
      %430 = vector.shape_cast %429 : vector<1x1x128x32xbf16> to vector<128x32xbf16>
      %cst_313 = arith.constant dense<0.000000e+00> : vector<8x32xf32>
      %431 = tpu.matmul %323, %430, %cst_313 {dimension_numbers = #tpu.dot_dimension_numbers<[1], [0], [0], [1], [0, 0, 1, 1], [], []>} : vector<8x128xbf16>, vector<128x32xbf16>, vector<8x32xf32> -> vector<8x32xf32>
      %c1_314 = arith.constant 1 : index
      %c2_315 = arith.constant 2 : index
      %c0_316 = arith.constant 0 : index
      %c0_317 = arith.constant 0 : index
      %432 = vector.load %arg14[%c1_314, %c2_315, %c0_316, %c0_317] : memref<2x4x1x32xf32, #tpu.memory_space<vmem>>, vector<1x1x1x32xf32>
      %433 = vector.shape_cast %432 : vector<1x1x1x32xf32> to vector<1x32xf32>
      %434 = vector.broadcast %433 : vector<1x32xf32> to vector<8x32xf32>
      %435 = arith.addf %431, %434 : vector<8x32xf32>
      %436 = arith.truncf %421 : vector<8x32xf32> to vector<8x32xbf16>
      %437 = arith.truncf %428 : vector<8x32xf32> to vector<8x32xbf16>
      "tpu.trace_start"() <{level = 10 : i32, message = "qd,kd->qk"}> : () -> ()
      %cst_318 = arith.constant dense<0.000000e+00> : vector<8x8xf32>
      %438 = tpu.matmul %436, %437, %cst_318 {dimension_numbers = #tpu.dot_dimension_numbers<[1], [1], [0], [0], [0, 0, 1, 0], [], []>} : vector<8x32xbf16>, vector<8x32xbf16>, vector<8x8xf32> -> vector<8x8xf32>
      "tpu.trace_stop"() : () -> ()
      %cst_319 = arith.constant 0.176776692 : f32
      %439 = vector.broadcast %cst_319 : f32 to vector<8x8xf32>
      %440 = arith.mulf %438, %439 : vector<8x8xf32>
      %441 = arith.addf %440, %5 : vector<8x8xf32>
      %cst_320 = arith.constant dense<0xFF800000> : vector<8xf32>
      %442 = vector.multi_reduction <maximumf>, %441, %cst_320 [1] : vector<8x8xf32> to vector<8xf32>
      %443 = vector.shape_cast %442 : vector<8xf32> to vector<8x1xf32>
      %444 = vector.broadcast %443 : vector<8x1xf32> to vector<8x8xf32>
      %445 = arith.subf %441, %444 : vector<8x8xf32>
      %446 = math.exp %445 : vector<8x8xf32>
      %cst_321 = arith.constant dense<0.000000e+00> : vector<8xf32>
      %447 = vector.multi_reduction <add>, %446, %cst_321 [1] : vector<8x8xf32> to vector<8xf32>
      %448 = vector.shape_cast %447 : vector<8xf32> to vector<8x1xf32>
      %449 = tpu.reciprocal %448 {approx = true} : vector<8x1xf32> -> vector<8x1xf32>
      %450 = vector.broadcast %449 : vector<8x1xf32> to vector<8x8xf32>
      %451 = arith.mulf %446, %450 : vector<8x8xf32>
      %452 = arith.truncf %451 : vector<8x8xf32> to vector<8x8xbf16>
      %453 = arith.truncf %435 : vector<8x32xf32> to vector<8x32xbf16>
      %cst_322 = arith.constant dense<0.000000e+00> : vector<8x32xf32>
      %454 = tpu.matmul %452, %453, %cst_322 {dimension_numbers = #tpu.dot_dimension_numbers<[1], [0], [0], [1], [0, 0, 1, 1], [], []>} : vector<8x8xbf16>, vector<8x32xbf16>, vector<8x32xf32> -> vector<8x32xf32>
      %455 = arith.truncf %454 : vector<8x32xf32> to vector<8x32xbf16>
      %c1_323 = arith.constant 1 : index
      %c2_324 = arith.constant 2 : index
      %c0_325 = arith.constant 0 : index
      %c0_326 = arith.constant 0 : index
      %456 = vector.load %arg15[%c1_323, %c2_324, %c0_325, %c0_326] : memref<2x4x32x128xbf16, #tpu.memory_space<vmem>>, vector<1x1x32x128xbf16>
      %457 = vector.shape_cast %456 : vector<1x1x32x128xbf16> to vector<32x128xbf16>
      %cst_327 = arith.constant dense<0.000000e+00> : vector<8x128xf32>
      %458 = tpu.matmul %455, %457, %cst_327 {dimension_numbers = #tpu.dot_dimension_numbers<[1], [0], [0], [1], [0, 0, 1, 1], [], []>} : vector<8x32xbf16>, vector<32x128xbf16>, vector<8x128xf32> -> vector<8x128xf32>
      %459 = arith.addf %414, %458 : vector<8x128xf32>
      %c1_328 = arith.constant 1 : index
      %c3_329 = arith.constant 3 : index
      %c0_330 = arith.constant 0 : index
      %c0_331 = arith.constant 0 : index
      %460 = vector.load %arg9[%c1_328, %c3_329, %c0_330, %c0_331] : memref<2x4x128x32xbf16, #tpu.memory_space<vmem>>, vector<1x1x128x32xbf16>
      %461 = vector.shape_cast %460 : vector<1x1x128x32xbf16> to vector<128x32xbf16>
      %cst_332 = arith.constant dense<0.000000e+00> : vector<8x32xf32>
      %462 = tpu.matmul %323, %461, %cst_332 {dimension_numbers = #tpu.dot_dimension_numbers<[1], [0], [0], [1], [0, 0, 1, 1], [], []>} : vector<8x128xbf16>, vector<128x32xbf16>, vector<8x32xf32> -> vector<8x32xf32>
      %c1_333 = arith.constant 1 : index
      %c3_334 = arith.constant 3 : index
      %c0_335 = arith.constant 0 : index
      %c0_336 = arith.constant 0 : index
      %463 = vector.load %arg12[%c1_333, %c3_334, %c0_335, %c0_336] : memref<2x4x1x32xf32, #tpu.memory_space<vmem>>, vector<1x1x1x32xf32>
      %464 = vector.shape_cast %463 : vector<1x1x1x32xf32> to vector<1x32xf32>
      %465 = vector.broadcast %464 : vector<1x32xf32> to vector<8x32xf32>
      %466 = arith.addf %462, %465 : vector<8x32xf32>
      %c1_337 = arith.constant 1 : index
      %c3_338 = arith.constant 3 : index
      %c0_339 = arith.constant 0 : index
      %c0_340 = arith.constant 0 : index
      %467 = vector.load %arg10[%c1_337, %c3_338, %c0_339, %c0_340] : memref<2x4x128x32xbf16, #tpu.memory_space<vmem>>, vector<1x1x128x32xbf16>
      %468 = vector.shape_cast %467 : vector<1x1x128x32xbf16> to vector<128x32xbf16>
      %cst_341 = arith.constant dense<0.000000e+00> : vector<8x32xf32>
      %469 = tpu.matmul %323, %468, %cst_341 {dimension_numbers = #tpu.dot_dimension_numbers<[1], [0], [0], [1], [0, 0, 1, 1], [], []>} : vector<8x128xbf16>, vector<128x32xbf16>, vector<8x32xf32> -> vector<8x32xf32>
      %c1_342 = arith.constant 1 : index
      %c3_343 = arith.constant 3 : index
      %c0_344 = arith.constant 0 : index
      %c0_345 = arith.constant 0 : index
      %470 = vector.load %arg13[%c1_342, %c3_343, %c0_344, %c0_345] : memref<2x4x1x32xf32, #tpu.memory_space<vmem>>, vector<1x1x1x32xf32>
      %471 = vector.shape_cast %470 : vector<1x1x1x32xf32> to vector<1x32xf32>
      %472 = vector.broadcast %471 : vector<1x32xf32> to vector<8x32xf32>
      %473 = arith.addf %469, %472 : vector<8x32xf32>
      %c1_346 = arith.constant 1 : index
      %c3_347 = arith.constant 3 : index
      %c0_348 = arith.constant 0 : index
      %c0_349 = arith.constant 0 : index
      %474 = vector.load %arg11[%c1_346, %c3_347, %c0_348, %c0_349] : memref<2x4x128x32xbf16, #tpu.memory_space<vmem>>, vector<1x1x128x32xbf16>
      %475 = vector.shape_cast %474 : vector<1x1x128x32xbf16> to vector<128x32xbf16>
      %cst_350 = arith.constant dense<0.000000e+00> : vector<8x32xf32>
      %476 = tpu.matmul %323, %475, %cst_350 {dimension_numbers = #tpu.dot_dimension_numbers<[1], [0], [0], [1], [0, 0, 1, 1], [], []>} : vector<8x128xbf16>, vector<128x32xbf16>, vector<8x32xf32> -> vector<8x32xf32>
      %c1_351 = arith.constant 1 : index
      %c3_352 = arith.constant 3 : index
      %c0_353 = arith.constant 0 : index
      %c0_354 = arith.constant 0 : index
      %477 = vector.load %arg14[%c1_351, %c3_352, %c0_353, %c0_354] : memref<2x4x1x32xf32, #tpu.memory_space<vmem>>, vector<1x1x1x32xf32>
      %478 = vector.shape_cast %477 : vector<1x1x1x32xf32> to vector<1x32xf32>
      %479 = vector.broadcast %478 : vector<1x32xf32> to vector<8x32xf32>
      %480 = arith.addf %476, %479 : vector<8x32xf32>
      %481 = arith.truncf %466 : vector<8x32xf32> to vector<8x32xbf16>
      %482 = arith.truncf %473 : vector<8x32xf32> to vector<8x32xbf16>
      "tpu.trace_start"() <{level = 10 : i32, message = "qd,kd->qk"}> : () -> ()
      %cst_355 = arith.constant dense<0.000000e+00> : vector<8x8xf32>
      %483 = tpu.matmul %481, %482, %cst_355 {dimension_numbers = #tpu.dot_dimension_numbers<[1], [1], [0], [0], [0, 0, 1, 0], [], []>} : vector<8x32xbf16>, vector<8x32xbf16>, vector<8x8xf32> -> vector<8x8xf32>
      "tpu.trace_stop"() : () -> ()
      %cst_356 = arith.constant 0.176776692 : f32
      %484 = vector.broadcast %cst_356 : f32 to vector<8x8xf32>
      %485 = arith.mulf %483, %484 : vector<8x8xf32>
      %486 = arith.addf %485, %5 : vector<8x8xf32>
      %cst_357 = arith.constant dense<0xFF800000> : vector<8xf32>
      %487 = vector.multi_reduction <maximumf>, %486, %cst_357 [1] : vector<8x8xf32> to vector<8xf32>
      %488 = vector.shape_cast %487 : vector<8xf32> to vector<8x1xf32>
      %489 = vector.broadcast %488 : vector<8x1xf32> to vector<8x8xf32>
      %490 = arith.subf %486, %489 : vector<8x8xf32>
      %491 = math.exp %490 : vector<8x8xf32>
      %cst_358 = arith.constant dense<0.000000e+00> : vector<8xf32>
      %492 = vector.multi_reduction <add>, %491, %cst_358 [1] : vector<8x8xf32> to vector<8xf32>
      %493 = vector.shape_cast %492 : vector<8xf32> to vector<8x1xf32>
      %494 = tpu.reciprocal %493 {approx = true} : vector<8x1xf32> -> vector<8x1xf32>
      %495 = vector.broadcast %494 : vector<8x1xf32> to vector<8x8xf32>
      %496 = arith.mulf %491, %495 : vector<8x8xf32>
      %497 = arith.truncf %496 : vector<8x8xf32> to vector<8x8xbf16>
      %498 = arith.truncf %480 : vector<8x32xf32> to vector<8x32xbf16>
      %cst_359 = arith.constant dense<0.000000e+00> : vector<8x32xf32>
      %499 = tpu.matmul %497, %498, %cst_359 {dimension_numbers = #tpu.dot_dimension_numbers<[1], [0], [0], [1], [0, 0, 1, 1], [], []>} : vector<8x8xbf16>, vector<8x32xbf16>, vector<8x32xf32> -> vector<8x32xf32>
      %500 = arith.truncf %499 : vector<8x32xf32> to vector<8x32xbf16>
      %c1_360 = arith.constant 1 : index
      %c3_361 = arith.constant 3 : index
      %c0_362 = arith.constant 0 : index
      %c0_363 = arith.constant 0 : index
      %501 = vector.load %arg15[%c1_360, %c3_361, %c0_362, %c0_363] : memref<2x4x32x128xbf16, #tpu.memory_space<vmem>>, vector<1x1x32x128xbf16>
      %502 = vector.shape_cast %501 : vector<1x1x32x128xbf16> to vector<32x128xbf16>
      %cst_364 = arith.constant dense<0.000000e+00> : vector<8x128xf32>
      %503 = tpu.matmul %500, %502, %cst_364 {dimension_numbers = #tpu.dot_dimension_numbers<[1], [0], [0], [1], [0, 0, 1, 1], [], []>} : vector<8x32xbf16>, vector<32x128xbf16>, vector<8x128xf32> -> vector<8x128xf32>
      %504 = arith.addf %459, %503 : vector<8x128xf32>
      %505 = arith.addf %296, %504 : vector<8x128xf32>
      %c1_365 = arith.constant 1 : index
      %c0_366 = arith.constant 0 : index
      %c0_367 = arith.constant 0 : index
      %506 = vector.load %arg16[%c1_365, %c0_366, %c0_367] : memref<2x1x128xf32, #tpu.memory_space<vmem>>, vector<1x1x128xf32>
      %507 = vector.shape_cast %506 : vector<1x1x128xf32> to vector<1x128xf32>
      %508 = vector.broadcast %507 : vector<1x128xf32> to vector<8x128xf32>
      %509 = arith.addf %505, %508 : vector<8x128xf32>
      %c1_368 = arith.constant 1 : index
      %c0_369 = arith.constant 0 : index
      %c0_370 = arith.constant 0 : index
      %510 = vector.load %arg17[%c1_368, %c0_369, %c0_370] : memref<2x1x128xf32, #tpu.memory_space<vmem>>, vector<1x1x128xf32>
      %511 = vector.shape_cast %510 : vector<1x1x128xf32> to vector<1x128xf32>
      %c1_371 = arith.constant 1 : index
      %c0_372 = arith.constant 0 : index
      %c0_373 = arith.constant 0 : index
      %512 = vector.load %arg18[%c1_371, %c0_372, %c0_373] : memref<2x1x128xf32, #tpu.memory_space<vmem>>, vector<1x1x128xf32>
      %513 = vector.shape_cast %512 : vector<1x1x128xf32> to vector<1x128xf32>
      %cst_374 = arith.constant dense<0.000000e+00> : vector<8xf32>
      %514 = vector.multi_reduction <add>, %509, %cst_374 [1] : vector<8x128xf32> to vector<8xf32>
      %515 = vector.shape_cast %514 : vector<8xf32> to vector<8x1xf32>
      %cst_375 = arith.constant 1.280000e+02 : f32
      %516 = vector.broadcast %cst_375 : f32 to vector<8x1xf32>
      %517 = arith.divf %515, %516 : vector<8x1xf32>
      %518 = vector.broadcast %517 : vector<8x1xf32> to vector<8x128xf32>
      %519 = arith.subf %509, %518 : vector<8x128xf32>
      %520 = arith.mulf %519, %519 : vector<8x128xf32>
      %cst_376 = arith.constant dense<0.000000e+00> : vector<8xf32>
      %521 = vector.multi_reduction <add>, %520, %cst_376 [1] : vector<8x128xf32> to vector<8xf32>
      %522 = vector.shape_cast %521 : vector<8xf32> to vector<8x1xf32>
      %cst_377 = arith.constant 1.280000e+02 : f32
      %523 = vector.broadcast %cst_377 : f32 to vector<8x1xf32>
      %524 = arith.divf %522, %523 : vector<8x1xf32>
      %525 = vector.broadcast %517 : vector<8x1xf32> to vector<8x128xf32>
      %526 = arith.subf %509, %525 : vector<8x128xf32>
      %cst_378 = arith.constant 9.99999974E-6 : f32
      %527 = vector.broadcast %cst_378 : f32 to vector<8x1xf32>
      %528 = arith.addf %524, %527 : vector<8x1xf32>
      %529 = math.rsqrt %528 : vector<8x1xf32>
      %530 = vector.broadcast %529 : vector<8x1xf32> to vector<8x128xf32>
      %531 = arith.mulf %526, %530 : vector<8x128xf32>
      %532 = vector.broadcast %511 : vector<1x128xf32> to vector<8x128xf32>
      %533 = arith.mulf %531, %532 : vector<8x128xf32>
      %534 = vector.broadcast %513 : vector<1x128xf32> to vector<8x128xf32>
      %535 = arith.addf %533, %534 : vector<8x128xf32>
      %536 = arith.truncf %535 : vector<8x128xf32> to vector<8x128xbf16>
      %c1_379 = arith.constant 1 : index
      %c0_380 = arith.constant 0 : index
      %c0_381 = arith.constant 0 : index
      %537 = vector.load %arg19[%c1_379, %c0_380, %c0_381] : memref<2x128x256xbf16, #tpu.memory_space<vmem>>, vector<1x128x256xbf16>
      %538 = vector.shape_cast %537 : vector<1x128x256xbf16> to vector<128x256xbf16>
      %cst_382 = arith.constant dense<0.000000e+00> : vector<8x256xf32>
      %539 = tpu.matmul %536, %538, %cst_382 {dimension_numbers = #tpu.dot_dimension_numbers<[1], [0], [0], [1], [0, 0, 1, 1], [], []>} : vector<8x128xbf16>, vector<128x256xbf16>, vector<8x256xf32> -> vector<8x256xf32>
      %c1_383 = arith.constant 1 : index
      %c0_384 = arith.constant 0 : index
      %c0_385 = arith.constant 0 : index
      %540 = vector.load %arg20[%c1_383, %c0_384, %c0_385] : memref<2x1x256xf32, #tpu.memory_space<vmem>>, vector<1x1x256xf32>
      %541 = vector.shape_cast %540 : vector<1x1x256xf32> to vector<1x256xf32>
      %542 = vector.broadcast %541 : vector<1x256xf32> to vector<8x256xf32>
      %543 = arith.addf %539, %542 : vector<8x256xf32>
      %544 = arith.mulf %543, %543 : vector<8x256xf32>
      %545 = arith.mulf %543, %544 : vector<8x256xf32>
      %cst_386 = arith.constant 4.471500e-02 : f32
      %546 = vector.broadcast %cst_386 : f32 to vector<8x256xf32>
      %547 = arith.mulf %546, %545 : vector<8x256xf32>
      %548 = arith.addf %543, %547 : vector<8x256xf32>
      %cst_387 = arith.constant 0.797884583 : f32
      %549 = vector.broadcast %cst_387 : f32 to vector<8x256xf32>
      %550 = arith.mulf %549, %548 : vector<8x256xf32>
      %551 = math.tanh %550 : vector<8x256xf32>
      %cst_388 = arith.constant 1.000000e+00 : f32
      %552 = vector.broadcast %cst_388 : f32 to vector<8x256xf32>
      %553 = arith.addf %552, %551 : vector<8x256xf32>
      %cst_389 = arith.constant 5.000000e-01 : f32
      %554 = vector.broadcast %cst_389 : f32 to vector<8x256xf32>
      %555 = arith.mulf %554, %553 : vector<8x256xf32>
      %556 = arith.mulf %543, %555 : vector<8x256xf32>
      %557 = arith.truncf %556 : vector<8x256xf32> to vector<8x256xbf16>
      %c1_390 = arith.constant 1 : index
      %c0_391 = arith.constant 0 : index
      %c0_392 = arith.constant 0 : index
      %558 = vector.load %arg21[%c1_390, %c0_391, %c0_392] : memref<2x256x128xbf16, #tpu.memory_space<vmem>>, vector<1x256x128xbf16>
      %559 = vector.shape_cast %558 : vector<1x256x128xbf16> to vector<256x128xbf16>
      %cst_393 = arith.constant dense<0.000000e+00> : vector<8x128xf32>
      %560 = tpu.matmul %557, %559, %cst_393 {dimension_numbers = #tpu.dot_dimension_numbers<[1], [0], [0], [1], [0, 0, 1, 1], [], []>} : vector<8x256xbf16>, vector<256x128xbf16>, vector<8x128xf32> -> vector<8x128xf32>
      %c1_394 = arith.constant 1 : index
      %c0_395 = arith.constant 0 : index
      %c0_396 = arith.constant 0 : index
      %561 = vector.load %arg22[%c1_394, %c0_395, %c0_396] : memref<2x1x128xf32, #tpu.memory_space<vmem>>, vector<1x1x128xf32>
      %562 = vector.shape_cast %561 : vector<1x1x128xf32> to vector<1x128xf32>
      %563 = vector.broadcast %562 : vector<1x128xf32> to vector<8x128xf32>
      %564 = arith.addf %560, %563 : vector<8x128xf32>
      %565 = arith.addf %509, %564 : vector<8x128xf32>
      %c1_i32_397 = arith.constant 1 : i32
      %566 = arith.subi %arg24, %c1_i32_397 : i32
      %567 = vector.broadcast %566 : i32 to vector<8x128xi32>
      %568 = arith.cmpi eq, %7, %567 : vector<8x128xi32>
      %cst_398 = arith.constant 0.000000e+00 : f32
      %569 = vector.broadcast %cst_398 : f32 to vector<8x128xf32>
      %570 = arith.select %568, %565, %569 : vector<8x128xi1>, vector<8x128xf32>
      %cst_399 = arith.constant dense<0.000000e+00> : vector<128xf32>
      %571 = vector.multi_reduction <add>, %570, %cst_399 [0] : vector<8x128xf32> to vector<128xf32>
      %572 = vector.shape_cast %571 : vector<128xf32> to vector<1x128xf32>
      %cst_400 = arith.constant dense<0.000000e+00> : vector<1xf32>
      %573 = vector.multi_reduction <add>, %572, %cst_400 [1] : vector<1x128xf32> to vector<1xf32>
      %574 = vector.shape_cast %573 : vector<1xf32> to vector<1x1xf32>
      %cst_401 = arith.constant 1.280000e+02 : f32
      %575 = vector.broadcast %cst_401 : f32 to vector<1x1xf32>
      %576 = arith.divf %574, %575 : vector<1x1xf32>
      %577 = vector.broadcast %576 : vector<1x1xf32> to vector<1x128xf32>
      %578 = arith.subf %572, %577 : vector<1x128xf32>
      %579 = arith.mulf %578, %578 : vector<1x128xf32>
      %cst_402 = arith.constant dense<0.000000e+00> : vector<1xf32>
      %580 = vector.multi_reduction <add>, %579, %cst_402 [1] : vector<1x128xf32> to vector<1xf32>
      %581 = vector.shape_cast %580 : vector<1xf32> to vector<1x1xf32>
      %cst_403 = arith.constant 1.280000e+02 : f32
      %582 = vector.broadcast %cst_403 : f32 to vector<1x1xf32>
      %583 = arith.divf %581, %582 : vector<1x1xf32>
      %584 = vector.broadcast %576 : vector<1x1xf32> to vector<1x128xf32>
      %585 = arith.subf %572, %584 : vector<1x128xf32>
      %cst_404 = arith.constant 9.99999974E-6 : f32
      %586 = vector.broadcast %cst_404 : f32 to vector<1x1xf32>
      %587 = arith.addf %583, %586 : vector<1x1xf32>
      %588 = math.rsqrt %587 : vector<1x1xf32>
      %589 = vector.broadcast %588 : vector<1x1xf32> to vector<1x128xf32>
      %590 = arith.mulf %585, %589 : vector<1x128xf32>
      %591 = arith.mulf %590, %13 : vector<1x128xf32>
      %592 = arith.addf %591, %14 : vector<1x128xf32>
      %593 = arith.truncf %592 : vector<1x128xf32> to vector<1x128xbf16>
      %cst_405 = arith.constant dense<0.000000e+00> : vector<1x128xf32>
      %594 = tpu.matmul %593, %11, %cst_405 {dimension_numbers = #tpu.dot_dimension_numbers<[1], [0], [0], [1], [0, 0, 1, 1], [], []>} : vector<1x128xbf16>, vector<128x128xbf16>, vector<1x128xf32> -> vector<1x128xf32>
      %cst_406 = arith.constant dense<0xFF800000> : vector<1xf32>
      %595 = vector.multi_reduction <maximumf>, %594, %cst_406 [1] : vector<1x128xf32> to vector<1xf32>
      %596 = vector.shape_cast %595 : vector<1xf32> to vector<1x1xf32>
      %597 = vector.broadcast %596 : vector<1x1xf32> to vector<1x128xf32>
      %598 = arith.cmpf oeq, %594, %597 : vector<1x128xf32>
      %c128_i32 = arith.constant 128 : i32
      %599 = vector.broadcast %c128_i32 : i32 to vector<1x128xi32>
      %600 = arith.select %598, %8, %599 : vector<1x128xi1>, vector<1x128xi32>
      %cst_407 = arith.constant dense<2147483647> : vector<1xi32>
      %601 = vector.multi_reduction <minsi>, %600, %cst_407 [1] : vector<1x128xi32> to vector<1xi32>
      %602 = vector.shape_cast %601 : vector<1xi32> to vector<1x1xi32>
      %603 = vector.broadcast %arg24 : i32 to vector<8x1xi32>
      %604 = arith.cmpi eq, %9, %603 : vector<8x1xi32>
      %605 = vector.shape_cast %602 : vector<1x1xi32> to vector<1x1xi32>
      %606 = vector.broadcast %605 : vector<1x1xi32> to vector<8x1xi32>
      %607 = arith.select %604, %606, %arg25 : vector<8x1xi1>, vector<8x1xi32>
      scf.yield %607 : vector<8x1xi32>
    }
    %c0_13 = arith.constant 0 : index
    %c0_14 = arith.constant 0 : index
    %20 = vector.load %arg23[%c0_13, %c0_14] : memref<8x1xi32, #tpu.memory_space<vmem>>, vector<8x1xi32>
    tpu.vector_store %arg23[%c0_13, %c0_14], %19 {strides = array<i32>} : memref<8x1xi32, #tpu.memory_space<vmem>>, vector<8x1xi32>,
    return
  }
}

</mosaic_0001>

<llo_original>
// kernel: generate.1
$region0: #{generate.1}
  #allocation0 [shape = 'u32[]', space=smem, size = 0x4, offset = 0x4, fixed_abs, tag = 'smem constant byte address 0x4 - core index']
  #allocation1 [shape = 'u32[144,128]{1,0:T(1,128)}', space=vmem, size = 0x12000, scoped, tag = 'internal scratch']
  #allocation2 [shape = 's32[1]{0:T(128)S(6)}', space=smem, size = 0x200, scoped, tag = 'scoped memory for generate.1']
  %s0 = inlined_call_operand.vmem [shape: s32[8,1], index: 0, kind: input, shape index: {}, may-alias: {0,23}]
  %s1 = inlined_call_operand.<no memory space> [shape: s32[1], index: 1, kind: input, shape index: {}]
  %s2 = inlined_call_operand.vmem [shape: bf16[128,128], index: 2, kind: input, shape index: {}]
  %s3 = inlined_call_operand.vmem [shape: bf16[128,128], index: 3, kind: input, shape index: {}]
  %s4 = inlined_call_operand.vmem [shape: f32[8,128], index: 4, kind: input, shape index: {}]
  %s5 = inlined_call_operand.vmem [shape: f32[1,128], index: 5, kind: input, shape index: {}]
  %s6 = inlined_call_operand.vmem [shape: f32[1,128], index: 6, kind: input, shape index: {}]
  %s7 = inlined_call_operand.vmem [shape: f32[2,1,128], index: 7, kind: input, shape index: {}]
  %s8 = inlined_call_operand.vmem [shape: f32[2,1,128], index: 8, kind: input, shape index: {}]
  %s9 = inlined_call_operand.vmem [shape: bf16[2,4,128,32], index: 9, kind: input, shape index: {}]
  %s10 = inlined_call_operand.vmem [shape: bf16[2,4,128,32], index: 10, kind: input, shape index: {}]
  %s11 = inlined_call_operand.vmem [shape: bf16[2,4,128,32], index: 11, kind: input, shape index: {}]
  %s12 = inlined_call_operand.vmem [shape: f32[2,4,1,32], index: 12, kind: input, shape index: {}]
  %s13 = inlined_call_operand.vmem [shape: f32[2,4,1,32], index: 13, kind: input, shape index: {}]
  %s14 = inlined_call_operand.vmem [shape: f32[2,4,1,32], index: 14, kind: input, shape index: {}]
  %s15 = inlined_call_operand.vmem [shape: bf16[2,4,32,128], index: 15, kind: input, shape index: {}]
  %s16 = inlined_call_operand.vmem [shape: f32[2,1,128], index: 16, kind: input, shape index: {}]
  %s17 = inlined_call_operand.vmem [shape: f32[2,1,128], index: 17, kind: input, shape index: {}]
  %s18 = inlined_call_operand.vmem [shape: f32[2,1,128], index: 18, kind: input, shape index: {}]
  %s19 = inlined_call_operand.vmem [shape: bf16[2,128,256], index: 19, kind: input, shape index: {}]
  %s20 = inlined_call_operand.vmem [shape: f32[2,1,256], index: 20, kind: input, shape index: {}]
  %s21 = inlined_call_operand.vmem [shape: bf16[2,256,128], index: 21, kind: input, shape index: {}]
  %s22 = inlined_call_operand.vmem [shape: f32[2,1,128], index: 22, kind: input, shape index: {}]
  %s23 = inlined_call_operand.vmem [shape: s32[8,1], index: 23, kind: output, shape index: {}, may-alias: {0,23}]
  %s24 = sld [smem:[#allocation0]]
  $region109: #{generate.1} parent=0
    _
  %s26 = ssub.s32 1, %s24
  %s27 = scalar_select 0, %s26, %s24
  %28 = sst [smem:[#allocation2]] %s1
  // Predicated region
  $region2: #{generate.1} parent=0 // pred_check
    _
  $region3: #{generate.1} parent=0 // pred_check_branch
    %30 = sbr.rel (0) target = $region5
  $region4: #{generate.1} parent=0 // pred_region
    _
  $region5: #{generate.1} parent=0 // pred_fallthru
    _
  // Predicated region
  $region6: #{generate.1} parent=0 // pred_check
    _
  $region7: #{generate.1} parent=0 // pred_check_branch
    %32 = sbr.rel (0) target = $region9
  $region8: #{generate.1} parent=0 // pred_region
    _
  $region9: #{generate.1} parent=0 // pred_fallthru
    _
  // Predicated region
  $region10: #{generate.1} parent=0 // pred_check
    _
  $region11: #{generate.1} parent=0 // pred_check_branch
    %34 = sbr.rel (0) target = $region13
  $region12: #{generate.1} parent=0 // pred_region
    _
  $region13: #{generate.1} parent=0 // pred_fallthru
    _
  // Predicated region
  $region14: #{generate.1} parent=0 // pred_check
    _
  $region15: #{generate.1} parent=0 // pred_check_branch
    %36 = sbr.rel (0) target = $region17
  $region16: #{generate.1} parent=0 // pred_region
    _
  $region17: #{generate.1} parent=0 // pred_fallthru
    _
  // Predicated region
  $region18: #{generate.1} parent=0 // pred_check
    _
  $region19: #{generate.1} parent=0 // pred_check_branch
    %38 = sbr.rel (0) target = $region21
  $region20: #{generate.1} parent=0 // pred_region
    _
  $region21: #{generate.1} parent=0 // pred_fallthru
    _
  // Predicated region
  $region22: #{generate.1} parent=0 // pred_check
    _
  $region23: #{generate.1} parent=0 // pred_check_branch
    %40 = sbr.rel (0) target = $region25
  $region24: #{generate.1} parent=0 // pred_region
    _
  $region25: #{generate.1} parent=0 // pred_fallthru
    _
  // Predicated region
  $region26: #{generate.1} parent=0 // pred_check
    _
  $region27: #{generate.1} parent=0 // pred_check_branch
    %42 = sbr.rel (0) target = $region29
  $region28: #{generate.1} parent=0 // pred_region
    _
  $region29: #{generate.1} parent=0 // pred_fallthru
    _
  // Predicated region
  $region30: #{generate.1} parent=0 // pred_check
    _
  $region31: #{generate.1} parent=0 // pred_check_branch
    %44 = sbr.rel (0) target = $region33
  $region32: #{generate.1} parent=0 // pred_region
    _
  $region33: #{generate.1} parent=0 // pred_fallthru
    _
  // Predicated region
  $region34: #{generate.1} parent=0 // pred_check
    _
  $region35: #{generate.1} parent=0 // pred_check_branch
    %46 = sbr.rel (0) target = $region37
  $region36: #{generate.1} parent=0 // pred_region
    _
  $region37: #{generate.1} parent=0 // pred_fallthru
    _
  // Predicated region
  $region38: #{generate.1} parent=0 // pred_check
    _
  $region39: #{generate.1} parent=0 // pred_check_branch
    %48 = sbr.rel (0) target = $region41
  $region40: #{generate.1} parent=0 // pred_region
    _
  $region41: #{generate.1} parent=0 // pred_fallthru
    _
  // Predicated region
  $region42: #{generate.1} parent=0 // pred_check
    _
  $region43: #{generate.1} parent=0 // pred_check_branch
    %50 = sbr.rel (0) target = $region45
  $region44: #{generate.1} parent=0 // pred_region
    _
  $region45: #{generate.1} parent=0 // pred_fallthru
    _
  // Predicated region
  $region46: #{generate.1} parent=0 // pred_check
    _
  $region47: #{generate.1} parent=0 // pred_check_branch
    %52 = sbr.rel (0) target = $region49
  $region48: #{generate.1} parent=0 // pred_region
    _
  $region49: #{generate.1} parent=0 // pred_fallthru
    _
  // Predicated region
  $region50: #{generate.1} parent=0 // pred_check
    _
  $region51: #{generate.1} parent=0 // pred_check_branch
    %54 = sbr.rel (0) target = $region53
  $region52: #{generate.1} parent=0 // pred_region
    _
  $region53: #{generate.1} parent=0 // pred_fallthru
    _
  // Predicated region
  $region54: #{generate.1} parent=0 // pred_check
    _
  $region55: #{generate.1} parent=0 // pred_check_branch
    %56 = sbr.rel (0) target = $region57
  $region56: #{generate.1} parent=0 // pred_region
    _
  $region57: #{generate.1} parent=0 // pred_fallthru
    _
  // Predicated region
  $region58: #{generate.1} parent=0 // pred_check
    _
  $region59: #{generate.1} parent=0 // pred_check_branch
    %58 = sbr.rel (0) target = $region61
  $region60: #{generate.1} parent=0 // pred_region
    _
  $region61: #{generate.1} parent=0 // pred_fallthru
    _
  // Predicated region
  $region62: #{generate.1} parent=0 // pred_check
    _
  $region63: #{generate.1} parent=0 // pred_check_branch
    %60 = sbr.rel (0) target = $region65
  $region64: #{generate.1} parent=0 // pred_region
    _
  $region65: #{generate.1} parent=0 // pred_fallthru
    _
  // Predicated region
  $region66: #{generate.1} parent=0 // pred_check
    _
  $region67: #{generate.1} parent=0 // pred_check_branch
    %62 = sbr.rel (0) target = $region69
  $region68: #{generate.1} parent=0 // pred_region
    _
  $region69: #{generate.1} parent=0 // pred_fallthru
    _
  // Predicated region
  $region70: #{generate.1} parent=0 // pred_check
    _
  $region71: #{generate.1} parent=0 // pred_check_branch
    %64 = sbr.rel (0) target = $region73
  $region72: #{generate.1} parent=0 // pred_region
    _
  $region73: #{generate.1} parent=0 // pred_fallthru
    _
  // Predicated region
  $region74: #{generate.1} parent=0 // pred_check
    _
  $region75: #{generate.1} parent=0 // pred_check_branch
    %66 = sbr.rel (0) target = $region77
  $region76: #{generate.1} parent=0 // pred_region
    _
  $region77: #{generate.1} parent=0 // pred_fallthru
    _
  // Predicated region
  $region78: #{generate.1} parent=0 // pred_check
    _
  $region79: #{generate.1} parent=0 // pred_check_branch
    %68 = sbr.rel (0) target = $region81
  $region80: #{generate.1} parent=0 // pred_region
    _
  $region81: #{generate.1} parent=0 // pred_fallthru
    _
  // Predicated region
  $region82: #{generate.1} parent=0 // pred_check
    _
  $region83: #{generate.1} parent=0 // pred_check_branch
    %70 = sbr.rel (0) target = $region85
  $region84: #{generate.1} parent=0 // pred_region
    _
  $region85: #{generate.1} parent=0 // pred_fallthru
    _
  // Predicated region
  $region86: #{generate.1} parent=0 // pred_check
    _
  $region87: #{generate.1} parent=0 // pred_check_branch
    %72 = sbr.rel (0) target = $region89
  $region88: #{generate.1} parent=0 // pred_region
    _
  $region89: #{generate.1} parent=0 // pred_fallthru
    _
  // Predicated region
  $region90: #{generate.1} parent=0 // pred_check
    _
  $region91: #{generate.1} parent=0 // pred_check_branch
    %74 = sbr.rel (0) target = $region93
  $region92: #{generate.1} parent=0 // pred_region
    _
  $region93: #{generate.1} parent=0 // pred_fallthru
    _
  %v76 = vlaneseq
  %v77 = vshrl.u32 %v76, 7
  %v78 = vlaneseq
  %v79 = vand.u32 %v78, 127
  %vm80 = vcmp.le.s32.totalorder %v79, %v77
  %v81 = vsel %vm80, 0.0, -1e+09
  %v82 = vld [vmem:[%s2] sm:$0xf]
  %v83 = vld [vmem:[%s2 + $0x4] sm:$0xf]
  %v84 = vld [vmem:[%s2 + $0x8] sm:$0xf]
  %v85 = vld [vmem:[%s2 + $0xc] sm:$0xf]
  %v86 = vld [vmem:[%s2 + $0x10] sm:$0xf]
  %v87 = vld [vmem:[%s2 + $0x14] sm:$0xf]
  %v88 = vld [vmem:[%s2 + $0x18] sm:$0xf]
  %v89 = vld [vmem:[%s2 + $0x1c] sm:$0xf]
  %v90 = vld [vmem:[%s2 + $0x20] sm:$0xf]
  %v91 = vld [vmem:[%s2 + $0x24] sm:$0xf]
  %v92 = vld [vmem:[%s2 + $0x28] sm:$0xf]
  %v93 = vld [vmem:[%s2 + $0x2c] sm:$0xf]
  %v94 = vld [vmem:[%s2 + $0x30] sm:$0xf]
  %v95 = vld [vmem:[%s2 + $0x34] sm:$0xf]
  %v96 = vld [vmem:[%s2 + $0x38] sm:$0xf]
  %v97 = vld [vmem:[%s2 + $0x3c] sm:$0xf]
  %v98 = vld [vmem:[%s3] sm:$0xf]
  %v99 = vld [vmem:[%s3 + $0x4] sm:$0xf]
  %v100 = vld [vmem:[%s3 + $0x8] sm:$0xf]
  %v101 = vld [vmem:[%s3 + $0xc] sm:$0xf]
  %v102 = vld [vmem:[%s3 + $0x10] sm:$0xf]
  %v103 = vld [vmem:[%s3 + $0x14] sm:$0xf]
  %v104 = vld [vmem:[%s3 + $0x18] sm:$0xf]
  %v105 = vld [vmem:[%s3 + $0x1c] sm:$0xf]
  %v106 = vld [vmem:[%s3 + $0x20] sm:$0xf]
  %v107 = vld [vmem:[%s3 + $0x24] sm:$0xf]
  %v108 = vld [vmem:[%s3 + $0x28] sm:$0xf]
  %v109 = vld [vmem:[%s3 + $0x2c] sm:$0xf]
  %v110 = vld [vmem:[%s3 + $0x30] sm:$0xf]
  %v111 = vld [vmem:[%s3 + $0x34] sm:$0xf]
  %v112 = vld [vmem:[%s3 + $0x38] sm:$0xf]
  %v113 = vld [vmem:[%s3 + $0x3c] sm:$0xf]
  %v114 = vld [vmem:[%s4] sm:$0xff]
  %v115 = vld [vmem:[%s5] sm:$0x1]
  %v116 = vld [vmem:[%s6] sm:$0x1]
  %v117 = vld [vmem:[%s0] sm:$0xff]
  %s118 = sld [smem:[#allocation2]]
  // While loop
  $region94: #{generate.1} parent=0 // loop_pre_header
    _
  $region95: #{generate.1} parent=0 // loop_header
    %s120 = sphi %s118, %s122
    %p121 = scmp.ge.s32.totalorder %s120, 8
    %v125 = vphi %v117, %v5262
  $region96: #{generate.1} parent=0 // loop_header_branch
    %124 = sbr.rel (%p121) target = $region100
  $region97: #{generate.1} parent=0 // loop_body
    %126 = vset.pattern.permute.xlu0 0
    %127 = vperm.xlu0 %126, %v125
    %v128 = vpop.permute.xlu0 %127
    %vm129 = vcmp.eq.s32.totalorder %v128, %v79
    %v130 = vsel %vm129, 1, 0
    %v131 = vcvt.s32.f32 %v130
    %v132 = vpack.c.bf16 %v131, %v131
    %v149 = vunpack.c.l.b16 %v82
    %v150 = vunpack.c.l.b16 %v83
    %v151 = vunpack.c.l.b16 %v84
    %v152 = vunpack.c.l.b16 %v85
    %v153 = vunpack.c.l.b16 %v86
    %v154 = vunpack.c.l.b16 %v87
    %v155 = vunpack.c.l.b16 %v88
    %v156 = vunpack.c.l.b16 %v89
    %v157 = vunpack.c.l.b16 %v90
    %v158 = vunpack.c.l.b16 %v91
    %v159 = vunpack.c.l.b16 %v92
    %v160 = vunpack.c.l.b16 %v93
    %v161 = vunpack.c.l.b16 %v94
    %v162 = vunpack.c.l.b16 %v95
    %v163 = vunpack.c.l.b16 %v96
    %v164 = vunpack.c.l.b16 %v97
    %v165 = vpack.c.b16 %v150, %v149
    %v166 = vpack.c.b16 %v152, %v151
    %v167 = vpack.c.b16 %v154, %v153
    %v168 = vpack.c.b16 %v156, %v155
    %v169 = vpack.c.b16 %v158, %v157
    %v170 = vpack.c.b16 %v160, %v159
    %v171 = vpack.c.b16 %v162, %v161
    %v172 = vpack.c.b16 %v164, %v163
    %181 = vmatprep.subr.bf16.mxu0 0
    %182 = vmatpush1.bf16.msra.mxu0 %v165
    %183 = vmatprep.subr.bf16.mxu0 0
    %184 = vmatpush1.bf16.msra.mxu0 %v166
    %185 = vmatprep.subr.bf16.mxu0 0
    %186 = vmatpush1.bf16.msra.mxu0 %v167
    %187 = vmatprep.subr.bf16.mxu0 0
    %188 = vmatpush1.bf16.msra.mxu0 %v168
    %189 = vmatprep.subr.bf16.mxu0 0
    %190 = vmatpush1.bf16.msra.mxu0 %v169
    %191 = vmatprep.subr.bf16.mxu0 0
    %192 = vmatpush1.bf16.msra.mxu0 %v170
    %193 = vmatprep.subr.bf16.mxu0 0
    %194 = vmatpush1.bf16.msra.mxu0 %v171
    %195 = vmatprep.subr.bf16.mxu0 0
    %196 = vmatpush1.bf16.msra.mxu0 %v172
    %197 = vmatprep.subr.bf16.mxu0 0
    %198 = vmatpush1.bf16.msra.mxu0 0
    %199 = vmatprep.subr.bf16.mxu0 0
    %200 = vmatpush1.bf16.msra.mxu0 0
    %201 = vmatprep.subr.bf16.mxu0 0
    %202 = vmatpush1.bf16.msra.mxu0 0
    %203 = vmatprep.subr.bf16.mxu0 0
    %204 = vmatpush1.bf16.msra.mxu0 0
    %205 = vmatprep.subr.bf16.mxu0 0
    %206 = vmatpush1.bf16.msra.mxu0 0
    %207 = vmatprep.subr.bf16.mxu0 0
    %208 = vmatpush1.bf16.msra.mxu0 0
    %209 = vmatprep.subr.bf16.mxu0 0
    %210 = vmatpush1.bf16.msra.mxu0 0
    %211 = vmatprep.subr.bf16.mxu0 0
    %212 = vmatpush1.bf16.msra.mxu0 0
    %213 = vmatprep.mubr.bf16.mxu0 0
    %214 = vmatmul.mubr.bf16.gmra.mrb[0].mxu0 %v132
    %v215 = vpop.f32.mrb[0].mxu0
    %v216 = vadd.f32 %v114, %v215
    %v217 = vpop.f32.mrb[0].mxu0
    %v218 = vpop.f32.mrb[0].mxu0
    %v219 = vpop.f32.mrb[0].mxu0
    %220 = vdwg.mxu0
    %v221 = vld [vmem:[%s7] sm:$0x1]
    %v222 = vld [vmem:[%s8] sm:$0x1]
    %223 = vadd.xlane.f32.xlu0 %v216
    %v224 = vpop.xlane.xlu0 %223
    %v225 = vrcp.pop 128.0
    %v226 = vmul.f32 %v224, %v225
    %v227 = vsub.f32 %v216, %v226
    %v228 = vmul.f32 %v227, %v227
    %229 = vadd.xlane.f32.xlu0 %v228
    %v230 = vpop.xlane.xlu0 %229
    %v231 = vmul.f32 %v230, %v225
    %v232 = vadd.f32 %v231, 1e-05
    %v233 = vrsqrt.pop %v232
    %v234 = vmul.f32 %v227, %v233
    %v236 = vlaneseq
    %v237 = vshrl.u32 %v236, 7
    %v238 = vsub.s32 0, %v237
    %v239 = vrot.slane %v221, %v238
    %v241 = vmul.f32 %v234, %v239
    %v243 = vlaneseq
    %v244 = vshrl.u32 %v243, 7
    %v245 = vsub.s32 0, %v244
    %v246 = vrot.slane %v222, %v245
    %v248 = vadd.f32 %v241, %v246
    %v249 = vpack.c.bf16 %v248, %v248
    %v250 = vld [vmem:[%s9] sm:$0xf]
    %v251 = vld [vmem:[%s9 + $0x4] sm:$0xf]
    %v252 = vld [vmem:[%s9 + $0x8] sm:$0xf]
    %v253 = vld [vmem:[%s9 + $0xc] sm:$0xf]
    %v254 = vld [vmem:[%s9 + $0x10] sm:$0xf]
    %v255 = vld [vmem:[%s9 + $0x14] sm:$0xf]
    %v256 = vld [vmem:[%s9 + $0x18] sm:$0xf]
    %v257 = vld [vmem:[%s9 + $0x1c] sm:$0xf]
    %v258 = vld [vmem:[%s9 + $0x20] sm:$0xf]
    %v259 = vld [vmem:[%s9 + $0x24] sm:$0xf]
    %v260 = vld [vmem:[%s9 + $0x28] sm:$0xf]
    %v261 = vld [vmem:[%s9 + $0x2c] sm:$0xf]
    %v262 = vld [vmem:[%s9 + $0x30] sm:$0xf]
    %v263 = vld [vmem:[%s9 + $0x34] sm:$0xf]
    %v264 = vld [vmem:[%s9 + $0x38] sm:$0xf]
    %v265 = vld [vmem:[%s9 + $0x3c] sm:$0xf]
    %v266 = vld [vmem:[%s12] sm:$0x1]
    %v268 = vlaneseq
    %v269 = vshrl.u32 %v268, 7
    %v270 = vsub.s32 0, %v269
    %v271 = vrot.slane %v266, %v270
    %v289 = vunpack.c.l.b16 %v250
    %v290 = vunpack.c.l.b16 %v251
    %v291 = vunpack.c.l.b16 %v252
    %v292 = vunpack.c.l.b16 %v253
    %v293 = vunpack.c.l.b16 %v254
    %v294 = vunpack.c.l.b16 %v255
    %v295 = vunpack.c.l.b16 %v256
    %v296 = vunpack.c.l.b16 %v257
    %v297 = vunpack.c.l.b16 %v258
    %v298 = vunpack.c.l.b16 %v259
    %v299 = vunpack.c.l.b16 %v260
    %v300 = vunpack.c.l.b16 %v261
    %v301 = vunpack.c.l.b16 %v262
    %v302 = vunpack.c.l.b16 %v263
    %v303 = vunpack.c.l.b16 %v264
    %v304 = vunpack.c.l.b16 %v265
    %v305 = vpack.c.b16 %v290, %v289
    %v306 = vpack.c.b16 %v292, %v291
    %v307 = vpack.c.b16 %v294, %v293
    %v308 = vpack.c.b16 %v296, %v295
    %v309 = vpack.c.b16 %v298, %v297
    %v310 = vpack.c.b16 %v300, %v299
    %v311 = vpack.c.b16 %v302, %v301
    %v312 = vpack.c.b16 %v304, %v303
    %321 = vmatprep.subr.bf16.mxu0 0
    %322 = vmatpush1.bf16.msra.mxu0 %v305
    %323 = vmatprep.subr.bf16.mxu0 0
    %324 = vmatpush1.bf16.msra.mxu0 %v306
    %325 = vmatprep.subr.bf16.mxu0 0
    %326 = vmatpush1.bf16.msra.mxu0 %v307
    %327 = vmatprep.subr.bf16.mxu0 0
    %328 = vmatpush1.bf16.msra.mxu0 %v308
    %329 = vmatprep.subr.bf16.mxu0 0
    %330 = vmatpush1.bf16.msra.mxu0 %v309
    %331 = vmatprep.subr.bf16.mxu0 0
    %332 = vmatpush1.bf16.msra.mxu0 %v310
    %333 = vmatprep.subr.bf16.mxu0 0
    %334 = vmatpush1.bf16.msra.mxu0 %v311
    %335 = vmatprep.subr.bf16.mxu0 0
    %336 = vmatpush1.bf16.msra.mxu0 %v312
    %337 = vmatprep.subr.bf16.mxu0 0
    %338 = vmatpush1.bf16.msra.mxu0 0
    %339 = vmatprep.subr.bf16.mxu0 0
    %340 = vmatpush1.bf16.msra.mxu0 0
    %341 = vmatprep.subr.bf16.mxu0 0
    %342 = vmatpush1.bf16.msra.mxu0 0
    %343 = vmatprep.subr.bf16.mxu0 0
    %344 = vmatpush1.bf16.msra.mxu0 0
    %345 = vmatprep.subr.bf16.mxu0 0
    %346 = vmatpush1.bf16.msra.mxu0 0
    %347 = vmatprep.subr.bf16.mxu0 0
    %348 = vmatpush1.bf16.msra.mxu0 0
    %349 = vmatprep.subr.bf16.mxu0 0
    %350 = vmatpush1.bf16.msra.mxu0 0
    %351 = vmatprep.subr.bf16.mxu0 0
    %352 = vmatpush1.bf16.msra.mxu0 0
    %353 = vmatprep.mubr.bf16.mxu0 0
    %354 = vmatmul.mubr.bf16.gmra.mrb[0].mxu0 %v249
    %v355 = vpop.f32.mrb[0].mxu0
    %v356 = vadd.f32 %v271, %v355
    %v357 = vpop.f32.mrb[0].mxu0
    %v358 = vpop.f32.mrb[0].mxu0
    %v359 = vpop.f32.mrb[0].mxu0
    %360 = vdwg.mxu0
    %v361 = vld [vmem:[%s10] sm:$0xf]
    %v362 = vld [vmem:[%s10 + $0x4] sm:$0xf]
    %v363 = vld [vmem:[%s10 + $0x8] sm:$0xf]
    %v364 = vld [vmem:[%s10 + $0xc] sm:$0xf]
    %v365 = vld [vmem:[%s10 + $0x10] sm:$0xf]
    %v366 = vld [vmem:[%s10 + $0x14] sm:$0xf]
    %v367 = vld [vmem:[%s10 + $0x18] sm:$0xf]
    %v368 = vld [vmem:[%s10 + $0x1c] sm:$0xf]
    %v369 = vld [vmem:[%s10 + $0x20] sm:$0xf]
    %v370 = vld [vmem:[%s10 + $0x24] sm:$0xf]
    %v371 = vld [vmem:[%s10 + $0x28] sm:$0xf]
    %v372 = vld [vmem:[%s10 + $0x2c] sm:$0xf]
    %v373 = vld [vmem:[%s10 + $0x30] sm:$0xf]
    %v374 = vld [vmem:[%s10 + $0x34] sm:$0xf]
    %v375 = vld [vmem:[%s10 + $0x38] sm:$0xf]
    %v376 = vld [vmem:[%s10 + $0x3c] sm:$0xf]
    %v377 = vld [vmem:[%s13] sm:$0x1]
    %v379 = vlaneseq
    %v380 = vshrl.u32 %v379, 7
    %v381 = vsub.s32 0, %v380
    %v382 = vrot.slane %v377, %v381
    %v400 = vunpack.c.l.b16 %v361
    %v401 = vunpack.c.l.b16 %v362
    %v402 = vunpack.c.l.b16 %v363
    %v403 = vunpack.c.l.b16 %v364
    %v404 = vunpack.c.l.b16 %v365
    %v405 = vunpack.c.l.b16 %v366
    %v406 = vunpack.c.l.b16 %v367
    %v407 = vunpack.c.l.b16 %v368
    %v408 = vunpack.c.l.b16 %v369
    %v409 = vunpack.c.l.b16 %v370
    %v410 = vunpack.c.l.b16 %v371
    %v411 = vunpack.c.l.b16 %v372
    %v412 = vunpack.c.l.b16 %v373
    %v413 = vunpack.c.l.b16 %v374
    %v414 = vunpack.c.l.b16 %v375
    %v415 = vunpack.c.l.b16 %v376
    %v416 = vpack.c.b16 %v401, %v400
    %v417 = vpack.c.b16 %v403, %v402
    %v418 = vpack.c.b16 %v405, %v404
    %v419 = vpack.c.b16 %v407, %v406
    %v420 = vpack.c.b16 %v409, %v408
    %v421 = vpack.c.b16 %v411, %v410
    %v422 = vpack.c.b16 %v413, %v412
    %v423 = vpack.c.b16 %v415, %v414
    %432 = vmatprep.subr.bf16.mxu0 0
    %433 = vmatpush1.bf16.msra.mxu0 %v416
    %434 = vmatprep.subr.bf16.mxu0 0
    %435 = vmatpush1.bf16.msra.mxu0 %v417
    %436 = vmatprep.subr.bf16.mxu0 0
    %437 = vmatpush1.bf16.msra.mxu0 %v418
    %438 = vmatprep.subr.bf16.mxu0 0
    %439 = vmatpush1.bf16.msra.mxu0 %v419
    %440 = vmatprep.subr.bf16.mxu0 0
    %441 = vmatpush1.bf16.msra.mxu0 %v420
    %442 = vmatprep.subr.bf16.mxu0 0
    %443 = vmatpush1.bf16.msra.mxu0 %v421
    %444 = vmatprep.subr.bf16.mxu0 0
    %445 = vmatpush1.bf16.msra.mxu0 %v422
    %446 = vmatprep.subr.bf16.mxu0 0
    %447 = vmatpush1.bf16.msra.mxu0 %v423
    %448 = vmatprep.subr.bf16.mxu0 0
    %449 = vmatpush1.bf16.msra.mxu0 0
    %450 = vmatprep.subr.bf16.mxu0 0
    %451 = vmatpush1.bf16.msra.mxu0 0
    %452 = vmatprep.subr.bf16.mxu0 0
    %453 = vmatpush1.bf16.msra.mxu0 0
    %454 = vmatprep.subr.bf16.mxu0 0
    %455 = vmatpush1.bf16.msra.mxu0 0
    %456 = vmatprep.subr.bf16.mxu0 0
    %457 = vmatpush1.bf16.msra.mxu0 0
    %458 = vmatprep.subr.bf16.mxu0 0
    %459 = vmatpush1.bf16.msra.mxu0 0
    %460 = vmatprep.subr.bf16.mxu0 0
    %461 = vmatpush1.bf16.msra.mxu0 0
    %462 = vmatprep.subr.bf16.mxu0 0
    %463 = vmatpush1.bf16.msra.mxu0 0
    %464 = vmatprep.mubr.bf16.mxu0 0
    %465 = vmatmul.mubr.bf16.gmra.mrb[0].mxu0 %v249
    %v466 = vpop.f32.mrb[0].mxu0
    %v467 = vadd.f32 %v382, %v466
    %v468 = vpop.f32.mrb[0].mxu0
    %v469 = vpop.f32.mrb[0].mxu0
    %v470 = vpop.f32.mrb[0].mxu0
    %471 = vdwg.mxu0
    %v472 = vld [vmem:[%s11] sm:$0xf]
    %v473 = vld [vmem:[%s11 + $0x4] sm:$0xf]
    %v474 = vld [vmem:[%s11 + $0x8] sm:$0xf]
    %v475 = vld [vmem:[%s11 + $0xc] sm:$0xf]
    %v476 = vld [vmem:[%s11 + $0x10] sm:$0xf]
    %v477 = vld [vmem:[%s11 + $0x14] sm:$0xf]
    %v478 = vld [vmem:[%s11 + $0x18] sm:$0xf]
    %v479 = vld [vmem:[%s11 + $0x1c] sm:$0xf]
    %v480 = vld [vmem:[%s11 + $0x20] sm:$0xf]
    %v481 = vld [vmem:[%s11 + $0x24] sm:$0xf]
    %v482 = vld [vmem:[%s11 + $0x28] sm:$0xf]
    %v483 = vld [vmem:[%s11 + $0x2c] sm:$0xf]
    %v484 = vld [vmem:[%s11 + $0x30] sm:$0xf]
    %v485 = vld [vmem:[%s11 + $0x34] sm:$0xf]
    %v486 = vld [vmem:[%s11 + $0x38] sm:$0xf]
    %v487 = vld [vmem:[%s11 + $0x3c] sm:$0xf]
    %v488 = vld [vmem:[%s14] sm:$0x1]
    %v490 = vlaneseq
    %v491 = vshrl.u32 %v490, 7
    %v492 = vsub.s32 0, %v491
    %v493 = vrot.slane %v488, %v492
    %v511 = vunpack.c.l.b16 %v472
    %v512 = vunpack.c.l.b16 %v473
    %v513 = vunpack.c.l.b16 %v474
    %v514 = vunpack.c.l.b16 %v475
    %v515 = vunpack.c.l.b16 %v476
    %v516 = vunpack.c.l.b16 %v477
    %v517 = vunpack.c.l.b16 %v478
    %v518 = vunpack.c.l.b16 %v479
    %v519 = vunpack.c.l.b16 %v480
    %v520 = vunpack.c.l.b16 %v481
    %v521 = vunpack.c.l.b16 %v482
    %v522 = vunpack.c.l.b16 %v483
    %v523 = vunpack.c.l.b16 %v484
    %v524 = vunpack.c.l.b16 %v485
    %v525 = vunpack.c.l.b16 %v486
    %v526 = vunpack.c.l.b16 %v487
    %v527 = vpack.c.b16 %v512, %v511
    %v528 = vpack.c.b16 %v514, %v513
    %v529 = vpack.c.b16 %v516, %v515
    %v530 = vpack.c.b16 %v518, %v517
    %v531 = vpack.c.b16 %v520, %v519
    %v532 = vpack.c.b16 %v522, %v521
    %v533 = vpack.c.b16 %v524, %v523
    %v534 = vpack.c.b16 %v526, %v525
    %543 = vmatprep.subr.bf16.mxu0 0
    %544 = vmatpush1.bf16.msra.mxu0 %v527
    %545 = vmatprep.subr.bf16.mxu0 0
    %546 = vmatpush1.bf16.msra.mxu0 %v528
    %547 = vmatprep.subr.bf16.mxu0 0
    %548 = vmatpush1.bf16.msra.mxu0 %v529
    %549 = vmatprep.subr.bf16.mxu0 0
    %550 = vmatpush1.bf16.msra.mxu0 %v530
    %551 = vmatprep.subr.bf16.mxu0 0
    %552 = vmatpush1.bf16.msra.mxu0 %v531
    %553 = vmatprep.subr.bf16.mxu0 0
    %554 = vmatpush1.bf16.msra.mxu0 %v532
    %555 = vmatprep.subr.bf16.mxu0 0
    %556 = vmatpush1.bf16.msra.mxu0 %v533
    %557 = vmatprep.subr.bf16.mxu0 0
    %558 = vmatpush1.bf16.msra.mxu0 %v534
    %559 = vmatprep.subr.bf16.mxu0 0
    %560 = vmatpush1.bf16.msra.mxu0 0
    %561 = vmatprep.subr.bf16.mxu0 0
    %562 = vmatpush1.bf16.msra.mxu0 0
    %563 = vmatprep.subr.bf16.mxu0 0
    %564 = vmatpush1.bf16.msra.mxu0 0
    %565 = vmatprep.subr.bf16.mxu0 0
    %566 = vmatpush1.bf16.msra.mxu0 0
    %567 = vmatprep.subr.bf16.mxu0 0
    %568 = vmatpush1.bf16.msra.mxu0 0
    %569 = vmatprep.subr.bf16.mxu0 0
    %570 = vmatpush1.bf16.msra.mxu0 0
    %571 = vmatprep.subr.bf16.mxu0 0
    %572 = vmatpush1.bf16.msra.mxu0 0
    %573 = vmatprep.subr.bf16.mxu0 0
    %574 = vmatpush1.bf16.msra.mxu0 0
    %575 = vmatprep.mubr.bf16.mxu0 0
    %576 = vmatmul.mubr.bf16.gmra.mrb[0].mxu0 %v249
    %v577 = vpop.f32.mrb[0].mxu0
    %v578 = vadd.f32 %v493, %v577
    %v579 = vpop.f32.mrb[0].mxu0
    %v580 = vpop.f32.mrb[0].mxu0
    %v581 = vpop.f32.mrb[0].mxu0
    %582 = vdwg.mxu0
    %v583 = vpack.c.bf16 %v356, %v356
    %v584 = vpack.c.bf16 %v467, %v467
    %vm585 = vcmask 261120
    %v587 = vsel %vm585, %v583, 0
    %v590 = vsel %vm585, %v584, 0
    %592 = vmatprep.subr.bf16.mxu0 0
    %593 = vmatpush1.bf16.xpose.msra.mxu0 %v590
    %594 = vmatprep.subr.bf16.mxu0 0
    %595 = vmatpush1.bf16.xpose.msra.mxu0 0
    %596 = vmatprep.subr.bf16.mxu0 0
    %597 = vmatpush1.bf16.xpose.msra.mxu0 0
    %598 = vmatprep.subr.bf16.mxu0 0
    %599 = vmatpush1.bf16.xpose.msra.mxu0 0
    %600 = vmatprep.subr.bf16.mxu0 0
    %601 = vmatpush1.bf16.xpose.msra.mxu0 0
    %602 = vmatprep.subr.bf16.mxu0 0
    %603 = vmatpush1.bf16.xpose.msra.mxu0 0
    %604 = vmatprep.subr.bf16.mxu0 0
    %605 = vmatpush1.bf16.xpose.msra.mxu0 0
    %606 = vmatprep.subr.bf16.mxu0 0
    %607 = vmatpush1.bf16.xpose.msra.mxu0 0
    %608 = vmatprep.subr.bf16.mxu0 0
    %609 = vmatpush1.bf16.xpose.msra.mxu0 0
    %610 = vmatprep.subr.bf16.mxu0 0
    %611 = vmatpush1.bf16.xpose.msra.mxu0 0
    %612 = vmatprep.subr.bf16.mxu0 0
    %613 = vmatpush1.bf16.xpose.msra.mxu0 0
    %614 = vmatprep.subr.bf16.mxu0 0
    %615 = vmatpush1.bf16.xpose.msra.mxu0 0
    %616 = vmatprep.subr.bf16.mxu0 0
    %617 = vmatpush1.bf16.xpose.msra.mxu0 0
    %618 = vmatprep.subr.bf16.mxu0 0
    %619 = vmatpush1.bf16.xpose.msra.mxu0 0
    %620 = vmatprep.subr.bf16.mxu0 0
    %621 = vmatpush1.bf16.xpose.msra.mxu0 0
    %622 = vmatprep.subr.bf16.mxu0 0
    %623 = vmatpush1.bf16.xpose.msra.mxu0 0
    %624 = vmatprep.mubr.bf16.mxu0 0
    %625 = vmatmul.mubr.bf16.gmra.mrb[0].mxu0 %v587
    %v626 = vpop.f32.mrb[0].mxu0
    %v627 = vadd.f32 0.0, %v626
    %v628 = vpop.f32.mrb[0].mxu0
    %v629 = vpop.f32.mrb[0].mxu0
    %v630 = vpop.f32.mrb[0].mxu0
    %631 = vdwg.mxu0
    %v632 = vmul.f32 %v627, 0.17677669
    %v633 = vadd.f32 %v632, %v81
    %vm634 = vcmask 64512
    %v635 = vsel %vm634, %v633, -inf
    %636 = vmax.xlane.f32.xlu0 %v635
    %v637 = vpop.xlane.xlu0 %636
    %v638 = vsub.f32 %v633, %v637
    %v639 = vmul.f32 %v638, 1.442695
    %v640 = vpow.pop %v639
    %v641 = vsel %vm634, %v640, 0.0
    %642 = vadd.xlane.f32.xlu0 %v641
    %v643 = vpop.xlane.xlu0 %642
    %v644 = vrcp.pop %v643
    %v645 = vmul.f32 %v640, %v644
    %v646 = vpack.c.bf16 %v645, %v645
    %v647 = vpack.c.bf16 %v578, %v578
    %v649 = vsel %vm634, %v646, 0
    %vm651 = vcmask 1043456
    %v653 = vsel %vm651, %v647, 0
    %655 = vmatprep.subr.bf16.mxu0 0
    %656 = vmatpush1.bf16.msra.mxu0 %v653
    %657 = vmatprep.subr.bf16.mxu0 0
    %658 = vmatpush1.bf16.msra.mxu0 0
    %659 = vmatprep.subr.bf16.mxu0 0
    %660 = vmatpush1.bf16.msra.mxu0 0
    %661 = vmatprep.subr.bf16.mxu0 0
    %662 = vmatpush1.bf16.msra.mxu0 0
    %663 = vmatprep.subr.bf16.mxu0 0
    %664 = vmatpush1.bf16.msra.mxu0 0
    %665 = vmatprep.subr.bf16.mxu0 0
    %666 = vmatpush1.bf16.msra.mxu0 0
    %667 = vmatprep.subr.bf16.mxu0 0
    %668 = vmatpush1.bf16.msra.mxu0 0
    %669 = vmatprep.subr.bf16.mxu0 0
    %670 = vmatpush1.bf16.msra.mxu0 0
    %671 = vmatprep.subr.bf16.mxu0 0
    %672 = vmatpush1.bf16.msra.mxu0 0
    %673 = vmatprep.subr.bf16.mxu0 0
    %674 = vmatpush1.bf16.msra.mxu0 0
    %675 = vmatprep.subr.bf16.mxu0 0
    %676 = vmatpush1.bf16.msra.mxu0 0
    %677 = vmatprep.subr.bf16.mxu0 0
    %678 = vmatpush1.bf16.msra.mxu0 0
    %679 = vmatprep.subr.bf16.mxu0 0
    %680 = vmatpush1.bf16.msra.mxu0 0
    %681 = vmatprep.subr.bf16.mxu0 0
    %682 = vmatpush1.bf16.msra.mxu0 0
    %683 = vmatprep.subr.bf16.mxu0 0
    %684 = vmatpush1.bf16.msra.mxu0 0
    %685 = vmatprep.subr.bf16.mxu0 0
    %686 = vmatpush1.bf16.msra.mxu0 0
    %687 = vmatprep.mubr.bf16.mxu0 0
    %688 = vmatmul.mubr.bf16.gmra.mrb[0].mxu0 %v649
    %v689 = vpop.f32.mrb[0].mxu0
    %v690 = vadd.f32 0.0, %v689
    %v691 = vpop.f32.mrb[0].mxu0
    %v692 = vpop.f32.mrb[0].mxu0
    %v693 = vpop.f32.mrb[0].mxu0
    %694 = vdwg.mxu0
    %v695 = vpack.c.bf16 %v690, %v690
    %v696 = vld [vmem:[%s15] sm:$0xf]
    %v697 = vld [vmem:[%s15 + $0x4] sm:$0xf]
    %v698 = vld [vmem:[%s15 + $0x8] sm:$0xf]
    %v699 = vld [vmem:[%s15 + $0xc] sm:$0xf]
    %s700 = scalar_lea.vmem %s9, 64
    %v701 = vld [vmem:[%s700] sm:$0xf]
    %v702 = vld [vmem:[%s700 + $0x4] sm:$0xf]
    %v703 = vld [vmem:[%s700 + $0x8] sm:$0xf]
    %v704 = vld [vmem:[%s700 + $0xc] sm:$0xf]
    %v705 = vld [vmem:[%s700 + $0x10] sm:$0xf]
    %v706 = vld [vmem:[%s700 + $0x14] sm:$0xf]
    %v707 = vld [vmem:[%s700 + $0x18] sm:$0xf]
    %v708 = vld [vmem:[%s700 + $0x1c] sm:$0xf]
    %v709 = vld [vmem:[%s700 + $0x20] sm:$0xf]
    %v710 = vld [vmem:[%s700 + $0x24] sm:$0xf]
    %v711 = vld [vmem:[%s700 + $0x28] sm:$0xf]
    %v712 = vld [vmem:[%s700 + $0x2c] sm:$0xf]
    %v713 = vld [vmem:[%s700 + $0x30] sm:$0xf]
    %v714 = vld [vmem:[%s700 + $0x34] sm:$0xf]
    %v715 = vld [vmem:[%s700 + $0x38] sm:$0xf]
    %v716 = vld [vmem:[%s700 + $0x3c] sm:$0xf]
    %s717 = scalar_lea.vmem %s12, 1
    %v718 = vld [vmem:[%s717] sm:$0x1]
    %v720 = vlaneseq
    %v721 = vshrl.u32 %v720, 7
    %v722 = vsub.s32 0, %v721
    %v723 = vrot.slane %v718, %v722
    %v741 = vunpack.c.l.b16 %v701
    %v742 = vunpack.c.l.b16 %v702
    %v743 = vunpack.c.l.b16 %v703
    %v744 = vunpack.c.l.b16 %v704
    %v745 = vunpack.c.l.b16 %v705
    %v746 = vunpack.c.l.b16 %v706
    %v747 = vunpack.c.l.b16 %v707
    %v748 = vunpack.c.l.b16 %v708
    %v749 = vunpack.c.l.b16 %v709
    %v750 = vunpack.c.l.b16 %v710
    %v751 = vunpack.c.l.b16 %v711
    %v752 = vunpack.c.l.b16 %v712
    %v753 = vunpack.c.l.b16 %v713
    %v754 = vunpack.c.l.b16 %v714
    %v755 = vunpack.c.l.b16 %v715
    %v756 = vunpack.c.l.b16 %v716
    %v757 = vpack.c.b16 %v742, %v741
    %v758 = vpack.c.b16 %v744, %v743
    %v759 = vpack.c.b16 %v746, %v745
    %v760 = vpack.c.b16 %v748, %v747
    %v761 = vpack.c.b16 %v750, %v749
    %v762 = vpack.c.b16 %v752, %v751
    %v763 = vpack.c.b16 %v754, %v753
    %v764 = vpack.c.b16 %v756, %v755
    %773 = vmatprep.subr.bf16.mxu0 0
    %774 = vmatpush1.bf16.msra.mxu0 %v757
    %775 = vmatprep.subr.bf16.mxu0 0
    %776 = vmatpush1.bf16.msra.mxu0 %v758
    %777 = vmatprep.subr.bf16.mxu0 0
    %778 = vmatpush1.bf16.msra.mxu0 %v759
    %779 = vmatprep.subr.bf16.mxu0 0
    %780 = vmatpush1.bf16.msra.mxu0 %v760
    %781 = vmatprep.subr.bf16.mxu0 0
    %782 = vmatpush1.bf16.msra.mxu0 %v761
    %783 = vmatprep.subr.bf16.mxu0 0
    %784 = vmatpush1.bf16.msra.mxu0 %v762
    %785 = vmatprep.subr.bf16.mxu0 0
    %786 = vmatpush1.bf16.msra.mxu0 %v763
    %787 = vmatprep.subr.bf16.mxu0 0
    %788 = vmatpush1.bf16.msra.mxu0 %v764
    %789 = vmatprep.subr.bf16.mxu0 0
    %790 = vmatpush1.bf16.msra.mxu0 0
    %791 = vmatprep.subr.bf16.mxu0 0
    %792 = vmatpush1.bf16.msra.mxu0 0
    %793 = vmatprep.subr.bf16.mxu0 0
    %794 = vmatpush1.bf16.msra.mxu0 0
    %795 = vmatprep.subr.bf16.mxu0 0
    %796 = vmatpush1.bf16.msra.mxu0 0
    %797 = vmatprep.subr.bf16.mxu0 0
    %798 = vmatpush1.bf16.msra.mxu0 0
    %799 = vmatprep.subr.bf16.mxu0 0
    %800 = vmatpush1.bf16.msra.mxu0 0
    %801 = vmatprep.subr.bf16.mxu0 0
    %802 = vmatpush1.bf16.msra.mxu0 0
    %803 = vmatprep.subr.bf16.mxu0 0
    %804 = vmatpush1.bf16.msra.mxu0 0
    %805 = vmatprep.mubr.bf16.mxu0 0
    %806 = vmatmul.mubr.bf16.gmra.mrb[0].mxu0 %v249
    %v807 = vpop.f32.mrb[0].mxu0
    %v808 = vadd.f32 %v723, %v807
    %v809 = vpop.f32.mrb[0].mxu0
    %v810 = vpop.f32.mrb[0].mxu0
    %v811 = vpop.f32.mrb[0].mxu0
    %812 = vdwg.mxu0
    %s813 = scalar_lea.vmem %s10, 64
    %v814 = vld [vmem:[%s813] sm:$0xf]
    %v815 = vld [vmem:[%s813 + $0x4] sm:$0xf]
    %v816 = vld [vmem:[%s813 + $0x8] sm:$0xf]
    %v817 = vld [vmem:[%s813 + $0xc] sm:$0xf]
    %v818 = vld [vmem:[%s813 + $0x10] sm:$0xf]
    %v819 = vld [vmem:[%s813 + $0x14] sm:$0xf]
    %v820 = vld [vmem:[%s813 + $0x18] sm:$0xf]
    %v821 = vld [vmem:[%s813 + $0x1c] sm:$0xf]
    %v822 = vld [vmem:[%s813 + $0x20] sm:$0xf]
    %v823 = vld [vmem:[%s813 + $0x24] sm:$0xf]
    %v824 = vld [vmem:[%s813 + $0x28] sm:$0xf]
    %v825 = vld [vmem:[%s813 + $0x2c] sm:$0xf]
    %v826 = vld [vmem:[%s813 + $0x30] sm:$0xf]
    %v827 = vld [vmem:[%s813 + $0x34] sm:$0xf]
    %v828 = vld [vmem:[%s813 + $0x38] sm:$0xf]
    %v829 = vld [vmem:[%s813 + $0x3c] sm:$0xf]
    %s830 = scalar_lea.vmem %s13, 1
    %v831 = vld [vmem:[%s830] sm:$0x1]
    %v833 = vlaneseq
    %v834 = vshrl.u32 %v833, 7
    %v835 = vsub.s32 0, %v834
    %v836 = vrot.slane %v831, %v835
    %v854 = vunpack.c.l.b16 %v814
    %v855 = vunpack.c.l.b16 %v815
    %v856 = vunpack.c.l.b16 %v816
    %v857 = vunpack.c.l.b16 %v817
    %v858 = vunpack.c.l.b16 %v818
    %v859 = vunpack.c.l.b16 %v819
    %v860 = vunpack.c.l.b16 %v820
    %v861 = vunpack.c.l.b16 %v821
    %v862 = vunpack.c.l.b16 %v822
    %v863 = vunpack.c.l.b16 %v823
    %v864 = vunpack.c.l.b16 %v824
    %v865 = vunpack.c.l.b16 %v825
    %v866 = vunpack.c.l.b16 %v826
    %v867 = vunpack.c.l.b16 %v827
    %v868 = vunpack.c.l.b16 %v828
    %v869 = vunpack.c.l.b16 %v829
    %v870 = vpack.c.b16 %v855, %v854
    %v871 = vpack.c.b16 %v857, %v856
    %v872 = vpack.c.b16 %v859, %v858
    %v873 = vpack.c.b16 %v861, %v860
    %v874 = vpack.c.b16 %v863, %v862
    %v875 = vpack.c.b16 %v865, %v864
    %v876 = vpack.c.b16 %v867, %v866
    %v877 = vpack.c.b16 %v869, %v868
    %886 = vmatprep.subr.bf16.mxu0 0
    %887 = vmatpush1.bf16.msra.mxu0 %v870
    %888 = vmatprep.subr.bf16.mxu0 0
    %889 = vmatpush1.bf16.msra.mxu0 %v871
    %890 = vmatprep.subr.bf16.mxu0 0
    %891 = vmatpush1.bf16.msra.mxu0 %v872
    %892 = vmatprep.subr.bf16.mxu0 0
    %893 = vmatpush1.bf16.msra.mxu0 %v873
    %894 = vmatprep.subr.bf16.mxu0 0
    %895 = vmatpush1.bf16.msra.mxu0 %v874
    %896 = vmatprep.subr.bf16.mxu0 0
    %897 = vmatpush1.bf16.msra.mxu0 %v875
    %898 = vmatprep.subr.bf16.mxu0 0
    %899 = vmatpush1.bf16.msra.mxu0 %v876
    %900 = vmatprep.subr.bf16.mxu0 0
    %901 = vmatpush1.bf16.msra.mxu0 %v877
    %902 = vmatprep.subr.bf16.mxu0 0
    %903 = vmatpush1.bf16.msra.mxu0 0
    %904 = vmatprep.subr.bf16.mxu0 0
    %905 = vmatpush1.bf16.msra.mxu0 0
    %906 = vmatprep.subr.bf16.mxu0 0
    %907 = vmatpush1.bf16.msra.mxu0 0
    %908 = vmatprep.subr.bf16.mxu0 0
    %909 = vmatpush1.bf16.msra.mxu0 0
    %910 = vmatprep.subr.bf16.mxu0 0
    %911 = vmatpush1.bf16.msra.mxu0 0
    %912 = vmatprep.subr.bf16.mxu0 0
    %913 = vmatpush1.bf16.msra.mxu0 0
    %914 = vmatprep.subr.bf16.mxu0 0
    %915 = vmatpush1.bf16.msra.mxu0 0
    %916 = vmatprep.subr.bf16.mxu0 0
    %917 = vmatpush1.bf16.msra.mxu0 0
    %918 = vmatprep.mubr.bf16.mxu0 0
    %919 = vmatmul.mubr.bf16.gmra.mrb[0].mxu0 %v249
    %v920 = vpop.f32.mrb[0].mxu0
    %v921 = vadd.f32 %v836, %v920
    %v922 = vpop.f32.mrb[0].mxu0
    %v923 = vpop.f32.mrb[0].mxu0
    %v924 = vpop.f32.mrb[0].mxu0
    %925 = vdwg.mxu0
    %s926 = scalar_lea.vmem %s11, 64
    %v927 = vld [vmem:[%s926] sm:$0xf]
    %v928 = vld [vmem:[%s926 + $0x4] sm:$0xf]
    %v929 = vld [vmem:[%s926 + $0x8] sm:$0xf]
    %v930 = vld [vmem:[%s926 + $0xc] sm:$0xf]
    %v931 = vld [vmem:[%s926 + $0x10] sm:$0xf]
    %v932 = vld [vmem:[%s926 + $0x14] sm:$0xf]
    %v933 = vld [vmem:[%s926 + $0x18] sm:$0xf]
    %v934 = vld [vmem:[%s926 + $0x1c] sm:$0xf]
    %v935 = vld [vmem:[%s926 + $0x20] sm:$0xf]
    %v936 = vld [vmem:[%s926 + $0x24] sm:$0xf]
    %v937 = vld [vmem:[%s926 + $0x28] sm:$0xf]
    %v938 = vld [vmem:[%s926 + $0x2c] sm:$0xf]
    %v939 = vld [vmem:[%s926 + $0x30] sm:$0xf]
    %v940 = vld [vmem:[%s926 + $0x34] sm:$0xf]
    %v941 = vld [vmem:[%s926 + $0x38] sm:$0xf]
    %v942 = vld [vmem:[%s926 + $0x3c] sm:$0xf]
    %s943 = scalar_lea.vmem %s14, 1
    %v944 = vld [vmem:[%s943] sm:$0x1]
    %v946 = vlaneseq
    %v947 = vshrl.u32 %v946, 7
    %v948 = vsub.s32 0, %v947
    %v949 = vrot.slane %v944, %v948
    %v967 = vunpack.c.l.b16 %v927
    %v968 = vunpack.c.l.b16 %v928
    %v969 = vunpack.c.l.b16 %v929
    %v970 = vunpack.c.l.b16 %v930
    %v971 = vunpack.c.l.b16 %v931
    %v972 = vunpack.c.l.b16 %v932
    %v973 = vunpack.c.l.b16 %v933
    %v974 = vunpack.c.l.b16 %v934
    %v975 = vunpack.c.l.b16 %v935
    %v976 = vunpack.c.l.b16 %v936
    %v977 = vunpack.c.l.b16 %v937
    %v978 = vunpack.c.l.b16 %v938
    %v979 = vunpack.c.l.b16 %v939
    %v980 = vunpack.c.l.b16 %v940
    %v981 = vunpack.c.l.b16 %v941
    %v982 = vunpack.c.l.b16 %v942
    %v983 = vpack.c.b16 %v968, %v967
    %v984 = vpack.c.b16 %v970, %v969
    %v985 = vpack.c.b16 %v972, %v971
    %v986 = vpack.c.b16 %v974, %v973
    %v987 = vpack.c.b16 %v976, %v975
    %v988 = vpack.c.b16 %v978, %v977
    %v989 = vpack.c.b16 %v980, %v979
    %v990 = vpack.c.b16 %v982, %v981
    %999 = vmatprep.subr.bf16.mxu0 0
    %1000 = vmatpush1.bf16.msra.mxu0 %v983
    %1001 = vmatprep.subr.bf16.mxu0 0
    %1002 = vmatpush1.bf16.msra.mxu0 %v984
    %1003 = vmatprep.subr.bf16.mxu0 0
    %1004 = vmatpush1.bf16.msra.mxu0 %v985
    %1005 = vmatprep.subr.bf16.mxu0 0
    %1006 = vmatpush1.bf16.msra.mxu0 %v986
    %1007 = vmatprep.subr.bf16.mxu0 0
    %1008 = vmatpush1.bf16.msra.mxu0 %v987
    %1009 = vmatprep.subr.bf16.mxu0 0
    %1010 = vmatpush1.bf16.msra.mxu0 %v988
    %1011 = vmatprep.subr.bf16.mxu0 0
    %1012 = vmatpush1.bf16.msra.mxu0 %v989
    %1013 = vmatprep.subr.bf16.mxu0 0
    %1014 = vmatpush1.bf16.msra.mxu0 %v990
    %1015 = vmatprep.subr.bf16.mxu0 0
    %1016 = vmatpush1.bf16.msra.mxu0 0
    %1017 = vmatprep.subr.bf16.mxu0 0
    %1018 = vmatpush1.bf16.msra.mxu0 0
    %1019 = vmatprep.subr.bf16.mxu0 0
    %1020 = vmatpush1.bf16.msra.mxu0 0
    %1021 = vmatprep.subr.bf16.mxu0 0
    %1022 = vmatpush1.bf16.msra.mxu0 0
    %1023 = vmatprep.subr.bf16.mxu0 0
    %1024 = vmatpush1.bf16.msra.mxu0 0
    %1025 = vmatprep.subr.bf16.mxu0 0
    %1026 = vmatpush1.bf16.msra.mxu0 0
    %1027 = vmatprep.subr.bf16.mxu0 0
    %1028 = vmatpush1.bf16.msra.mxu0 0
    %1029 = vmatprep.subr.bf16.mxu0 0
    %1030 = vmatpush1.bf16.msra.mxu0 0
    %1031 = vmatprep.mubr.bf16.mxu0 0
    %1032 = vmatmul.mubr.bf16.gmra.mrb[0].mxu0 %v249
    %v1033 = vpop.f32.mrb[0].mxu0
    %v1034 = vadd.f32 %v949, %v1033
    %v1035 = vpop.f32.mrb[0].mxu0
    %v1036 = vpop.f32.mrb[0].mxu0
    %v1037 = vpop.f32.mrb[0].mxu0
    %1038 = vdwg.mxu0
    %v1039 = vpack.c.bf16 %v808, %v808
    %v1040 = vpack.c.bf16 %v921, %v921
    %v1042 = vsel %vm585, %v1039, 0
    %v1045 = vsel %vm585, %v1040, 0
    %1047 = vmatprep.subr.bf16.mxu0 0
    %1048 = vmatpush1.bf16.xpose.msra.mxu0 %v1045
    %1049 = vmatprep.subr.bf16.mxu0 0
    %1050 = vmatpush1.bf16.xpose.msra.mxu0 0
    %1051 = vmatprep.subr.bf16.mxu0 0
    %1052 = vmatpush1.bf16.xpose.msra.mxu0 0
    %1053 = vmatprep.subr.bf16.mxu0 0
    %1054 = vmatpush1.bf16.xpose.msra.mxu0 0
    %1055 = vmatprep.subr.bf16.mxu0 0
    %1056 = vmatpush1.bf16.xpose.msra.mxu0 0
    %1057 = vmatprep.subr.bf16.mxu0 0
    %1058 = vmatpush1.bf16.xpose.msra.mxu0 0
    %1059 = vmatprep.subr.bf16.mxu0 0
    %1060 = vmatpush1.bf16.xpose.msra.mxu0 0
    %1061 = vmatprep.subr.bf16.mxu0 0
    %1062 = vmatpush1.bf16.xpose.msra.mxu0 0
    %1063 = vmatprep.subr.bf16.mxu0 0
    %1064 = vmatpush1.bf16.xpose.msra.mxu0 0
    %1065 = vmatprep.subr.bf16.mxu0 0
    %1066 = vmatpush1.bf16.xpose.msra.mxu0 0
    %1067 = vmatprep.subr.bf16.mxu0 0
    %1068 = vmatpush1.bf16.xpose.msra.mxu0 0
    %1069 = vmatprep.subr.bf16.mxu0 0
    %1070 = vmatpush1.bf16.xpose.msra.mxu0 0
    %1071 = vmatprep.subr.bf16.mxu0 0
    %1072 = vmatpush1.bf16.xpose.msra.mxu0 0
    %1073 = vmatprep.subr.bf16.mxu0 0
    %1074 = vmatpush1.bf16.xpose.msra.mxu0 0
    %1075 = vmatprep.subr.bf16.mxu0 0
    %1076 = vmatpush1.bf16.xpose.msra.mxu0 0
    %1077 = vmatprep.subr.bf16.mxu0 0
    %1078 = vmatpush1.bf16.xpose.msra.mxu0 0
    %1079 = vmatprep.mubr.bf16.mxu0 0
    %1080 = vmatmul.mubr.bf16.gmra.mrb[0].mxu0 %v1042
    %v1081 = vpop.f32.mrb[0].mxu0
    %v1082 = vadd.f32 0.0, %v1081
    %v1083 = vpop.f32.mrb[0].mxu0
    %v1084 = vpop.f32.mrb[0].mxu0
    %v1085 = vpop.f32.mrb[0].mxu0
    %1086 = vdwg.mxu0
    %v1087 = vmul.f32 %v1082, 0.17677669
    %v1088 = vadd.f32 %v1087, %v81
    %v1089 = vsel %vm634, %v1088, -inf
    %1090 = vmax.xlane.f32.xlu0 %v1089
    %v1091 = vpop.xlane.xlu0 %1090
    %v1092 = vsub.f32 %v1088, %v1091
    %v1093 = vmul.f32 %v1092, 1.442695
    %v1094 = vpow.pop %v1093
    %v1095 = vsel %vm634, %v1094, 0.0
    %1096 = vadd.xlane.f32.xlu0 %v1095
    %v1097 = vpop.xlane.xlu0 %1096
    %v1098 = vrcp.pop %v1097
    %v1099 = vmul.f32 %v1094, %v1098
    %v1100 = vpack.c.bf16 %v1099, %v1099
    %v1101 = vpack.c.bf16 %v1034, %v1034
    %v1103 = vsel %vm634, %v1100, 0
    %v1106 = vsel %vm651, %v1101, 0
    %1108 = vmatprep.subr.bf16.mxu0 0
    %1109 = vmatpush1.bf16.msra.mxu0 %v1106
    %1110 = vmatprep.subr.bf16.mxu0 0
    %1111 = vmatpush1.bf16.msra.mxu0 0
    %1112 = vmatprep.subr.bf16.mxu0 0
    %1113 = vmatpush1.bf16.msra.mxu0 0
    %1114 = vmatprep.subr.bf16.mxu0 0
    %1115 = vmatpush1.bf16.msra.mxu0 0
    %1116 = vmatprep.subr.bf16.mxu0 0
    %1117 = vmatpush1.bf16.msra.mxu0 0
    %1118 = vmatprep.subr.bf16.mxu0 0
    %1119 = vmatpush1.bf16.msra.mxu0 0
    %1120 = vmatprep.subr.bf16.mxu0 0
    %1121 = vmatpush1.bf16.msra.mxu0 0
    %1122 = vmatprep.subr.bf16.mxu0 0
    %1123 = vmatpush1.bf16.msra.mxu0 0
    %1124 = vmatprep.subr.bf16.mxu0 0
    %1125 = vmatpush1.bf16.msra.mxu0 0
    %1126 = vmatprep.subr.bf16.mxu0 0
    %1127 = vmatpush1.bf16.msra.mxu0 0
    %1128 = vmatprep.subr.bf16.mxu0 0
    %1129 = vmatpush1.bf16.msra.mxu0 0
    %1130 = vmatprep.subr.bf16.mxu0 0
    %1131 = vmatpush1.bf16.msra.mxu0 0
    %1132 = vmatprep.subr.bf16.mxu0 0
    %1133 = vmatpush1.bf16.msra.mxu0 0
    %1134 = vmatprep.subr.bf16.mxu0 0
    %1135 = vmatpush1.bf16.msra.mxu0 0
    %1136 = vmatprep.subr.bf16.mxu0 0
    %1137 = vmatpush1.bf16.msra.mxu0 0
    %1138 = vmatprep.subr.bf16.mxu0 0
    %1139 = vmatpush1.bf16.msra.mxu0 0
    %1140 = vmatprep.mubr.bf16.mxu0 0
    %1141 = vmatmul.mubr.bf16.gmra.mrb[0].mxu0 %v1103
    %v1142 = vpop.f32.mrb[0].mxu0
    %v1143 = vadd.f32 0.0, %v1142
    %v1144 = vpop.f32.mrb[0].mxu0
    %v1145 = vpop.f32.mrb[0].mxu0
    %v1146 = vpop.f32.mrb[0].mxu0
    %1147 = vdwg.mxu0
    %v1148 = vpack.c.bf16 %v1143, %v1143
    %s1149 = scalar_lea.vmem %s15, 16
    %v1150 = vld [vmem:[%s1149] sm:$0xf]
    %v1151 = vld [vmem:[%s1149 + $0x4] sm:$0xf]
    %v1152 = vld [vmem:[%s1149 + $0x8] sm:$0xf]
    %v1153 = vld [vmem:[%s1149 + $0xc] sm:$0xf]
    %v1158 = vunpack.c.l.b16 %v1150
    %v1159 = vunpack.c.l.b16 %v1151
    %v1160 = vunpack.c.l.b16 %v1152
    %v1161 = vunpack.c.l.b16 %v1153
    %v1162 = vpack.c.b16 %v1159, %v1158
    %v1163 = vpack.c.b16 %v1161, %v1160
    %v1167 = vsel %vm585, %v1148, 0
    %1169 = vmatprep.subr.bf16.mxu0 0
    %1170 = vmatpush1.bf16.msra.mxu0 %v1162
    %1171 = vmatprep.subr.bf16.mxu0 0
    %1172 = vmatpush1.bf16.msra.mxu0 %v1163
    %1173 = vmatprep.subr.bf16.mxu0 0
    %1174 = vmatpush1.bf16.msra.mxu0 0
    %1175 = vmatprep.subr.bf16.mxu0 0
    %1176 = vmatpush1.bf16.msra.mxu0 0
    %1177 = vmatprep.subr.bf16.mxu0 0
    %1178 = vmatpush1.bf16.msra.mxu0 0
    %1179 = vmatprep.subr.bf16.mxu0 0
    %1180 = vmatpush1.bf16.msra.mxu0 0
    %1181 = vmatprep.subr.bf16.mxu0 0
    %1182 = vmatpush1.bf16.msra.mxu0 0
    %1183 = vmatprep.subr.bf16.mxu0 0
    %1184 = vmatpush1.bf16.msra.mxu0 0
    %1185 = vmatprep.subr.bf16.mxu0 0
    %1186 = vmatpush1.bf16.msra.mxu0 0
    %1187 = vmatprep.subr.bf16.mxu0 0
    %1188 = vmatpush1.bf16.msra.mxu0 0
    %1189 = vmatprep.subr.bf16.mxu0 0
    %1190 = vmatpush1.bf16.msra.mxu0 0
    %1191 = vmatprep.subr.bf16.mxu0 0
    %1192 = vmatpush1.bf16.msra.mxu0 0
    %1193 = vmatprep.subr.bf16.mxu0 0
    %1194 = vmatpush1.bf16.msra.mxu0 0
    %1195 = vmatprep.subr.bf16.mxu0 0
    %1196 = vmatpush1.bf16.msra.mxu0 0
    %1197 = vmatprep.subr.bf16.mxu0 0
    %1198 = vmatpush1.bf16.msra.mxu0 0
    %1199 = vmatprep.subr.bf16.mxu0 0
    %1200 = vmatpush1.bf16.msra.mxu0 0
    %1201 = vmatprep.mubr.bf16.mxu0 0
    %1202 = vmatmul.mubr.bf16.gmra.mrb[0].mxu0 %v1167
    %v1203 = vpop.f32.mrb[0].mxu0
    %v1204 = vadd.f32 0.0, %v1203
    %v1205 = vpop.f32.mrb[0].mxu0
    %v1206 = vpop.f32.mrb[0].mxu0
    %v1207 = vpop.f32.mrb[0].mxu0
    %1208 = vdwg.mxu0
    %v1213 = vunpack.c.l.b16 %v696
    %v1214 = vunpack.c.l.b16 %v697
    %v1215 = vunpack.c.l.b16 %v698
    %v1216 = vunpack.c.l.b16 %v699
    %v1217 = vpack.c.b16 %v1214, %v1213
    %v1218 = vpack.c.b16 %v1216, %v1215
    %v1222 = vsel %vm585, %v695, 0
    %1224 = vmatprep.subr.bf16.mxu0 0
    %1225 = vmatpush1.bf16.msra.mxu0 %v1217
    %1226 = vmatprep.subr.bf16.mxu0 0
    %1227 = vmatpush1.bf16.msra.mxu0 %v1218
    %1228 = vmatprep.subr.bf16.mxu0 0
    %1229 = vmatpush1.bf16.msra.mxu0 0
    %1230 = vmatprep.subr.bf16.mxu0 0
    %1231 = vmatpush1.bf16.msra.mxu0 0
    %1232 = vmatprep.subr.bf16.mxu0 0
    %1233 = vmatpush1.bf16.msra.mxu0 0
    %1234 = vmatprep.subr.bf16.mxu0 0
    %1235 = vmatpush1.bf16.msra.mxu0 0
    %1236 = vmatprep.subr.bf16.mxu0 0
    %1237 = vmatpush1.bf16.msra.mxu0 0
    %1238 = vmatprep.subr.bf16.mxu0 0
    %1239 = vmatpush1.bf16.msra.mxu0 0
    %1240 = vmatprep.subr.bf16.mxu0 0
    %1241 = vmatpush1.bf16.msra.mxu0 0
    %1242 = vmatprep.subr.bf16.mxu0 0
    %1243 = vmatpush1.bf16.msra.mxu0 0
    %1244 = vmatprep.subr.bf16.mxu0 0
    %1245 = vmatpush1.bf16.msra.mxu0 0
    %1246 = vmatprep.subr.bf16.mxu0 0
    %1247 = vmatpush1.bf16.msra.mxu0 0
    %1248 = vmatprep.subr.bf16.mxu0 0
    %1249 = vmatpush1.bf16.msra.mxu0 0
    %1250 = vmatprep.subr.bf16.mxu0 0
    %1251 = vmatpush1.bf16.msra.mxu0 0
    %1252 = vmatprep.subr.bf16.mxu0 0
    %1253 = vmatpush1.bf16.msra.mxu0 0
    %1254 = vmatprep.subr.bf16.mxu0 0
    %1255 = vmatpush1.bf16.msra.mxu0 0
    %1256 = vmatprep.mubr.bf16.mxu0 0
    %1257 = vmatmul.mubr.bf16.gmra.mrb[0].mxu0 %v1222
    %v1258 = vpop.f32.mrb[0].mxu0
    %v1259 = vadd.f32 %v1204, %v1258
    %v1260 = vpop.f32.mrb[0].mxu0
    %v1261 = vpop.f32.mrb[0].mxu0
    %v1262 = vpop.f32.mrb[0].mxu0
    %1263 = vdwg.mxu0
    %s1264 = scalar_lea.vmem %s9, 128
    %v1265 = vld [vmem:[%s1264] sm:$0xf]
    %v1266 = vld [vmem:[%s1264 + $0x4] sm:$0xf]
    %v1267 = vld [vmem:[%s1264 + $0x8] sm:$0xf]
    %v1268 = vld [vmem:[%s1264 + $0xc] sm:$0xf]
    %v1269 = vld [vmem:[%s1264 + $0x10] sm:$0xf]
    %v1270 = vld [vmem:[%s1264 + $0x14] sm:$0xf]
    %v1271 = vld [vmem:[%s1264 + $0x18] sm:$0xf]
    %v1272 = vld [vmem:[%s1264 + $0x1c] sm:$0xf]
    %v1273 = vld [vmem:[%s1264 + $0x20] sm:$0xf]
    %v1274 = vld [vmem:[%s1264 + $0x24] sm:$0xf]
    %v1275 = vld [vmem:[%s1264 + $0x28] sm:$0xf]
    %v1276 = vld [vmem:[%s1264 + $0x2c] sm:$0xf]
    %v1277 = vld [vmem:[%s1264 + $0x30] sm:$0xf]
    %v1278 = vld [vmem:[%s1264 + $0x34] sm:$0xf]
    %v1279 = vld [vmem:[%s1264 + $0x38] sm:$0xf]
    %v1280 = vld [vmem:[%s1264 + $0x3c] sm:$0xf]
    %s1281 = scalar_lea.vmem %s12, 2
    %v1282 = vld [vmem:[%s1281] sm:$0x1]
    %v1284 = vlaneseq
    %v1285 = vshrl.u32 %v1284, 7
    %v1286 = vsub.s32 0, %v1285
    %v1287 = vrot.slane %v1282, %v1286
    %v1305 = vunpack.c.l.b16 %v1265
    %v1306 = vunpack.c.l.b16 %v1266
    %v1307 = vunpack.c.l.b16 %v1267
    %v1308 = vunpack.c.l.b16 %v1268
    %v1309 = vunpack.c.l.b16 %v1269
    %v1310 = vunpack.c.l.b16 %v1270
    %v1311 = vunpack.c.l.b16 %v1271
    %v1312 = vunpack.c.l.b16 %v1272
    %v1313 = vunpack.c.l.b16 %v1273
    %v1314 = vunpack.c.l.b16 %v1274
    %v1315 = vunpack.c.l.b16 %v1275
    %v1316 = vunpack.c.l.b16 %v1276
    %v1317 = vunpack.c.l.b16 %v1277
    %v1318 = vunpack.c.l.b16 %v1278
    %v1319 = vunpack.c.l.b16 %v1279
    %v1320 = vunpack.c.l.b16 %v1280
    %v1321 = vpack.c.b16 %v1306, %v1305
    %v1322 = vpack.c.b16 %v1308, %v1307
    %v1323 = vpack.c.b16 %v1310, %v1309
    %v1324 = vpack.c.b16 %v1312, %v1311
    %v1325 = vpack.c.b16 %v1314, %v1313
    %v1326 = vpack.c.b16 %v1316, %v1315
    %v1327 = vpack.c.b16 %v1318, %v1317
    %v1328 = vpack.c.b16 %v1320, %v1319
    %1337 = vmatprep.subr.bf16.mxu0 0
    %1338 = vmatpush1.bf16.msra.mxu0 %v1321
    %1339 = vmatprep.subr.bf16.mxu0 0
    %1340 = vmatpush1.bf16.msra.mxu0 %v1322
    %1341 = vmatprep.subr.bf16.mxu0 0
    %1342 = vmatpush1.bf16.msra.mxu0 %v1323
    %1343 = vmatprep.subr.bf16.mxu0 0
    %1344 = vmatpush1.bf16.msra.mxu0 %v1324
    %1345 = vmatprep.subr.bf16.mxu0 0
    %1346 = vmatpush1.bf16.msra.mxu0 %v1325
    %1347 = vmatprep.subr.bf16.mxu0 0
    %1348 = vmatpush1.bf16.msra.mxu0 %v1326
    %1349 = vmatprep.subr.bf16.mxu0 0
    %1350 = vmatpush1.bf16.msra.mxu0 %v1327
    %1351 = vmatprep.subr.bf16.mxu0 0
    %1352 = vmatpush1.bf16.msra.mxu0 %v1328
    %1353 = vmatprep.subr.bf16.mxu0 0
    %1354 = vmatpush1.bf16.msra.mxu0 0
    %1355 = vmatprep.subr.bf16.mxu0 0
    %1356 = vmatpush1.bf16.msra.mxu0 0
    %1357 = vmatprep.subr.bf16.mxu0 0
    %1358 = vmatpush1.bf16.msra.mxu0 0
    %1359 = vmatprep.subr.bf16.mxu0 0
    %1360 = vmatpush1.bf16.msra.mxu0 0
    %1361 = vmatprep.subr.bf16.mxu0 0
    %1362 = vmatpush1.bf16.msra.mxu0 0
    %1363 = vmatprep.subr.bf16.mxu0 0
    %1364 = vmatpush1.bf16.msra.mxu0 0
    %1365 = vmatprep.subr.bf16.mxu0 0
    %1366 = vmatpush1.bf16.msra.mxu0 0
    %1367 = vmatprep.subr.bf16.mxu0 0
    %1368 = vmatpush1.bf16.msra.mxu0 0
    %1369 = vmatprep.mubr.bf16.mxu0 0
    %1370 = vmatmul.mubr.bf16.gmra.mrb[0].mxu0 %v249
    %v1371 = vpop.f32.mrb[0].mxu0
    %v1372 = vadd.f32 %v1287, %v1371
    %v1373 = vpop.f32.mrb[0].mxu0
    %v1374 = vpop.f32.mrb[0].mxu0
    %v1375 = vpop.f32.mrb[0].mxu0
    %1376 = vdwg.mxu0
    %s1377 = scalar_lea.vmem %s10, 128
    %v1378 = vld [vmem:[%s1377] sm:$0xf]
    %v1379 = vld [vmem:[%s1377 + $0x4] sm:$0xf]
    %v1380 = vld [vmem:[%s1377 + $0x8] sm:$0xf]
    %v1381 = vld [vmem:[%s1377 + $0xc] sm:$0xf]
    %v1382 = vld [vmem:[%s1377 + $0x10] sm:$0xf]
    %v1383 = vld [vmem:[%s1377 + $0x14] sm:$0xf]
    %v1384 = vld [vmem:[%s1377 + $0x18] sm:$0xf]
    %v1385 = vld [vmem:[%s1377 + $0x1c] sm:$0xf]
    %v1386 = vld [vmem:[%s1377 + $0x20] sm:$0xf]
    %v1387 = vld [vmem:[%s1377 + $0x24] sm:$0xf]
    %v1388 = vld [vmem:[%s1377 + $0x28] sm:$0xf]
    %v1389 = vld [vmem:[%s1377 + $0x2c] sm:$0xf]
    %v1390 = vld [vmem:[%s1377 + $0x30] sm:$0xf]
    %v1391 = vld [vmem:[%s1377 + $0x34] sm:$0xf]
    %v1392 = vld [vmem:[%s1377 + $0x38] sm:$0xf]
    %v1393 = vld [vmem:[%s1377 + $0x3c] sm:$0xf]
    %s1394 = scalar_lea.vmem %s13, 2
    %v1395 = vld [vmem:[%s1394] sm:$0x1]
    %v1397 = vlaneseq
    %v1398 = vshrl.u32 %v1397, 7
    %v1399 = vsub.s32 0, %v1398
    %v1400 = vrot.slane %v1395, %v1399
    %v1418 = vunpack.c.l.b16 %v1378
    %v1419 = vunpack.c.l.b16 %v1379
    %v1420 = vunpack.c.l.b16 %v1380
    %v1421 = vunpack.c.l.b16 %v1381
    %v1422 = vunpack.c.l.b16 %v1382
    %v1423 = vunpack.c.l.b16 %v1383
    %v1424 = vunpack.c.l.b16 %v1384
    %v1425 = vunpack.c.l.b16 %v1385
    %v1426 = vunpack.c.l.b16 %v1386
    %v1427 = vunpack.c.l.b16 %v1387
    %v1428 = vunpack.c.l.b16 %v1388
    %v1429 = vunpack.c.l.b16 %v1389
    %v1430 = vunpack.c.l.b16 %v1390
    %v1431 = vunpack.c.l.b16 %v1391
    %v1432 = vunpack.c.l.b16 %v1392
    %v1433 = vunpack.c.l.b16 %v1393
    %v1434 = vpack.c.b16 %v1419, %v1418
    %v1435 = vpack.c.b16 %v1421, %v1420
    %v1436 = vpack.c.b16 %v1423, %v1422
    %v1437 = vpack.c.b16 %v1425, %v1424
    %v1438 = vpack.c.b16 %v1427, %v1426
    %v1439 = vpack.c.b16 %v1429, %v1428
    %v1440 = vpack.c.b16 %v1431, %v1430
    %v1441 = vpack.c.b16 %v1433, %v1432
    %1450 = vmatprep.subr.bf16.mxu0 0
    %1451 = vmatpush1.bf16.msra.mxu0 %v1434
    %1452 = vmatprep.subr.bf16.mxu0 0
    %1453 = vmatpush1.bf16.msra.mxu0 %v1435
    %1454 = vmatprep.subr.bf16.mxu0 0
    %1455 = vmatpush1.bf16.msra.mxu0 %v1436
    %1456 = vmatprep.subr.bf16.mxu0 0
    %1457 = vmatpush1.bf16.msra.mxu0 %v1437
    %1458 = vmatprep.subr.bf16.mxu0 0
    %1459 = vmatpush1.bf16.msra.mxu0 %v1438
    %1460 = vmatprep.subr.bf16.mxu0 0
    %1461 = vmatpush1.bf16.msra.mxu0 %v1439
    %1462 = vmatprep.subr.bf16.mxu0 0
    %1463 = vmatpush1.bf16.msra.mxu0 %v1440
    %1464 = vmatprep.subr.bf16.mxu0 0
    %1465 = vmatpush1.bf16.msra.mxu0 %v1441
    %1466 = vmatprep.subr.bf16.mxu0 0
    %1467 = vmatpush1.bf16.msra.mxu0 0
    %1468 = vmatprep.subr.bf16.mxu0 0
    %1469 = vmatpush1.bf16.msra.mxu0 0
    %1470 = vmatprep.subr.bf16.mxu0 0
    %1471 = vmatpush1.bf16.msra.mxu0 0
    %1472 = vmatprep.subr.bf16.mxu0 0
    %1473 = vmatpush1.bf16.msra.mxu0 0
    %1474 = vmatprep.subr.bf16.mxu0 0
    %1475 = vmatpush1.bf16.msra.mxu0 0
    %1476 = vmatprep.subr.bf16.mxu0 0
    %1477 = vmatpush1.bf16.msra.mxu0 0
    %1478 = vmatprep.subr.bf16.mxu0 0
    %1479 = vmatpush1.bf16.msra.mxu0 0
    %1480 = vmatprep.subr.bf16.mxu0 0
    %1481 = vmatpush1.bf16.msra.mxu0 0
    %1482 = vmatprep.mubr.bf16.mxu0 0
    %1483 = vmatmul.mubr.bf16.gmra.mrb[0].mxu0 %v249
    %v1484 = vpop.f32.mrb[0].mxu0
    %v1485 = vadd.f32 %v1400, %v1484
    %v1486 = vpop.f32.mrb[0].mxu0
    %v1487 = vpop.f32.mrb[0].mxu0
    %v1488 = vpop.f32.mrb[0].mxu0
    %1489 = vdwg.mxu0
    %s1490 = scalar_lea.vmem %s11, 128
    %v1491 = vld [vmem:[%s1490] sm:$0xf]
    %v1492 = vld [vmem:[%s1490 + $0x4] sm:$0xf]
    %v1493 = vld [vmem:[%s1490 + $0x8] sm:$0xf]
    %v1494 = vld [vmem:[%s1490 + $0xc] sm:$0xf]
    %v1495 = vld [vmem:[%s1490 + $0x10] sm:$0xf]
    %v1496 = vld [vmem:[%s1490 + $0x14] sm:$0xf]
    %v1497 = vld [vmem:[%s1490 + $0x18] sm:$0xf]
    %v1498 = vld [vmem:[%s1490 + $0x1c] sm:$0xf]
    %v1499 = vld [vmem:[%s1490 + $0x20] sm:$0xf]
    %v1500 = vld [vmem:[%s1490 + $0x24] sm:$0xf]
    %v1501 = vld [vmem:[%s1490 + $0x28] sm:$0xf]
    %v1502 = vld [vmem:[%s1490 + $0x2c] sm:$0xf]
    %v1503 = vld [vmem:[%s1490 + $0x30] sm:$0xf]
    %v1504 = vld [vmem:[%s1490 + $0x34] sm:$0xf]
    %v1505 = vld [vmem:[%s1490 + $0x38] sm:$0xf]
    %v1506 = vld [vmem:[%s1490 + $0x3c] sm:$0xf]
    %s1507 = scalar_lea.vmem %s14, 2
    %v1508 = vld [vmem:[%s1507] sm:$0x1]
    %v1510 = vlaneseq
    %v1511 = vshrl.u32 %v1510, 7
    %v1512 = vsub.s32 0, %v1511
    %v1513 = vrot.slane %v1508, %v1512
    %v1531 = vunpack.c.l.b16 %v1491
    %v1532 = vunpack.c.l.b16 %v1492
    %v1533 = vunpack.c.l.b16 %v1493
    %v1534 = vunpack.c.l.b16 %v1494
    %v1535 = vunpack.c.l.b16 %v1495
    %v1536 = vunpack.c.l.b16 %v1496
    %v1537 = vunpack.c.l.b16 %v1497
    %v1538 = vunpack.c.l.b16 %v1498
    %v1539 = vunpack.c.l.b16 %v1499
    %v1540 = vunpack.c.l.b16 %v1500
    %v1541 = vunpack.c.l.b16 %v1501
    %v1542 = vunpack.c.l.b16 %v1502
    %v1543 = vunpack.c.l.b16 %v1503
    %v1544 = vunpack.c.l.b16 %v1504
    %v1545 = vunpack.c.l.b16 %v1505
    %v1546 = vunpack.c.l.b16 %v1506
    %v1547 = vpack.c.b16 %v1532, %v1531
    %v1548 = vpack.c.b16 %v1534, %v1533
    %v1549 = vpack.c.b16 %v1536, %v1535
    %v1550 = vpack.c.b16 %v1538, %v1537
    %v1551 = vpack.c.b16 %v1540, %v1539
    %v1552 = vpack.c.b16 %v1542, %v1541
    %v1553 = vpack.c.b16 %v1544, %v1543
    %v1554 = vpack.c.b16 %v1546, %v1545
    %1563 = vmatprep.subr.bf16.mxu0 0
    %1564 = vmatpush1.bf16.msra.mxu0 %v1547
    %1565 = vmatprep.subr.bf16.mxu0 0
    %1566 = vmatpush1.bf16.msra.mxu0 %v1548
    %1567 = vmatprep.subr.bf16.mxu0 0
    %1568 = vmatpush1.bf16.msra.mxu0 %v1549
    %1569 = vmatprep.subr.bf16.mxu0 0
    %1570 = vmatpush1.bf16.msra.mxu0 %v1550
    %1571 = vmatprep.subr.bf16.mxu0 0
    %1572 = vmatpush1.bf16.msra.mxu0 %v1551
    %1573 = vmatprep.subr.bf16.mxu0 0
    %1574 = vmatpush1.bf16.msra.mxu0 %v1552
    %1575 = vmatprep.subr.bf16.mxu0 0
    %1576 = vmatpush1.bf16.msra.mxu0 %v1553
    %1577 = vmatprep.subr.bf16.mxu0 0
    %1578 = vmatpush1.bf16.msra.mxu0 %v1554
    %1579 = vmatprep.subr.bf16.mxu0 0
    %1580 = vmatpush1.bf16.msra.mxu0 0
    %1581 = vmatprep.subr.bf16.mxu0 0
    %1582 = vmatpush1.bf16.msra.mxu0 0
    %1583 = vmatprep.subr.bf16.mxu0 0
    %1584 = vmatpush1.bf16.msra.mxu0 0
    %1585 = vmatprep.subr.bf16.mxu0 0
    %1586 = vmatpush1.bf16.msra.mxu0 0
    %1587 = vmatprep.subr.bf16.mxu0 0
    %1588 = vmatpush1.bf16.msra.mxu0 0
    %1589 = vmatprep.subr.bf16.mxu0 0
    %1590 = vmatpush1.bf16.msra.mxu0 0
    %1591 = vmatprep.subr.bf16.mxu0 0
    %1592 = vmatpush1.bf16.msra.mxu0 0
    %1593 = vmatprep.subr.bf16.mxu0 0
    %1594 = vmatpush1.bf16.msra.mxu0 0
    %1595 = vmatprep.mubr.bf16.mxu0 0
    %1596 = vmatmul.mubr.bf16.gmra.mrb[0].mxu0 %v249
    %v1597 = vpop.f32.mrb[0].mxu0
    %v1598 = vadd.f32 %v1513, %v1597
    %v1599 = vpop.f32.mrb[0].mxu0
    %v1600 = vpop.f32.mrb[0].mxu0
    %v1601 = vpop.f32.mrb[0].mxu0
    %1602 = vdwg.mxu0
    %v1603 = vpack.c.bf16 %v1372, %v1372
    %v1604 = vpack.c.bf16 %v1485, %v1485
    %v1606 = vsel %vm585, %v1603, 0
    %v1609 = vsel %vm585, %v1604, 0
    %1611 = vmatprep.subr.bf16.mxu0 0
    %1612 = vmatpush1.bf16.xpose.msra.mxu0 %v1609
    %1613 = vmatprep.subr.bf16.mxu0 0
    %1614 = vmatpush1.bf16.xpose.msra.mxu0 0
    %1615 = vmatprep.subr.bf16.mxu0 0
    %1616 = vmatpush1.bf16.xpose.msra.mxu0 0
    %1617 = vmatprep.subr.bf16.mxu0 0
    %1618 = vmatpush1.bf16.xpose.msra.mxu0 0
    %1619 = vmatprep.subr.bf16.mxu0 0
    %1620 = vmatpush1.bf16.xpose.msra.mxu0 0
    %1621 = vmatprep.subr.bf16.mxu0 0
    %1622 = vmatpush1.bf16.xpose.msra.mxu0 0
    %1623 = vmatprep.subr.bf16.mxu0 0
    %1624 = vmatpush1.bf16.xpose.msra.mxu0 0
    %1625 = vmatprep.subr.bf16.mxu0 0
    %1626 = vmatpush1.bf16.xpose.msra.mxu0 0
    %1627 = vmatprep.subr.bf16.mxu0 0
    %1628 = vmatpush1.bf16.xpose.msra.mxu0 0
    %1629 = vmatprep.subr.bf16.mxu0 0
    %1630 = vmatpush1.bf16.xpose.msra.mxu0 0
    %1631 = vmatprep.subr.bf16.mxu0 0
    %1632 = vmatpush1.bf16.xpose.msra.mxu0 0
    %1633 = vmatprep.subr.bf16.mxu0 0
    %1634 = vmatpush1.bf16.xpose.msra.mxu0 0
    %1635 = vmatprep.subr.bf16.mxu0 0
    %1636 = vmatpush1.bf16.xpose.msra.mxu0 0
    %1637 = vmatprep.subr.bf16.mxu0 0
    %1638 = vmatpush1.bf16.xpose.msra.mxu0 0
    %1639 = vmatprep.subr.bf16.mxu0 0
    %1640 = vmatpush1.bf16.xpose.msra.mxu0 0
    %1641 = vmatprep.subr.bf16.mxu0 0
    %1642 = vmatpush1.bf16.xpose.msra.mxu0 0
    %1643 = vmatprep.mubr.bf16.mxu0 0
    %1644 = vmatmul.mubr.bf16.gmra.mrb[0].mxu0 %v1606
    %v1645 = vpop.f32.mrb[0].mxu0
    %v1646 = vadd.f32 0.0, %v1645
    %v1647 = vpop.f32.mrb[0].mxu0
    %v1648 = vpop.f32.mrb[0].mxu0
    %v1649 = vpop.f32.mrb[0].mxu0
    %1650 = vdwg.mxu0
    %v1651 = vmul.f32 %v1646, 0.17677669
    %v1652 = vadd.f32 %v1651, %v81
    %v1653 = vsel %vm634, %v1652, -inf
    %1654 = vmax.xlane.f32.xlu0 %v1653
    %v1655 = vpop.xlane.xlu0 %1654
    %v1656 = vsub.f32 %v1652, %v1655
    %v1657 = vmul.f32 %v1656, 1.442695
    %v1658 = vpow.pop %v1657
    %v1659 = vsel %vm634, %v1658, 0.0
    %1660 = vadd.xlane.f32.xlu0 %v1659
    %v1661 = vpop.xlane.xlu0 %1660
    %v1662 = vrcp.pop %v1661
    %v1663 = vmul.f32 %v1658, %v1662
    %v1664 = vpack.c.bf16 %v1663, %v1663
    %v1665 = vpack.c.bf16 %v1598, %v1598
    %v1667 = vsel %vm634, %v1664, 0
    %v1670 = vsel %vm651, %v1665, 0
    %1672 = vmatprep.subr.bf16.mxu0 0
    %1673 = vmatpush1.bf16.msra.mxu0 %v1670
    %1674 = vmatprep.subr.bf16.mxu0 0
    %1675 = vmatpush1.bf16.msra.mxu0 0
    %1676 = vmatprep.subr.bf16.mxu0 0
    %1677 = vmatpush1.bf16.msra.mxu0 0
    %1678 = vmatprep.subr.bf16.mxu0 0
    %1679 = vmatpush1.bf16.msra.mxu0 0
    %1680 = vmatprep.subr.bf16.mxu0 0
    %1681 = vmatpush1.bf16.msra.mxu0 0
    %1682 = vmatprep.subr.bf16.mxu0 0
    %1683 = vmatpush1.bf16.msra.mxu0 0
    %1684 = vmatprep.subr.bf16.mxu0 0
    %1685 = vmatpush1.bf16.msra.mxu0 0
    %1686 = vmatprep.subr.bf16.mxu0 0
    %1687 = vmatpush1.bf16.msra.mxu0 0
    %1688 = vmatprep.subr.bf16.mxu0 0
    %1689 = vmatpush1.bf16.msra.mxu0 0
    %1690 = vmatprep.subr.bf16.mxu0 0
    %1691 = vmatpush1.bf16.msra.mxu0 0
    %1692 = vmatprep.subr.bf16.mxu0 0
    %1693 = vmatpush1.bf16.msra.mxu0 0
    %1694 = vmatprep.subr.bf16.mxu0 0
    %1695 = vmatpush1.bf16.msra.mxu0 0
    %1696 = vmatprep.subr.bf16.mxu0 0
    %1697 = vmatpush1.bf16.msra.mxu0 0
    %1698 = vmatprep.subr.bf16.mxu0 0
    %1699 = vmatpush1.bf16.msra.mxu0 0
    %1700 = vmatprep.subr.bf16.mxu0 0
    %1701 = vmatpush1.bf16.msra.mxu0 0
    %1702 = vmatprep.subr.bf16.mxu0 0
    %1703 = vmatpush1.bf16.msra.mxu0 0
    %1704 = vmatprep.mubr.bf16.mxu0 0
    %1705 = vmatmul.mubr.bf16.gmra.mrb[0].mxu0 %v1667
    %v1706 = vpop.f32.mrb[0].mxu0
    %v1707 = vadd.f32 0.0, %v1706
    %v1708 = vpop.f32.mrb[0].mxu0
    %v1709 = vpop.f32.mrb[0].mxu0
    %v1710 = vpop.f32.mrb[0].mxu0
    %1711 = vdwg.mxu0
    %v1712 = vpack.c.bf16 %v1707, %v1707
    %s1713 = scalar_lea.vmem %s15, 32
    %v1714 = vld [vmem:[%s1713] sm:$0xf]
    %v1715 = vld [vmem:[%s1713 + $0x4] sm:$0xf]
    %v1716 = vld [vmem:[%s1713 + $0x8] sm:$0xf]
    %v1717 = vld [vmem:[%s1713 + $0xc] sm:$0xf]
    %v1722 = vunpack.c.l.b16 %v1714
    %v1723 = vunpack.c.l.b16 %v1715
    %v1724 = vunpack.c.l.b16 %v1716
    %v1725 = vunpack.c.l.b16 %v1717
    %v1726 = vpack.c.b16 %v1723, %v1722
    %v1727 = vpack.c.b16 %v1725, %v1724
    %v1731 = vsel %vm585, %v1712, 0
    %1733 = vmatprep.subr.bf16.mxu0 0
    %1734 = vmatpush1.bf16.msra.mxu0 %v1726
    %1735 = vmatprep.subr.bf16.mxu0 0
    %1736 = vmatpush1.bf16.msra.mxu0 %v1727
    %1737 = vmatprep.subr.bf16.mxu0 0
    %1738 = vmatpush1.bf16.msra.mxu0 0
    %1739 = vmatprep.subr.bf16.mxu0 0
    %1740 = vmatpush1.bf16.msra.mxu0 0
    %1741 = vmatprep.subr.bf16.mxu0 0
    %1742 = vmatpush1.bf16.msra.mxu0 0
    %1743 = vmatprep.subr.bf16.mxu0 0
    %1744 = vmatpush1.bf16.msra.mxu0 0
    %1745 = vmatprep.subr.bf16.mxu0 0
    %1746 = vmatpush1.bf16.msra.mxu0 0
    %1747 = vmatprep.subr.bf16.mxu0 0
    %1748 = vmatpush1.bf16.msra.mxu0 0
    %1749 = vmatprep.subr.bf16.mxu0 0
    %1750 = vmatpush1.bf16.msra.mxu0 0
    %1751 = vmatprep.subr.bf16.mxu0 0
    %1752 = vmatpush1.bf16.msra.mxu0 0
    %1753 = vmatprep.subr.bf16.mxu0 0
    %1754 = vmatpush1.bf16.msra.mxu0 0
    %1755 = vmatprep.subr.bf16.mxu0 0
    %1756 = vmatpush1.bf16.msra.mxu0 0
    %1757 = vmatprep.subr.bf16.mxu0 0
    %1758 = vmatpush1.bf16.msra.mxu0 0
    %1759 = vmatprep.subr.bf16.mxu0 0
    %1760 = vmatpush1.bf16.msra.mxu0 0
    %1761 = vmatprep.subr.bf16.mxu0 0
    %1762 = vmatpush1.bf16.msra.mxu0 0
    %1763 = vmatprep.subr.bf16.mxu0 0
    %1764 = vmatpush1.bf16.msra.mxu0 0
    %1765 = vmatprep.mubr.bf16.mxu0 0
    %1766 = vmatmul.mubr.bf16.gmra.mrb[0].mxu0 %v1731
    %v1767 = vpop.f32.mrb[0].mxu0
    %v1768 = vadd.f32 0.0, %v1767
    %v1769 = vpop.f32.mrb[0].mxu0
    %v1770 = vpop.f32.mrb[0].mxu0
    %v1771 = vpop.f32.mrb[0].mxu0
    %1772 = vdwg.mxu0
    %v1773 = vadd.f32 %v1259, %v1768
    %s1774 = scalar_lea.vmem %s9, 192
    %v1775 = vld [vmem:[%s1774] sm:$0xf]
    %v1776 = vld [vmem:[%s1774 + $0x4] sm:$0xf]
    %v1777 = vld [vmem:[%s1774 + $0x8] sm:$0xf]
    %v1778 = vld [vmem:[%s1774 + $0xc] sm:$0xf]
    %v1779 = vld [vmem:[%s1774 + $0x10] sm:$0xf]
    %v1780 = vld [vmem:[%s1774 + $0x14] sm:$0xf]
    %v1781 = vld [vmem:[%s1774 + $0x18] sm:$0xf]
    %v1782 = vld [vmem:[%s1774 + $0x1c] sm:$0xf]
    %v1783 = vld [vmem:[%s1774 + $0x20] sm:$0xf]
    %v1784 = vld [vmem:[%s1774 + $0x24] sm:$0xf]
    %v1785 = vld [vmem:[%s1774 + $0x28] sm:$0xf]
    %v1786 = vld [vmem:[%s1774 + $0x2c] sm:$0xf]
    %v1787 = vld [vmem:[%s1774 + $0x30] sm:$0xf]
    %v1788 = vld [vmem:[%s1774 + $0x34] sm:$0xf]
    %v1789 = vld [vmem:[%s1774 + $0x38] sm:$0xf]
    %v1790 = vld [vmem:[%s1774 + $0x3c] sm:$0xf]
    %s1791 = scalar_lea.vmem %s12, 3
    %v1792 = vld [vmem:[%s1791] sm:$0x1]
    %v1794 = vlaneseq
    %v1795 = vshrl.u32 %v1794, 7
    %v1796 = vsub.s32 0, %v1795
    %v1797 = vrot.slane %v1792, %v1796
    %v1815 = vunpack.c.l.b16 %v1775
    %v1816 = vunpack.c.l.b16 %v1776
    %v1817 = vunpack.c.l.b16 %v1777
    %v1818 = vunpack.c.l.b16 %v1778
    %v1819 = vunpack.c.l.b16 %v1779
    %v1820 = vunpack.c.l.b16 %v1780
    %v1821 = vunpack.c.l.b16 %v1781
    %v1822 = vunpack.c.l.b16 %v1782
    %v1823 = vunpack.c.l.b16 %v1783
    %v1824 = vunpack.c.l.b16 %v1784
    %v1825 = vunpack.c.l.b16 %v1785
    %v1826 = vunpack.c.l.b16 %v1786
    %v1827 = vunpack.c.l.b16 %v1787
    %v1828 = vunpack.c.l.b16 %v1788
    %v1829 = vunpack.c.l.b16 %v1789
    %v1830 = vunpack.c.l.b16 %v1790
    %v1831 = vpack.c.b16 %v1816, %v1815
    %v1832 = vpack.c.b16 %v1818, %v1817
    %v1833 = vpack.c.b16 %v1820, %v1819
    %v1834 = vpack.c.b16 %v1822, %v1821
    %v1835 = vpack.c.b16 %v1824, %v1823
    %v1836 = vpack.c.b16 %v1826, %v1825
    %v1837 = vpack.c.b16 %v1828, %v1827
    %v1838 = vpack.c.b16 %v1830, %v1829
    %1847 = vmatprep.subr.bf16.mxu0 0
    %1848 = vmatpush1.bf16.msra.mxu0 %v1831
    %1849 = vmatprep.subr.bf16.mxu0 0
    %1850 = vmatpush1.bf16.msra.mxu0 %v1832
    %1851 = vmatprep.subr.bf16.mxu0 0
    %1852 = vmatpush1.bf16.msra.mxu0 %v1833
    %1853 = vmatprep.subr.bf16.mxu0 0
    %1854 = vmatpush1.bf16.msra.mxu0 %v1834
    %1855 = vmatprep.subr.bf16.mxu0 0
    %1856 = vmatpush1.bf16.msra.mxu0 %v1835
    %1857 = vmatprep.subr.bf16.mxu0 0
    %1858 = vmatpush1.bf16.msra.mxu0 %v1836
    %1859 = vmatprep.subr.bf16.mxu0 0
    %1860 = vmatpush1.bf16.msra.mxu0 %v1837
    %1861 = vmatprep.subr.bf16.mxu0 0
    %1862 = vmatpush1.bf16.msra.mxu0 %v1838
    %1863 = vmatprep.subr.bf16.mxu0 0
    %1864 = vmatpush1.bf16.msra.mxu0 0
    %1865 = vmatprep.subr.bf16.mxu0 0
    %1866 = vmatpush1.bf16.msra.mxu0 0
    %1867 = vmatprep.subr.bf16.mxu0 0
    %1868 = vmatpush1.bf16.msra.mxu0 0
    %1869 = vmatprep.subr.bf16.mxu0 0
    %1870 = vmatpush1.bf16.msra.mxu0 0
    %1871 = vmatprep.subr.bf16.mxu0 0
    %1872 = vmatpush1.bf16.msra.mxu0 0
    %1873 = vmatprep.subr.bf16.mxu0 0
    %1874 = vmatpush1.bf16.msra.mxu0 0
    %1875 = vmatprep.subr.bf16.mxu0 0
    %1876 = vmatpush1.bf16.msra.mxu0 0
    %1877 = vmatprep.subr.bf16.mxu0 0
    %1878 = vmatpush1.bf16.msra.mxu0 0
    %1879 = vmatprep.mubr.bf16.mxu0 0
    %1880 = vmatmul.mubr.bf16.gmra.mrb[0].mxu0 %v249
    %v1881 = vpop.f32.mrb[0].mxu0
    %v1882 = vadd.f32 %v1797, %v1881
    %v1883 = vpop.f32.mrb[0].mxu0
    %v1884 = vpop.f32.mrb[0].mxu0
    %v1885 = vpop.f32.mrb[0].mxu0
    %1886 = vdwg.mxu0
    %s1887 = scalar_lea.vmem %s10, 192
    %v1888 = vld [vmem:[%s1887] sm:$0xf]
    %v1889 = vld [vmem:[%s1887 + $0x4] sm:$0xf]
    %v1890 = vld [vmem:[%s1887 + $0x8] sm:$0xf]
    %v1891 = vld [vmem:[%s1887 + $0xc] sm:$0xf]
    %v1892 = vld [vmem:[%s1887 + $0x10] sm:$0xf]
    %v1893 = vld [vmem:[%s1887 + $0x14] sm:$0xf]
    %v1894 = vld [vmem:[%s1887 + $0x18] sm:$0xf]
    %v1895 = vld [vmem:[%s1887 + $0x1c] sm:$0xf]
    %v1896 = vld [vmem:[%s1887 + $0x20] sm:$0xf]
    %v1897 = vld [vmem:[%s1887 + $0x24] sm:$0xf]
    %v1898 = vld [vmem:[%s1887 + $0x28] sm:$0xf]
    %v1899 = vld [vmem:[%s1887 + $0x2c] sm:$0xf]
    %v1900 = vld [vmem:[%s1887 + $0x30] sm:$0xf]
    %v1901 = vld [vmem:[%s1887 + $0x34] sm:$0xf]
    %v1902 = vld [vmem:[%s1887 + $0x38] sm:$0xf]
    %v1903 = vld [vmem:[%s1887 + $0x3c] sm:$0xf]
    %s1904 = scalar_lea.vmem %s13, 3
    %v1905 = vld [vmem:[%s1904] sm:$0x1]
    %v1907 = vlaneseq
    %v1908 = vshrl.u32 %v1907, 7
    %v1909 = vsub.s32 0, %v1908
    %v1910 = vrot.slane %v1905, %v1909
    %v1928 = vunpack.c.l.b16 %v1888
    %v1929 = vunpack.c.l.b16 %v1889
    %v1930 = vunpack.c.l.b16 %v1890
    %v1931 = vunpack.c.l.b16 %v1891
    %v1932 = vunpack.c.l.b16 %v1892
    %v1933 = vunpack.c.l.b16 %v1893
    %v1934 = vunpack.c.l.b16 %v1894
    %v1935 = vunpack.c.l.b16 %v1895
    %v1936 = vunpack.c.l.b16 %v1896
    %v1937 = vunpack.c.l.b16 %v1897
    %v1938 = vunpack.c.l.b16 %v1898
    %v1939 = vunpack.c.l.b16 %v1899
    %v1940 = vunpack.c.l.b16 %v1900
    %v1941 = vunpack.c.l.b16 %v1901
    %v1942 = vunpack.c.l.b16 %v1902
    %v1943 = vunpack.c.l.b16 %v1903
    %v1944 = vpack.c.b16 %v1929, %v1928
    %v1945 = vpack.c.b16 %v1931, %v1930
    %v1946 = vpack.c.b16 %v1933, %v1932
    %v1947 = vpack.c.b16 %v1935, %v1934
    %v1948 = vpack.c.b16 %v1937, %v1936
    %v1949 = vpack.c.b16 %v1939, %v1938
    %v1950 = vpack.c.b16 %v1941, %v1940
    %v1951 = vpack.c.b16 %v1943, %v1942
    %1960 = vmatprep.subr.bf16.mxu0 0
    %1961 = vmatpush1.bf16.msra.mxu0 %v1944
    %1962 = vmatprep.subr.bf16.mxu0 0
    %1963 = vmatpush1.bf16.msra.mxu0 %v1945
    %1964 = vmatprep.subr.bf16.mxu0 0
    %1965 = vmatpush1.bf16.msra.mxu0 %v1946
    %1966 = vmatprep.subr.bf16.mxu0 0
    %1967 = vmatpush1.bf16.msra.mxu0 %v1947
    %1968 = vmatprep.subr.bf16.mxu0 0
    %1969 = vmatpush1.bf16.msra.mxu0 %v1948
    %1970 = vmatprep.subr.bf16.mxu0 0
    %1971 = vmatpush1.bf16.msra.mxu0 %v1949
    %1972 = vmatprep.subr.bf16.mxu0 0
    %1973 = vmatpush1.bf16.msra.mxu0 %v1950
    %1974 = vmatprep.subr.bf16.mxu0 0
    %1975 = vmatpush1.bf16.msra.mxu0 %v1951
    %1976 = vmatprep.subr.bf16.mxu0 0
    %1977 = vmatpush1.bf16.msra.mxu0 0
    %1978 = vmatprep.subr.bf16.mxu0 0
    %1979 = vmatpush1.bf16.msra.mxu0 0
    %1980 = vmatprep.subr.bf16.mxu0 0
    %1981 = vmatpush1.bf16.msra.mxu0 0
    %1982 = vmatprep.subr.bf16.mxu0 0
    %1983 = vmatpush1.bf16.msra.mxu0 0
    %1984 = vmatprep.subr.bf16.mxu0 0
    %1985 = vmatpush1.bf16.msra.mxu0 0
    %1986 = vmatprep.subr.bf16.mxu0 0
    %1987 = vmatpush1.bf16.msra.mxu0 0
    %1988 = vmatprep.subr.bf16.mxu0 0
    %1989 = vmatpush1.bf16.msra.mxu0 0
    %1990 = vmatprep.subr.bf16.mxu0 0
    %1991 = vmatpush1.bf16.msra.mxu0 0
    %1992 = vmatprep.mubr.bf16.mxu0 0
    %1993 = vmatmul.mubr.bf16.gmra.mrb[0].mxu0 %v249
    %v1994 = vpop.f32.mrb[0].mxu0
    %v1995 = vadd.f32 %v1910, %v1994
    %v1996 = vpop.f32.mrb[0].mxu0
    %v1997 = vpop.f32.mrb[0].mxu0
    %v1998 = vpop.f32.mrb[0].mxu0
    %1999 = vdwg.mxu0
    %s2000 = scalar_lea.vmem %s11, 192
    %v2001 = vld [vmem:[%s2000] sm:$0xf]
    %v2002 = vld [vmem:[%s2000 + $0x4] sm:$0xf]
    %v2003 = vld [vmem:[%s2000 + $0x8] sm:$0xf]
    %v2004 = vld [vmem:[%s2000 + $0xc] sm:$0xf]
    %v2005 = vld [vmem:[%s2000 + $0x10] sm:$0xf]
    %v2006 = vld [vmem:[%s2000 + $0x14] sm:$0xf]
    %v2007 = vld [vmem:[%s2000 + $0x18] sm:$0xf]
    %v2008 = vld [vmem:[%s2000 + $0x1c] sm:$0xf]
    %v2009 = vld [vmem:[%s2000 + $0x20] sm:$0xf]
    %v2010 = vld [vmem:[%s2000 + $0x24] sm:$0xf]
    %v2011 = vld [vmem:[%s2000 + $0x28] sm:$0xf]
    %v2012 = vld [vmem:[%s2000 + $0x2c] sm:$0xf]
    %v2013 = vld [vmem:[%s2000 + $0x30] sm:$0xf]
    %v2014 = vld [vmem:[%s2000 + $0x34] sm:$0xf]
    %v2015 = vld [vmem:[%s2000 + $0x38] sm:$0xf]
    %v2016 = vld [vmem:[%s2000 + $0x3c] sm:$0xf]
    %s2017 = scalar_lea.vmem %s14, 3
    %v2018 = vld [vmem:[%s2017] sm:$0x1]
    %v2020 = vlaneseq
    %v2021 = vshrl.u32 %v2020, 7
    %v2022 = vsub.s32 0, %v2021
    %v2023 = vrot.slane %v2018, %v2022
    %v2041 = vunpack.c.l.b16 %v2001
    %v2042 = vunpack.c.l.b16 %v2002
    %v2043 = vunpack.c.l.b16 %v2003
    %v2044 = vunpack.c.l.b16 %v2004
    %v2045 = vunpack.c.l.b16 %v2005
    %v2046 = vunpack.c.l.b16 %v2006
    %v2047 = vunpack.c.l.b16 %v2007
    %v2048 = vunpack.c.l.b16 %v2008
    %v2049 = vunpack.c.l.b16 %v2009
    %v2050 = vunpack.c.l.b16 %v2010
    %v2051 = vunpack.c.l.b16 %v2011
    %v2052 = vunpack.c.l.b16 %v2012
    %v2053 = vunpack.c.l.b16 %v2013
    %v2054 = vunpack.c.l.b16 %v2014
    %v2055 = vunpack.c.l.b16 %v2015
    %v2056 = vunpack.c.l.b16 %v2016
    %v2057 = vpack.c.b16 %v2042, %v2041
    %v2058 = vpack.c.b16 %v2044, %v2043
    %v2059 = vpack.c.b16 %v2046, %v2045
    %v2060 = vpack.c.b16 %v2048, %v2047
    %v2061 = vpack.c.b16 %v2050, %v2049
    %v2062 = vpack.c.b16 %v2052, %v2051
    %v2063 = vpack.c.b16 %v2054, %v2053
    %v2064 = vpack.c.b16 %v2056, %v2055
    %2073 = vmatprep.subr.bf16.mxu0 0
    %2074 = vmatpush1.bf16.msra.mxu0 %v2057
    %2075 = vmatprep.subr.bf16.mxu0 0
    %2076 = vmatpush1.bf16.msra.mxu0 %v2058
    %2077 = vmatprep.subr.bf16.mxu0 0
    %2078 = vmatpush1.bf16.msra.mxu0 %v2059
    %2079 = vmatprep.subr.bf16.mxu0 0
    %2080 = vmatpush1.bf16.msra.mxu0 %v2060
    %2081 = vmatprep.subr.bf16.mxu0 0
    %2082 = vmatpush1.bf16.msra.mxu0 %v2061
    %2083 = vmatprep.subr.bf16.mxu0 0
    %2084 = vmatpush1.bf16.msra.mxu0 %v2062
    %2085 = vmatprep.subr.bf16.mxu0 0
    %2086 = vmatpush1.bf16.msra.mxu0 %v2063
    %2087 = vmatprep.subr.bf16.mxu0 0
    %2088 = vmatpush1.bf16.msra.mxu0 %v2064
    %2089 = vmatprep.subr.bf16.mxu0 0
    %2090 = vmatpush1.bf16.msra.mxu0 0
    %2091 = vmatprep.subr.bf16.mxu0 0
    %2092 = vmatpush1.bf16.msra.mxu0 0
    %2093 = vmatprep.subr.bf16.mxu0 0
    %2094 = vmatpush1.bf16.msra.mxu0 0
    %2095 = vmatprep.subr.bf16.mxu0 0
    %2096 = vmatpush1.bf16.msra.mxu0 0
    %2097 = vmatprep.subr.bf16.mxu0 0
    %2098 = vmatpush1.bf16.msra.mxu0 0
    %2099 = vmatprep.subr.bf16.mxu0 0
    %2100 = vmatpush1.bf16.msra.mxu0 0
    %2101 = vmatprep.subr.bf16.mxu0 0
    %2102 = vmatpush1.bf16.msra.mxu0 0
    %2103 = vmatprep.subr.bf16.mxu0 0
    %2104 = vmatpush1.bf16.msra.mxu0 0
    %2105 = vmatprep.mubr.bf16.mxu0 0
    %2106 = vmatmul.mubr.bf16.gmra.mrb[0].mxu0 %v249
    %v2107 = vpop.f32.mrb[0].mxu0
    %v2108 = vadd.f32 %v2023, %v2107
    %v2109 = vpop.f32.mrb[0].mxu0
    %v2110 = vpop.f32.mrb[0].mxu0
    %v2111 = vpop.f32.mrb[0].mxu0
    %2112 = vdwg.mxu0
    %v2113 = vpack.c.bf16 %v1882, %v1882
    %v2114 = vpack.c.bf16 %v1995, %v1995
    %v2116 = vsel %vm585, %v2113, 0
    %v2119 = vsel %vm585, %v2114, 0
    %2121 = vmatprep.subr.bf16.mxu0 0
    %2122 = vmatpush1.bf16.xpose.msra.mxu0 %v2119
    %2123 = vmatprep.subr.bf16.mxu0 0
    %2124 = vmatpush1.bf16.xpose.msra.mxu0 0
    %2125 = vmatprep.subr.bf16.mxu0 0
    %2126 = vmatpush1.bf16.xpose.msra.mxu0 0
    %2127 = vmatprep.subr.bf16.mxu0 0
    %2128 = vmatpush1.bf16.xpose.msra.mxu0 0
    %2129 = vmatprep.subr.bf16.mxu0 0
    %2130 = vmatpush1.bf16.xpose.msra.mxu0 0
    %2131 = vmatprep.subr.bf16.mxu0 0
    %2132 = vmatpush1.bf16.xpose.msra.mxu0 0
    %2133 = vmatprep.subr.bf16.mxu0 0
    %2134 = vmatpush1.bf16.xpose.msra.mxu0 0
    %2135 = vmatprep.subr.bf16.mxu0 0
    %2136 = vmatpush1.bf16.xpose.msra.mxu0 0
    %2137 = vmatprep.subr.bf16.mxu0 0
    %2138 = vmatpush1.bf16.xpose.msra.mxu0 0
    %2139 = vmatprep.subr.bf16.mxu0 0
    %2140 = vmatpush1.bf16.xpose.msra.mxu0 0
    %2141 = vmatprep.subr.bf16.mxu0 0
    %2142 = vmatpush1.bf16.xpose.msra.mxu0 0
    %2143 = vmatprep.subr.bf16.mxu0 0
    %2144 = vmatpush1.bf16.xpose.msra.mxu0 0
    %2145 = vmatprep.subr.bf16.mxu0 0
    %2146 = vmatpush1.bf16.xpose.msra.mxu0 0
    %2147 = vmatprep.subr.bf16.mxu0 0
    %2148 = vmatpush1.bf16.xpose.msra.mxu0 0
    %2149 = vmatprep.subr.bf16.mxu0 0
    %2150 = vmatpush1.bf16.xpose.msra.mxu0 0
    %2151 = vmatprep.subr.bf16.mxu0 0
    %2152 = vmatpush1.bf16.xpose.msra.mxu0 0
    %2153 = vmatprep.mubr.bf16.mxu0 0
    %2154 = vmatmul.mubr.bf16.gmra.mrb[0].mxu0 %v2116
    %v2155 = vpop.f32.mrb[0].mxu0
    %v2156 = vadd.f32 0.0, %v2155
    %v2157 = vpop.f32.mrb[0].mxu0
    %v2158 = vpop.f32.mrb[0].mxu0
    %v2159 = vpop.f32.mrb[0].mxu0
    %2160 = vdwg.mxu0
    %v2161 = vmul.f32 %v2156, 0.17677669
    %v2162 = vadd.f32 %v2161, %v81
    %v2163 = vsel %vm634, %v2162, -inf
    %2164 = vmax.xlane.f32.xlu0 %v2163
    %v2165 = vpop.xlane.xlu0 %2164
    %v2166 = vsub.f32 %v2162, %v2165
    %v2167 = vmul.f32 %v2166, 1.442695
    %v2168 = vpow.pop %v2167
    %v2169 = vsel %vm634, %v2168, 0.0
    %2170 = vadd.xlane.f32.xlu0 %v2169
    %v2171 = vpop.xlane.xlu0 %2170
    %v2172 = vrcp.pop %v2171
    %v2173 = vmul.f32 %v2168, %v2172
    %v2174 = vpack.c.bf16 %v2173, %v2173
    %v2175 = vpack.c.bf16 %v2108, %v2108
    %v2177 = vsel %vm634, %v2174, 0
    %v2180 = vsel %vm651, %v2175, 0
    %2182 = vmatprep.subr.bf16.mxu0 0
    %2183 = vmatpush1.bf16.msra.mxu0 %v2180
    %2184 = vmatprep.subr.bf16.mxu0 0
    %2185 = vmatpush1.bf16.msra.mxu0 0
    %2186 = vmatprep.subr.bf16.mxu0 0
    %2187 = vmatpush1.bf16.msra.mxu0 0
    %2188 = vmatprep.subr.bf16.mxu0 0
    %2189 = vmatpush1.bf16.msra.mxu0 0
    %2190 = vmatprep.subr.bf16.mxu0 0
    %2191 = vmatpush1.bf16.msra.mxu0 0
    %2192 = vmatprep.subr.bf16.mxu0 0
    %2193 = vmatpush1.bf16.msra.mxu0 0
    %2194 = vmatprep.subr.bf16.mxu0 0
    %2195 = vmatpush1.bf16.msra.mxu0 0
    %2196 = vmatprep.subr.bf16.mxu0 0
    %2197 = vmatpush1.bf16.msra.mxu0 0
    %2198 = vmatprep.subr.bf16.mxu0 0
    %2199 = vmatpush1.bf16.msra.mxu0 0
    %2200 = vmatprep.subr.bf16.mxu0 0
    %2201 = vmatpush1.bf16.msra.mxu0 0
    %2202 = vmatprep.subr.bf16.mxu0 0
    %2203 = vmatpush1.bf16.msra.mxu0 0
    %2204 = vmatprep.subr.bf16.mxu0 0
    %2205 = vmatpush1.bf16.msra.mxu0 0
    %2206 = vmatprep.subr.bf16.mxu0 0
    %2207 = vmatpush1.bf16.msra.mxu0 0
    %2208 = vmatprep.subr.bf16.mxu0 0
    %2209 = vmatpush1.bf16.msra.mxu0 0
    %2210 = vmatprep.subr.bf16.mxu0 0
    %2211 = vmatpush1.bf16.msra.mxu0 0
    %2212 = vmatprep.subr.bf16.mxu0 0
    %2213 = vmatpush1.bf16.msra.mxu0 0
    %2214 = vmatprep.mubr.bf16.mxu0 0
    %2215 = vmatmul.mubr.bf16.gmra.mrb[0].mxu0 %v2177
    %v2216 = vpop.f32.mrb[0].mxu0
    %v2217 = vadd.f32 0.0, %v2216
    %v2218 = vpop.f32.mrb[0].mxu0
    %v2219 = vpop.f32.mrb[0].mxu0
    %v2220 = vpop.f32.mrb[0].mxu0
    %2221 = vdwg.mxu0
    %v2222 = vpack.c.bf16 %v2217, %v2217
    %s2223 = scalar_lea.vmem %s15, 48
    %v2224 = vld [vmem:[%s2223] sm:$0xf]
    %v2225 = vld [vmem:[%s2223 + $0x4] sm:$0xf]
    %v2226 = vld [vmem:[%s2223 + $0x8] sm:$0xf]
    %v2227 = vld [vmem:[%s2223 + $0xc] sm:$0xf]
    %v2232 = vunpack.c.l.b16 %v2224
    %v2233 = vunpack.c.l.b16 %v2225
    %v2234 = vunpack.c.l.b16 %v2226
    %v2235 = vunpack.c.l.b16 %v2227
    %v2236 = vpack.c.b16 %v2233, %v2232
    %v2237 = vpack.c.b16 %v2235, %v2234
    %v2241 = vsel %vm585, %v2222, 0
    %2243 = vmatprep.subr.bf16.mxu0 0
    %2244 = vmatpush1.bf16.msra.mxu0 %v2236
    %2245 = vmatprep.subr.bf16.mxu0 0
    %2246 = vmatpush1.bf16.msra.mxu0 %v2237
    %2247 = vmatprep.subr.bf16.mxu0 0
    %2248 = vmatpush1.bf16.msra.mxu0 0
    %2249 = vmatprep.subr.bf16.mxu0 0
    %2250 = vmatpush1.bf16.msra.mxu0 0
    %2251 = vmatprep.subr.bf16.mxu0 0
    %2252 = vmatpush1.bf16.msra.mxu0 0
    %2253 = vmatprep.subr.bf16.mxu0 0
    %2254 = vmatpush1.bf16.msra.mxu0 0
    %2255 = vmatprep.subr.bf16.mxu0 0
    %2256 = vmatpush1.bf16.msra.mxu0 0
    %2257 = vmatprep.subr.bf16.mxu0 0
    %2258 = vmatpush1.bf16.msra.mxu0 0
    %2259 = vmatprep.subr.bf16.mxu0 0
    %2260 = vmatpush1.bf16.msra.mxu0 0
    %2261 = vmatprep.subr.bf16.mxu0 0
    %2262 = vmatpush1.bf16.msra.mxu0 0
    %2263 = vmatprep.subr.bf16.mxu0 0
    %2264 = vmatpush1.bf16.msra.mxu0 0
    %2265 = vmatprep.subr.bf16.mxu0 0
    %2266 = vmatpush1.bf16.msra.mxu0 0
    %2267 = vmatprep.subr.bf16.mxu0 0
    %2268 = vmatpush1.bf16.msra.mxu0 0
    %2269 = vmatprep.subr.bf16.mxu0 0
    %2270 = vmatpush1.bf16.msra.mxu0 0
    %2271 = vmatprep.subr.bf16.mxu0 0
    %2272 = vmatpush1.bf16.msra.mxu0 0
    %2273 = vmatprep.subr.bf16.mxu0 0
    %2274 = vmatpush1.bf16.msra.mxu0 0
    %2275 = vmatprep.mubr.bf16.mxu0 0
    %2276 = vmatmul.mubr.bf16.gmra.mrb[0].mxu0 %v2241
    %v2277 = vpop.f32.mrb[0].mxu0
    %v2278 = vadd.f32 0.0, %v2277
    %v2279 = vpop.f32.mrb[0].mxu0
    %v2280 = vpop.f32.mrb[0].mxu0
    %v2281 = vpop.f32.mrb[0].mxu0
    %2282 = vdwg.mxu0
    %v2283 = vadd.f32 %v1773, %v2278
    %v2284 = vadd.f32 %v216, %v2283
    %v2285 = vld [vmem:[%s16] sm:$0x1]
    %v2287 = vlaneseq
    %v2288 = vshrl.u32 %v2287, 7
    %v2289 = vsub.s32 0, %v2288
    %v2290 = vrot.slane %v2285, %v2289
    %v2292 = vadd.f32 %v2284, %v2290
    %v2293 = vld [vmem:[%s17] sm:$0x1]
    %v2294 = vld [vmem:[%s18] sm:$0x1]
    %2295 = vadd.xlane.f32.xlu0 %v2292
    %v2296 = vpop.xlane.xlu0 %2295
    %v2297 = vmul.f32 %v2296, %v225
    %v2298 = vsub.f32 %v2292, %v2297
    %v2299 = vmul.f32 %v2298, %v2298
    %2300 = vadd.xlane.f32.xlu0 %v2299
    %v2301 = vpop.xlane.xlu0 %2300
    %v2302 = vmul.f32 %v2301, %v225
    %v2303 = vadd.f32 %v2302, 1e-05
    %v2304 = vrsqrt.pop %v2303
    %v2305 = vmul.f32 %v2298, %v2304
    %v2307 = vlaneseq
    %v2308 = vshrl.u32 %v2307, 7
    %v2309 = vsub.s32 0, %v2308
    %v2310 = vrot.slane %v2293, %v2309
    %v2312 = vmul.f32 %v2305, %v2310
    %v2314 = vlaneseq
    %v2315 = vshrl.u32 %v2314, 7
    %v2316 = vsub.s32 0, %v2315
    %v2317 = vrot.slane %v2294, %v2316
    %v2319 = vadd.f32 %v2312, %v2317
    %v2320 = vpack.c.bf16 %v2319, %v2319
    %v2321 = vld [vmem:[%s19] sm:$0xff]
    %v2322 = vld [vmem:[%s19 + $0x8] sm:$0xff]
    %v2323 = vld [vmem:[%s19 + $0x10] sm:$0xff]
    %v2324 = vld [vmem:[%s19 + $0x18] sm:$0xff]
    %v2325 = vld [vmem:[%s19 + $0x20] sm:$0xff]
    %v2326 = vld [vmem:[%s19 + $0x28] sm:$0xff]
    %v2327 = vld [vmem:[%s19 + $0x30] sm:$0xff]
    %v2328 = vld [vmem:[%s19 + $0x38] sm:$0xff]
    %v2329 = vld [vmem:[%s19 + $0x40] sm:$0xff]
    %v2330 = vld [vmem:[%s19 + $0x48] sm:$0xff]
    %v2331 = vld [vmem:[%s19 + $0x50] sm:$0xff]
    %v2332 = vld [vmem:[%s19 + $0x58] sm:$0xff]
    %v2333 = vld [vmem:[%s19 + $0x60] sm:$0xff]
    %v2334 = vld [vmem:[%s19 + $0x68] sm:$0xff]
    %v2335 = vld [vmem:[%s19 + $0x70] sm:$0xff]
    %v2336 = vld [vmem:[%s19 + $0x78] sm:$0xff]
    %v2337 = vld [vmem:[%s20] sm:$0x3]
    %v2339 = vlaneseq
    %v2340 = vshrl.u32 %v2339, 7
    %v2341 = vsub.s32 0, %v2340
    %v2342 = vrot.slane %v2337, %v2341
    %v2343 = vlaneseq
    %v2344 = vshrl.u32 %v2343, 7
    %v2345 = vsub.s32 1, %v2344
    %v2346 = vrot.slane %v2337, %v2345
    %v2365 = vunpack.c.l.b16 %v2321
    %v2366 = vunpack.c.h.b16 %v2321
    %v2367 = vunpack.c.l.b16 %v2322
    %v2368 = vunpack.c.h.b16 %v2322
    %v2369 = vunpack.c.l.b16 %v2323
    %v2370 = vunpack.c.h.b16 %v2323
    %v2371 = vunpack.c.l.b16 %v2324
    %v2372 = vunpack.c.h.b16 %v2324
    %v2373 = vunpack.c.l.b16 %v2325
    %v2374 = vunpack.c.h.b16 %v2325
    %v2375 = vunpack.c.l.b16 %v2326
    %v2376 = vunpack.c.h.b16 %v2326
    %v2377 = vunpack.c.l.b16 %v2327
    %v2378 = vunpack.c.h.b16 %v2327
    %v2379 = vunpack.c.l.b16 %v2328
    %v2380 = vunpack.c.h.b16 %v2328
    %v2381 = vunpack.c.l.b16 %v2329
    %v2382 = vunpack.c.h.b16 %v2329
    %v2383 = vunpack.c.l.b16 %v2330
    %v2384 = vunpack.c.h.b16 %v2330
    %v2385 = vunpack.c.l.b16 %v2331
    %v2386 = vunpack.c.h.b16 %v2331
    %v2387 = vunpack.c.l.b16 %v2332
    %v2388 = vunpack.c.h.b16 %v2332
    %v2389 = vunpack.c.l.b16 %v2333
    %v2390 = vunpack.c.h.b16 %v2333
    %v2391 = vunpack.c.l.b16 %v2334
    %v2392 = vunpack.c.h.b16 %v2334
    %v2393 = vunpack.c.l.b16 %v2335
    %v2394 = vunpack.c.h.b16 %v2335
    %v2395 = vunpack.c.l.b16 %v2336
    %v2396 = vunpack.c.h.b16 %v2336
    %v2397 = vpack.c.b16 %v2367, %v2365
    %v2398 = vpack.c.b16 %v2368, %v2366
    %v2399 = vpack.c.b16 %v2371, %v2369
    %v2400 = vpack.c.b16 %v2372, %v2370
    %v2401 = vpack.c.b16 %v2375, %v2373
    %v2402 = vpack.c.b16 %v2376, %v2374
    %v2403 = vpack.c.b16 %v2379, %v2377
    %v2404 = vpack.c.b16 %v2380, %v2378
    %v2405 = vpack.c.b16 %v2383, %v2381
    %v2406 = vpack.c.b16 %v2384, %v2382
    %v2407 = vpack.c.b16 %v2387, %v2385
    %v2408 = vpack.c.b16 %v2388, %v2386
    %v2409 = vpack.c.b16 %v2391, %v2389
    %v2410 = vpack.c.b16 %v2392, %v2390
    %v2411 = vpack.c.b16 %v2395, %v2393
    %v2412 = vpack.c.b16 %v2396, %v2394
    %2429 = vmatprep.subr.bf16.mxu0 %v2398
    %2430 = vmatpush1.bf16.msra.mxu0 %v2397
    %2431 = vmatprep.subr.bf16.mxu0 %v2400
    %2432 = vmatpush1.bf16.msra.mxu0 %v2399
    %2433 = vmatprep.subr.bf16.mxu0 %v2402
    %2434 = vmatpush1.bf16.msra.mxu0 %v2401
    %2435 = vmatprep.subr.bf16.mxu0 %v2404
    %2436 = vmatpush1.bf16.msra.mxu0 %v2403
    %2437 = vmatprep.subr.bf16.mxu0 %v2406
    %2438 = vmatpush1.bf16.msra.mxu0 %v2405
    %2439 = vmatprep.subr.bf16.mxu0 %v2408
    %2440 = vmatpush1.bf16.msra.mxu0 %v2407
    %2441 = vmatprep.subr.bf16.mxu0 %v2410
    %2442 = vmatpush1.bf16.msra.mxu0 %v2409
    %2443 = vmatprep.subr.bf16.mxu0 %v2412
    %2444 = vmatpush1.bf16.msra.mxu0 %v2411
    %2445 = vmatprep.subr.bf16.mxu0 0
    %2446 = vmatpush1.bf16.msra.mxu0 0
    %2447 = vmatprep.subr.bf16.mxu0 0
    %2448 = vmatpush1.bf16.msra.mxu0 0
    %2449 = vmatprep.subr.bf16.mxu0 0
    %2450 = vmatpush1.bf16.msra.mxu0 0
    %2451 = vmatprep.subr.bf16.mxu0 0
    %2452 = vmatpush1.bf16.msra.mxu0 0
    %2453 = vmatprep.subr.bf16.mxu0 0
    %2454 = vmatpush1.bf16.msra.mxu0 0
    %2455 = vmatprep.subr.bf16.mxu0 0
    %2456 = vmatpush1.bf16.msra.mxu0 0
    %2457 = vmatprep.subr.bf16.mxu0 0
    %2458 = vmatpush1.bf16.msra.mxu0 0
    %2459 = vmatprep.subr.bf16.mxu0 0
    %2460 = vmatpush1.bf16.msra.mxu0 0
    %2461 = vmatprep.mubr.bf16.mxu0 0
    %2462 = vmatmul.mubr.bf16.gmra.mrb[0].mxu0 %v2320
    %v2463 = vpop.f32.mrb[0].mxu0
    %v2464 = vadd.f32 %v2342, %v2463
    %v2465 = vpop.f32.mrb[0].mxu0
    %v2466 = vadd.f32 %v2346, %v2465
    %v2467 = vpop.f32.mrb[0].mxu0
    %v2468 = vpop.f32.mrb[0].mxu0
    %2469 = vdwg.mxu0
    %v2470 = vmul.f32 %v2464, %v2464
    %v2471 = vmul.f32 %v2466, %v2466
    %v2472 = vmul.f32 %v2464, %v2470
    %v2473 = vmul.f32 %v2466, %v2471
    %v2474 = vmul.f32 %v2472, 0.044715
    %v2475 = vmul.f32 %v2473, 0.044715
    %v2476 = vadd.f32 %v2464, %v2474
    %v2477 = vadd.f32 %v2466, %v2475
    %v2478 = vmul.f32 %v2476, 0.7978846
    %v2479 = vmul.f32 %v2477, 0.7978846
    %v2480 = vtanh.pop %v2478
    %v2481 = vtanh.pop %v2479
    %v2482 = vadd.f32 %v2480, 1.0
    %v2483 = vadd.f32 %v2481, 1.0
    %v2484 = vmul.f32 %v2482, 0.5
    %v2485 = vmul.f32 %v2483, 0.5
    %v2486 = vmul.f32 %v2464, %v2484
    %v2487 = vmul.f32 %v2466, %v2485
    %v2488 = vpack.c.bf16 %v2486, %v2486
    %v2489 = vpack.c.bf16 %v2487, %v2487
    %v2490 = vld [vmem:[%s21] sm:$0xf]
    %v2491 = vld [vmem:[%s21 + $0x4] sm:$0xf]
    %v2492 = vld [vmem:[%s21 + $0x8] sm:$0xf]
    %v2493 = vld [vmem:[%s21 + $0xc] sm:$0xf]
    %v2494 = vld [vmem:[%s21 + $0x10] sm:$0xf]
    %v2495 = vld [vmem:[%s21 + $0x14] sm:$0xf]
    %v2496 = vld [vmem:[%s21 + $0x18] sm:$0xf]
    %v2497 = vld [vmem:[%s21 + $0x1c] sm:$0xf]
    %v2498 = vld [vmem:[%s21 + $0x20] sm:$0xf]
    %v2499 = vld [vmem:[%s21 + $0x24] sm:$0xf]
    %v2500 = vld [vmem:[%s21 + $0x28] sm:$0xf]
    %v2501 = vld [vmem:[%s21 + $0x2c] sm:$0xf]
    %v2502 = vld [vmem:[%s21 + $0x30] sm:$0xf]
    %v2503 = vld [vmem:[%s21 + $0x34] sm:$0xf]
    %v2504 = vld [vmem:[%s21 + $0x38] sm:$0xf]
    %v2505 = vld [vmem:[%s21 + $0x3c] sm:$0xf]
    %v2506 = vld [vmem:[%s21 + $0x40] sm:$0xf]
    %v2507 = vld [vmem:[%s21 + $0x44] sm:$0xf]
    %v2508 = vld [vmem:[%s21 + $0x48] sm:$0xf]
    %v2509 = vld [vmem:[%s21 + $0x4c] sm:$0xf]
    %v2510 = vld [vmem:[%s21 + $0x50] sm:$0xf]
    %v2511 = vld [vmem:[%s21 + $0x54] sm:$0xf]
    %v2512 = vld [vmem:[%s21 + $0x58] sm:$0xf]
    %v2513 = vld [vmem:[%s21 + $0x5c] sm:$0xf]
    %v2514 = vld [vmem:[%s21 + $0x60] sm:$0xf]
    %v2515 = vld [vmem:[%s21 + $0x64] sm:$0xf]
    %v2516 = vld [vmem:[%s21 + $0x68] sm:$0xf]
    %v2517 = vld [vmem:[%s21 + $0x6c] sm:$0xf]
    %v2518 = vld [vmem:[%s21 + $0x70] sm:$0xf]
    %v2519 = vld [vmem:[%s21 + $0x74] sm:$0xf]
    %v2520 = vld [vmem:[%s21 + $0x78] sm:$0xf]
    %v2521 = vld [vmem:[%s21 + $0x7c] sm:$0xf]
    %v2522 = vld [vmem:[%s22] sm:$0x1]
    %v2524 = vlaneseq
    %v2525 = vshrl.u32 %v2524, 7
    %v2526 = vsub.s32 0, %v2525
    %v2527 = vrot.slane %v2522, %v2526
    %v2561 = vunpack.c.l.b16 %v2490
    %v2562 = vunpack.c.l.b16 %v2491
    %v2563 = vunpack.c.l.b16 %v2492
    %v2564 = vunpack.c.l.b16 %v2493
    %v2565 = vunpack.c.l.b16 %v2494
    %v2566 = vunpack.c.l.b16 %v2495
    %v2567 = vunpack.c.l.b16 %v2496
    %v2568 = vunpack.c.l.b16 %v2497
    %v2569 = vunpack.c.l.b16 %v2498
    %v2570 = vunpack.c.l.b16 %v2499
    %v2571 = vunpack.c.l.b16 %v2500
    %v2572 = vunpack.c.l.b16 %v2501
    %v2573 = vunpack.c.l.b16 %v2502
    %v2574 = vunpack.c.l.b16 %v2503
    %v2575 = vunpack.c.l.b16 %v2504
    %v2576 = vunpack.c.l.b16 %v2505
    %v2577 = vunpack.c.l.b16 %v2506
    %v2578 = vunpack.c.l.b16 %v2507
    %v2579 = vunpack.c.l.b16 %v2508
    %v2580 = vunpack.c.l.b16 %v2509
    %v2581 = vunpack.c.l.b16 %v2510
    %v2582 = vunpack.c.l.b16 %v2511
    %v2583 = vunpack.c.l.b16 %v2512
    %v2584 = vunpack.c.l.b16 %v2513
    %v2585 = vunpack.c.l.b16 %v2514
    %v2586 = vunpack.c.l.b16 %v2515
    %v2587 = vunpack.c.l.b16 %v2516
    %v2588 = vunpack.c.l.b16 %v2517
    %v2589 = vunpack.c.l.b16 %v2518
    %v2590 = vunpack.c.l.b16 %v2519
    %v2591 = vunpack.c.l.b16 %v2520
    %v2592 = vunpack.c.l.b16 %v2521
    %v2593 = vpack.c.b16 %v2562, %v2561
    %v2594 = vpack.c.b16 %v2564, %v2563
    %v2595 = vpack.c.b16 %v2566, %v2565
    %v2596 = vpack.c.b16 %v2568, %v2567
    %v2597 = vpack.c.b16 %v2570, %v2569
    %v2598 = vpack.c.b16 %v2572, %v2571
    %v2599 = vpack.c.b16 %v2574, %v2573
    %v2600 = vpack.c.b16 %v2576, %v2575
    %v2601 = vpack.c.b16 %v2578, %v2577
    %v2602 = vpack.c.b16 %v2580, %v2579
    %v2603 = vpack.c.b16 %v2582, %v2581
    %v2604 = vpack.c.b16 %v2584, %v2583
    %v2605 = vpack.c.b16 %v2586, %v2585
    %v2606 = vpack.c.b16 %v2588, %v2587
    %v2607 = vpack.c.b16 %v2590, %v2589
    %v2608 = vpack.c.b16 %v2592, %v2591
    %2625 = vmatprep.subr.bf16.mxu0 0
    %2626 = vmatpush1.bf16.msra.mxu0 %v2593
    %2627 = vmatprep.subr.bf16.mxu0 0
    %2628 = vmatpush1.bf16.msra.mxu0 %v2594
    %2629 = vmatprep.subr.bf16.mxu0 0
    %2630 = vmatpush1.bf16.msra.mxu0 %v2595
    %2631 = vmatprep.subr.bf16.mxu0 0
    %2632 = vmatpush1.bf16.msra.mxu0 %v2596
    %2633 = vmatprep.subr.bf16.mxu0 0
    %2634 = vmatpush1.bf16.msra.mxu0 %v2597
    %2635 = vmatprep.subr.bf16.mxu0 0
    %2636 = vmatpush1.bf16.msra.mxu0 %v2598
    %2637 = vmatprep.subr.bf16.mxu0 0
    %2638 = vmatpush1.bf16.msra.mxu0 %v2599
    %2639 = vmatprep.subr.bf16.mxu0 0
    %2640 = vmatpush1.bf16.msra.mxu0 %v2600
    %2641 = vmatprep.subr.bf16.mxu0 0
    %2642 = vmatpush1.bf16.msra.mxu0 %v2601
    %2643 = vmatprep.subr.bf16.mxu0 0
    %2644 = vmatpush1.bf16.msra.mxu0 %v2602
    %2645 = vmatprep.subr.bf16.mxu0 0
    %2646 = vmatpush1.bf16.msra.mxu0 %v2603
    %2647 = vmatprep.subr.bf16.mxu0 0
    %2648 = vmatpush1.bf16.msra.mxu0 %v2604
    %2649 = vmatprep.subr.bf16.mxu0 0
    %2650 = vmatpush1.bf16.msra.mxu0 %v2605
    %2651 = vmatprep.subr.bf16.mxu0 0
    %2652 = vmatpush1.bf16.msra.mxu0 %v2606
    %2653 = vmatprep.subr.bf16.mxu0 0
    %2654 = vmatpush1.bf16.msra.mxu0 %v2607
    %2655 = vmatprep.subr.bf16.mxu0 0
    %2656 = vmatpush1.bf16.msra.mxu0 %v2608
    %2657 = vmatprep.mubr.bf16.mxu0 %v2489
    %2658 = vmatmul.mubr.bf16.gmra.mrb[0].mxu0 %v2488
    %v2659 = vpop.f32.mrb[0].mxu0
    %v2660 = vadd.f32 %v2527, %v2659
    %v2661 = vpop.f32.mrb[0].mxu0
    %v2662 = vpop.f32.mrb[0].mxu0
    %v2663 = vpop.f32.mrb[0].mxu0
    %2664 = vdwg.mxu0
    %v2665 = vadd.f32 %v2292, %v2660
    %s2666 = scalar_lea.vmem %s7, 1
    %v2667 = vld [vmem:[%s2666] sm:$0x1]
    %s2668 = scalar_lea.vmem %s8, 1
    %v2669 = vld [vmem:[%s2668] sm:$0x1]
    %2670 = vadd.xlane.f32.xlu0 %v2665
    %v2671 = vpop.xlane.xlu0 %2670
    %v2672 = vmul.f32 %v2671, %v225
    %v2673 = vsub.f32 %v2665, %v2672
    %v2674 = vmul.f32 %v2673, %v2673
    %2675 = vadd.xlane.f32.xlu0 %v2674
    %v2676 = vpop.xlane.xlu0 %2675
    %v2677 = vmul.f32 %v2676, %v225
    %v2678 = vadd.f32 %v2677, 1e-05
    %v2679 = vrsqrt.pop %v2678
    %v2680 = vmul.f32 %v2673, %v2679
    %v2682 = vlaneseq
    %v2683 = vshrl.u32 %v2682, 7
    %v2684 = vsub.s32 0, %v2683
    %v2685 = vrot.slane %v2667, %v2684
    %v2687 = vmul.f32 %v2680, %v2685
    %v2689 = vlaneseq
    %v2690 = vshrl.u32 %v2689, 7
    %v2691 = vsub.s32 0, %v2690
    %v2692 = vrot.slane %v2669, %v2691
    %v2694 = vadd.f32 %v2687, %v2692
    %v2695 = vpack.c.bf16 %v2694, %v2694
    %s2696 = scalar_lea.vmem %s9, 256
    %v2697 = vld [vmem:[%s2696] sm:$0xf]
    %v2698 = vld [vmem:[%s2696 + $0x4] sm:$0xf]
    %v2699 = vld [vmem:[%s2696 + $0x8] sm:$0xf]
    %v2700 = vld [vmem:[%s2696 + $0xc] sm:$0xf]
    %v2701 = vld [vmem:[%s2696 + $0x10] sm:$0xf]
    %v2702 = vld [vmem:[%s2696 + $0x14] sm:$0xf]
    %v2703 = vld [vmem:[%s2696 + $0x18] sm:$0xf]
    %v2704 = vld [vmem:[%s2696 + $0x1c] sm:$0xf]
    %v2705 = vld [vmem:[%s2696 + $0x20] sm:$0xf]
    %v2706 = vld [vmem:[%s2696 + $0x24] sm:$0xf]
    %v2707 = vld [vmem:[%s2696 + $0x28] sm:$0xf]
    %v2708 = vld [vmem:[%s2696 + $0x2c] sm:$0xf]
    %v2709 = vld [vmem:[%s2696 + $0x30] sm:$0xf]
    %v2710 = vld [vmem:[%s2696 + $0x34] sm:$0xf]
    %v2711 = vld [vmem:[%s2696 + $0x38] sm:$0xf]
    %v2712 = vld [vmem:[%s2696 + $0x3c] sm:$0xf]
    %s2713 = scalar_lea.vmem %s12, 4
    %v2714 = vld [vmem:[%s2713] sm:$0x1]
    %v2716 = vlaneseq
    %v2717 = vshrl.u32 %v2716, 7
    %v2718 = vsub.s32 0, %v2717
    %v2719 = vrot.slane %v2714, %v2718
    %v2737 = vunpack.c.l.b16 %v2697
    %v2738 = vunpack.c.l.b16 %v2698
    %v2739 = vunpack.c.l.b16 %v2699
    %v2740 = vunpack.c.l.b16 %v2700
    %v2741 = vunpack.c.l.b16 %v2701
    %v2742 = vunpack.c.l.b16 %v2702
    %v2743 = vunpack.c.l.b16 %v2703
    %v2744 = vunpack.c.l.b16 %v2704
    %v2745 = vunpack.c.l.b16 %v2705
    %v2746 = vunpack.c.l.b16 %v2706
    %v2747 = vunpack.c.l.b16 %v2707
    %v2748 = vunpack.c.l.b16 %v2708
    %v2749 = vunpack.c.l.b16 %v2709
    %v2750 = vunpack.c.l.b16 %v2710
    %v2751 = vunpack.c.l.b16 %v2711
    %v2752 = vunpack.c.l.b16 %v2712
    %v2753 = vpack.c.b16 %v2738, %v2737
    %v2754 = vpack.c.b16 %v2740, %v2739
    %v2755 = vpack.c.b16 %v2742, %v2741
    %v2756 = vpack.c.b16 %v2744, %v2743
    %v2757 = vpack.c.b16 %v2746, %v2745
    %v2758 = vpack.c.b16 %v2748, %v2747
    %v2759 = vpack.c.b16 %v2750, %v2749
    %v2760 = vpack.c.b16 %v2752, %v2751
    %2769 = vmatprep.subr.bf16.mxu0 0
    %2770 = vmatpush1.bf16.msra.mxu0 %v2753
    %2771 = vmatprep.subr.bf16.mxu0 0
    %2772 = vmatpush1.bf16.msra.mxu0 %v2754
    %2773 = vmatprep.subr.bf16.mxu0 0
    %2774 = vmatpush1.bf16.msra.mxu0 %v2755
    %2775 = vmatprep.subr.bf16.mxu0 0
    %2776 = vmatpush1.bf16.msra.mxu0 %v2756
    %2777 = vmatprep.subr.bf16.mxu0 0
    %2778 = vmatpush1.bf16.msra.mxu0 %v2757
    %2779 = vmatprep.subr.bf16.mxu0 0
    %2780 = vmatpush1.bf16.msra.mxu0 %v2758
    %2781 = vmatprep.subr.bf16.mxu0 0
    %2782 = vmatpush1.bf16.msra.mxu0 %v2759
    %2783 = vmatprep.subr.bf16.mxu0 0
    %2784 = vmatpush1.bf16.msra.mxu0 %v2760
    %2785 = vmatprep.subr.bf16.mxu0 0
    %2786 = vmatpush1.bf16.msra.mxu0 0
    %2787 = vmatprep.subr.bf16.mxu0 0
    %2788 = vmatpush1.bf16.msra.mxu0 0
    %2789 = vmatprep.subr.bf16.mxu0 0
    %2790 = vmatpush1.bf16.msra.mxu0 0
    %2791 = vmatprep.subr.bf16.mxu0 0
    %2792 = vmatpush1.bf16.msra.mxu0 0
    %2793 = vmatprep.subr.bf16.mxu0 0
    %2794 = vmatpush1.bf16.msra.mxu0 0
    %2795 = vmatprep.subr.bf16.mxu0 0
    %2796 = vmatpush1.bf16.msra.mxu0 0
    %2797 = vmatprep.subr.bf16.mxu0 0
    %2798 = vmatpush1.bf16.msra.mxu0 0
    %2799 = vmatprep.subr.bf16.mxu0 0
    %2800 = vmatpush1.bf16.msra.mxu0 0
    %2801 = vmatprep.mubr.bf16.mxu0 0
    %2802 = vmatmul.mubr.bf16.gmra.mrb[0].mxu0 %v2695
    %v2803 = vpop.f32.mrb[0].mxu0
    %v2804 = vadd.f32 %v2719, %v2803
    %v2805 = vpop.f32.mrb[0].mxu0
    %v2806 = vpop.f32.mrb[0].mxu0
    %v2807 = vpop.f32.mrb[0].mxu0
    %2808 = vdwg.mxu0
    %s2809 = scalar_lea.vmem %s10, 256
    %v2810 = vld [vmem:[%s2809] sm:$0xf]
    %v2811 = vld [vmem:[%s2809 + $0x4] sm:$0xf]
    %v2812 = vld [vmem:[%s2809 + $0x8] sm:$0xf]
    %v2813 = vld [vmem:[%s2809 + $0xc] sm:$0xf]
    %v2814 = vld [vmem:[%s2809 + $0x10] sm:$0xf]
    %v2815 = vld [vmem:[%s2809 + $0x14] sm:$0xf]
    %v2816 = vld [vmem:[%s2809 + $0x18] sm:$0xf]
    %v2817 = vld [vmem:[%s2809 + $0x1c] sm:$0xf]
    %v2818 = vld [vmem:[%s2809 + $0x20] sm:$0xf]
    %v2819 = vld [vmem:[%s2809 + $0x24] sm:$0xf]
    %v2820 = vld [vmem:[%s2809 + $0x28] sm:$0xf]
    %v2821 = vld [vmem:[%s2809 + $0x2c] sm:$0xf]
    %v2822 = vld [vmem:[%s2809 + $0x30] sm:$0xf]
    %v2823 = vld [vmem:[%s2809 + $0x34] sm:$0xf]
    %v2824 = vld [vmem:[%s2809 + $0x38] sm:$0xf]
    %v2825 = vld [vmem:[%s2809 + $0x3c] sm:$0xf]
    %s2826 = scalar_lea.vmem %s13, 4
    %v2827 = vld [vmem:[%s2826] sm:$0x1]
    %v2829 = vlaneseq
    %v2830 = vshrl.u32 %v2829, 7
    %v2831 = vsub.s32 0, %v2830
    %v2832 = vrot.slane %v2827, %v2831
    %v2850 = vunpack.c.l.b16 %v2810
    %v2851 = vunpack.c.l.b16 %v2811
    %v2852 = vunpack.c.l.b16 %v2812
    %v2853 = vunpack.c.l.b16 %v2813
    %v2854 = vunpack.c.l.b16 %v2814
    %v2855 = vunpack.c.l.b16 %v2815
    %v2856 = vunpack.c.l.b16 %v2816
    %v2857 = vunpack.c.l.b16 %v2817
    %v2858 = vunpack.c.l.b16 %v2818
    %v2859 = vunpack.c.l.b16 %v2819
    %v2860 = vunpack.c.l.b16 %v2820
    %v2861 = vunpack.c.l.b16 %v2821
    %v2862 = vunpack.c.l.b16 %v2822
    %v2863 = vunpack.c.l.b16 %v2823
    %v2864 = vunpack.c.l.b16 %v2824
    %v2865 = vunpack.c.l.b16 %v2825
    %v2866 = vpack.c.b16 %v2851, %v2850
    %v2867 = vpack.c.b16 %v2853, %v2852
    %v2868 = vpack.c.b16 %v2855, %v2854
    %v2869 = vpack.c.b16 %v2857, %v2856
    %v2870 = vpack.c.b16 %v2859, %v2858
    %v2871 = vpack.c.b16 %v2861, %v2860
    %v2872 = vpack.c.b16 %v2863, %v2862
    %v2873 = vpack.c.b16 %v2865, %v2864
    %2882 = vmatprep.subr.bf16.mxu0 0
    %2883 = vmatpush1.bf16.msra.mxu0 %v2866
    %2884 = vmatprep.subr.bf16.mxu0 0
    %2885 = vmatpush1.bf16.msra.mxu0 %v2867
    %2886 = vmatprep.subr.bf16.mxu0 0
    %2887 = vmatpush1.bf16.msra.mxu0 %v2868
    %2888 = vmatprep.subr.bf16.mxu0 0
    %2889 = vmatpush1.bf16.msra.mxu0 %v2869
    %2890 = vmatprep.subr.bf16.mxu0 0
    %2891 = vmatpush1.bf16.msra.mxu0 %v2870
    %2892 = vmatprep.subr.bf16.mxu0 0
    %2893 = vmatpush1.bf16.msra.mxu0 %v2871
    %2894 = vmatprep.subr.bf16.mxu0 0
    %2895 = vmatpush1.bf16.msra.mxu0 %v2872
    %2896 = vmatprep.subr.bf16.mxu0 0
    %2897 = vmatpush1.bf16.msra.mxu0 %v2873
    %2898 = vmatprep.subr.bf16.mxu0 0
    %2899 = vmatpush1.bf16.msra.mxu0 0
    %2900 = vmatprep.subr.bf16.mxu0 0
    %2901 = vmatpush1.bf16.msra.mxu0 0
    %2902 = vmatprep.subr.bf16.mxu0 0
    %2903 = vmatpush1.bf16.msra.mxu0 0
    %2904 = vmatprep.subr.bf16.mxu0 0
    %2905 = vmatpush1.bf16.msra.mxu0 0
    %2906 = vmatprep.subr.bf16.mxu0 0
    %2907 = vmatpush1.bf16.msra.mxu0 0
    %2908 = vmatprep.subr.bf16.mxu0 0
    %2909 = vmatpush1.bf16.msra.mxu0 0
    %2910 = vmatprep.subr.bf16.mxu0 0
    %2911 = vmatpush1.bf16.msra.mxu0 0
    %2912 = vmatprep.subr.bf16.mxu0 0
    %2913 = vmatpush1.bf16.msra.mxu0 0
    %2914 = vmatprep.mubr.bf16.mxu0 0
    %2915 = vmatmul.mubr.bf16.gmra.mrb[0].mxu0 %v2695
    %v2916 = vpop.f32.mrb[0].mxu0
    %v2917 = vadd.f32 %v2832, %v2916
    %v2918 = vpop.f32.mrb[0].mxu0
    %v2919 = vpop.f32.mrb[0].mxu0
    %v2920 = vpop.f32.mrb[0].mxu0
    %2921 = vdwg.mxu0
    %s2922 = scalar_lea.vmem %s11, 256
    %v2923 = vld [vmem:[%s2922] sm:$0xf]
    %v2924 = vld [vmem:[%s2922 + $0x4] sm:$0xf]
    %v2925 = vld [vmem:[%s2922 + $0x8] sm:$0xf]
    %v2926 = vld [vmem:[%s2922 + $0xc] sm:$0xf]
    %v2927 = vld [vmem:[%s2922 + $0x10] sm:$0xf]
    %v2928 = vld [vmem:[%s2922 + $0x14] sm:$0xf]
    %v2929 = vld [vmem:[%s2922 + $0x18] sm:$0xf]
    %v2930 = vld [vmem:[%s2922 + $0x1c] sm:$0xf]
    %v2931 = vld [vmem:[%s2922 + $0x20] sm:$0xf]
    %v2932 = vld [vmem:[%s2922 + $0x24] sm:$0xf]
    %v2933 = vld [vmem:[%s2922 + $0x28] sm:$0xf]
    %v2934 = vld [vmem:[%s2922 + $0x2c] sm:$0xf]
    %v2935 = vld [vmem:[%s2922 + $0x30] sm:$0xf]
    %v2936 = vld [vmem:[%s2922 + $0x34] sm:$0xf]
    %v2937 = vld [vmem:[%s2922 + $0x38] sm:$0xf]
    %v2938 = vld [vmem:[%s2922 + $0x3c] sm:$0xf]
    %s2939 = scalar_lea.vmem %s14, 4
    %v2940 = vld [vmem:[%s2939] sm:$0x1]
    %v2942 = vlaneseq
    %v2943 = vshrl.u32 %v2942, 7
    %v2944 = vsub.s32 0, %v2943
    %v2945 = vrot.slane %v2940, %v2944
    %v2963 = vunpack.c.l.b16 %v2923
    %v2964 = vunpack.c.l.b16 %v2924
    %v2965 = vunpack.c.l.b16 %v2925
    %v2966 = vunpack.c.l.b16 %v2926
    %v2967 = vunpack.c.l.b16 %v2927
    %v2968 = vunpack.c.l.b16 %v2928
    %v2969 = vunpack.c.l.b16 %v2929
    %v2970 = vunpack.c.l.b16 %v2930
    %v2971 = vunpack.c.l.b16 %v2931
    %v2972 = vunpack.c.l.b16 %v2932
    %v2973 = vunpack.c.l.b16 %v2933
    %v2974 = vunpack.c.l.b16 %v2934
    %v2975 = vunpack.c.l.b16 %v2935
    %v2976 = vunpack.c.l.b16 %v2936
    %v2977 = vunpack.c.l.b16 %v2937
    %v2978 = vunpack.c.l.b16 %v2938
    %v2979 = vpack.c.b16 %v2964, %v2963
    %v2980 = vpack.c.b16 %v2966, %v2965
    %v2981 = vpack.c.b16 %v2968, %v2967
    %v2982 = vpack.c.b16 %v2970, %v2969
    %v2983 = vpack.c.b16 %v2972, %v2971
    %v2984 = vpack.c.b16 %v2974, %v2973
    %v2985 = vpack.c.b16 %v2976, %v2975
    %v2986 = vpack.c.b16 %v2978, %v2977
    %2995 = vmatprep.subr.bf16.mxu0 0
    %2996 = vmatpush1.bf16.msra.mxu0 %v2979
    %2997 = vmatprep.subr.bf16.mxu0 0
    %2998 = vmatpush1.bf16.msra.mxu0 %v2980
    %2999 = vmatprep.subr.bf16.mxu0 0
    %3000 = vmatpush1.bf16.msra.mxu0 %v2981
    %3001 = vmatprep.subr.bf16.mxu0 0
    %3002 = vmatpush1.bf16.msra.mxu0 %v2982
    %3003 = vmatprep.subr.bf16.mxu0 0
    %3004 = vmatpush1.bf16.msra.mxu0 %v2983
    %3005 = vmatprep.subr.bf16.mxu0 0
    %3006 = vmatpush1.bf16.msra.mxu0 %v2984
    %3007 = vmatprep.subr.bf16.mxu0 0
    %3008 = vmatpush1.bf16.msra.mxu0 %v2985
    %3009 = vmatprep.subr.bf16.mxu0 0
    %3010 = vmatpush1.bf16.msra.mxu0 %v2986
    %3011 = vmatprep.subr.bf16.mxu0 0
    %3012 = vmatpush1.bf16.msra.mxu0 0
    %3013 = vmatprep.subr.bf16.mxu0 0
    %3014 = vmatpush1.bf16.msra.mxu0 0
    %3015 = vmatprep.subr.bf16.mxu0 0
    %3016 = vmatpush1.bf16.msra.mxu0 0
    %3017 = vmatprep.subr.bf16.mxu0 0
    %3018 = vmatpush1.bf16.msra.mxu0 0
    %3019 = vmatprep.subr.bf16.mxu0 0
    %3020 = vmatpush1.bf16.msra.mxu0 0
    %3021 = vmatprep.subr.bf16.mxu0 0
    %3022 = vmatpush1.bf16.msra.mxu0 0
    %3023 = vmatprep.subr.bf16.mxu0 0
    %3024 = vmatpush1.bf16.msra.mxu0 0
    %3025 = vmatprep.subr.bf16.mxu0 0
    %3026 = vmatpush1.bf16.msra.mxu0 0
    %3027 = vmatprep.mubr.bf16.mxu0 0
    %3028 = vmatmul.mubr.bf16.gmra.mrb[0].mxu0 %v2695
    %v3029 = vpop.f32.mrb[0].mxu0
    %v3030 = vadd.f32 %v2945, %v3029
    %v3031 = vpop.f32.mrb[0].mxu0
    %v3032 = vpop.f32.mrb[0].mxu0
    %v3033 = vpop.f32.mrb[0].mxu0
    %3034 = vdwg.mxu0
    %v3035 = vpack.c.bf16 %v2804, %v2804
    %v3036 = vpack.c.bf16 %v2917, %v2917
    %v3038 = vsel %vm585, %v3035, 0
    %v3041 = vsel %vm585, %v3036, 0
    %3043 = vmatprep.subr.bf16.mxu0 0
    %3044 = vmatpush1.bf16.xpose.msra.mxu0 %v3041
    %3045 = vmatprep.subr.bf16.mxu0 0
    %3046 = vmatpush1.bf16.xpose.msra.mxu0 0
    %3047 = vmatprep.subr.bf16.mxu0 0
    %3048 = vmatpush1.bf16.xpose.msra.mxu0 0
    %3049 = vmatprep.subr.bf16.mxu0 0
    %3050 = vmatpush1.bf16.xpose.msra.mxu0 0
    %3051 = vmatprep.subr.bf16.mxu0 0
    %3052 = vmatpush1.bf16.xpose.msra.mxu0 0
    %3053 = vmatprep.subr.bf16.mxu0 0
    %3054 = vmatpush1.bf16.xpose.msra.mxu0 0
    %3055 = vmatprep.subr.bf16.mxu0 0
    %3056 = vmatpush1.bf16.xpose.msra.mxu0 0
    %3057 = vmatprep.subr.bf16.mxu0 0
    %3058 = vmatpush1.bf16.xpose.msra.mxu0 0
    %3059 = vmatprep.subr.bf16.mxu0 0
    %3060 = vmatpush1.bf16.xpose.msra.mxu0 0
    %3061 = vmatprep.subr.bf16.mxu0 0
    %3062 = vmatpush1.bf16.xpose.msra.mxu0 0
    %3063 = vmatprep.subr.bf16.mxu0 0
    %3064 = vmatpush1.bf16.xpose.msra.mxu0 0
    %3065 = vmatprep.subr.bf16.mxu0 0
    %3066 = vmatpush1.bf16.xpose.msra.mxu0 0
    %3067 = vmatprep.subr.bf16.mxu0 0
    %3068 = vmatpush1.bf16.xpose.msra.mxu0 0
    %3069 = vmatprep.subr.bf16.mxu0 0
    %3070 = vmatpush1.bf16.xpose.msra.mxu0 0
    %3071 = vmatprep.subr.bf16.mxu0 0
    %3072 = vmatpush1.bf16.xpose.msra.mxu0 0
    %3073 = vmatprep.subr.bf16.mxu0 0
    %3074 = vmatpush1.bf16.xpose.msra.mxu0 0
    %3075 = vmatprep.mubr.bf16.mxu0 0
    %3076 = vmatmul.mubr.bf16.gmra.mrb[0].mxu0 %v3038
    %v3077 = vpop.f32.mrb[0].mxu0
    %v3078 = vadd.f32 0.0, %v3077
    %v3079 = vpop.f32.mrb[0].mxu0
    %v3080 = vpop.f32.mrb[0].mxu0
    %v3081 = vpop.f32.mrb[0].mxu0
    %3082 = vdwg.mxu0
    %v3083 = vmul.f32 %v3078, 0.17677669
    %v3084 = vadd.f32 %v3083, %v81
    %v3085 = vsel %vm634, %v3084, -inf
    %3086 = vmax.xlane.f32.xlu0 %v3085
    %v3087 = vpop.xlane.xlu0 %3086
    %v3088 = vsub.f32 %v3084, %v3087
    %v3089 = vmul.f32 %v3088, 1.442695
    %v3090 = vpow.pop %v3089
    %v3091 = vsel %vm634, %v3090, 0.0
    %3092 = vadd.xlane.f32.xlu0 %v3091
    %v3093 = vpop.xlane.xlu0 %3092
    %v3094 = vrcp.pop %v3093
    %v3095 = vmul.f32 %v3090, %v3094
    %v3096 = vpack.c.bf16 %v3095, %v3095
    %v3097 = vpack.c.bf16 %v3030, %v3030
    %v3099 = vsel %vm634, %v3096, 0
    %v3102 = vsel %vm651, %v3097, 0
    %3104 = vmatprep.subr.bf16.mxu0 0
    %3105 = vmatpush1.bf16.msra.mxu0 %v3102
    %3106 = vmatprep.subr.bf16.mxu0 0
    %3107 = vmatpush1.bf16.msra.mxu0 0
    %3108 = vmatprep.subr.bf16.mxu0 0
    %3109 = vmatpush1.bf16.msra.mxu0 0
    %3110 = vmatprep.subr.bf16.mxu0 0
    %3111 = vmatpush1.bf16.msra.mxu0 0
    %3112 = vmatprep.subr.bf16.mxu0 0
    %3113 = vmatpush1.bf16.msra.mxu0 0
    %3114 = vmatprep.subr.bf16.mxu0 0
    %3115 = vmatpush1.bf16.msra.mxu0 0
    %3116 = vmatprep.subr.bf16.mxu0 0
    %3117 = vmatpush1.bf16.msra.mxu0 0
    %3118 = vmatprep.subr.bf16.mxu0 0
    %3119 = vmatpush1.bf16.msra.mxu0 0
    %3120 = vmatprep.subr.bf16.mxu0 0
    %3121 = vmatpush1.bf16.msra.mxu0 0
    %3122 = vmatprep.subr.bf16.mxu0 0
    %3123 = vmatpush1.bf16.msra.mxu0 0
    %3124 = vmatprep.subr.bf16.mxu0 0
    %3125 = vmatpush1.bf16.msra.mxu0 0
    %3126 = vmatprep.subr.bf16.mxu0 0
    %3127 = vmatpush1.bf16.msra.mxu0 0
    %3128 = vmatprep.subr.bf16.mxu0 0
    %3129 = vmatpush1.bf16.msra.mxu0 0
    %3130 = vmatprep.subr.bf16.mxu0 0
    %3131 = vmatpush1.bf16.msra.mxu0 0
    %3132 = vmatprep.subr.bf16.mxu0 0
    %3133 = vmatpush1.bf16.msra.mxu0 0
    %3134 = vmatprep.subr.bf16.mxu0 0
    %3135 = vmatpush1.bf16.msra.mxu0 0
    %3136 = vmatprep.mubr.bf16.mxu0 0
    %3137 = vmatmul.mubr.bf16.gmra.mrb[0].mxu0 %v3099
    %v3138 = vpop.f32.mrb[0].mxu0
    %v3139 = vadd.f32 0.0, %v3138
    %v3140 = vpop.f32.mrb[0].mxu0
    %v3141 = vpop.f32.mrb[0].mxu0
    %v3142 = vpop.f32.mrb[0].mxu0
    %3143 = vdwg.mxu0
    %v3144 = vpack.c.bf16 %v3139, %v3139
    %s3145 = scalar_lea.vmem %s15, 64
    %v3146 = vld [vmem:[%s3145] sm:$0xf]
    %v3147 = vld [vmem:[%s3145 + $0x4] sm:$0xf]
    %v3148 = vld [vmem:[%s3145 + $0x8] sm:$0xf]
    %v3149 = vld [vmem:[%s3145 + $0xc] sm:$0xf]
    %s3150 = scalar_lea.vmem %s9, 320
    %v3151 = vld [vmem:[%s3150] sm:$0xf]
    %v3152 = vld [vmem:[%s3150 + $0x4] sm:$0xf]
    %v3153 = vld [vmem:[%s3150 + $0x8] sm:$0xf]
    %v3154 = vld [vmem:[%s3150 + $0xc] sm:$0xf]
    %v3155 = vld [vmem:[%s3150 + $0x10] sm:$0xf]
    %v3156 = vld [vmem:[%s3150 + $0x14] sm:$0xf]
    %v3157 = vld [vmem:[%s3150 + $0x18] sm:$0xf]
    %v3158 = vld [vmem:[%s3150 + $0x1c] sm:$0xf]
    %v3159 = vld [vmem:[%s3150 + $0x20] sm:$0xf]
    %v3160 = vld [vmem:[%s3150 + $0x24] sm:$0xf]
    %v3161 = vld [vmem:[%s3150 + $0x28] sm:$0xf]
    %v3162 = vld [vmem:[%s3150 + $0x2c] sm:$0xf]
    %v3163 = vld [vmem:[%s3150 + $0x30] sm:$0xf]
    %v3164 = vld [vmem:[%s3150 + $0x34] sm:$0xf]
    %v3165 = vld [vmem:[%s3150 + $0x38] sm:$0xf]
    %v3166 = vld [vmem:[%s3150 + $0x3c] sm:$0xf]
    %s3167 = scalar_lea.vmem %s12, 5
    %v3168 = vld [vmem:[%s3167] sm:$0x1]
    %v3170 = vlaneseq
    %v3171 = vshrl.u32 %v3170, 7
    %v3172 = vsub.s32 0, %v3171
    %v3173 = vrot.slane %v3168, %v3172
    %v3191 = vunpack.c.l.b16 %v3151
    %v3192 = vunpack.c.l.b16 %v3152
    %v3193 = vunpack.c.l.b16 %v3153
    %v3194 = vunpack.c.l.b16 %v3154
    %v3195 = vunpack.c.l.b16 %v3155
    %v3196 = vunpack.c.l.b16 %v3156
    %v3197 = vunpack.c.l.b16 %v3157
    %v3198 = vunpack.c.l.b16 %v3158
    %v3199 = vunpack.c.l.b16 %v3159
    %v3200 = vunpack.c.l.b16 %v3160
    %v3201 = vunpack.c.l.b16 %v3161
    %v3202 = vunpack.c.l.b16 %v3162
    %v3203 = vunpack.c.l.b16 %v3163
    %v3204 = vunpack.c.l.b16 %v3164
    %v3205 = vunpack.c.l.b16 %v3165
    %v3206 = vunpack.c.l.b16 %v3166
    %v3207 = vpack.c.b16 %v3192, %v3191
    %v3208 = vpack.c.b16 %v3194, %v3193
    %v3209 = vpack.c.b16 %v3196, %v3195
    %v3210 = vpack.c.b16 %v3198, %v3197
    %v3211 = vpack.c.b16 %v3200, %v3199
    %v3212 = vpack.c.b16 %v3202, %v3201
    %v3213 = vpack.c.b16 %v3204, %v3203
    %v3214 = vpack.c.b16 %v3206, %v3205
    %3223 = vmatprep.subr.bf16.mxu0 0
    %3224 = vmatpush1.bf16.msra.mxu0 %v3207
    %3225 = vmatprep.subr.bf16.mxu0 0
    %3226 = vmatpush1.bf16.msra.mxu0 %v3208
    %3227 = vmatprep.subr.bf16.mxu0 0
    %3228 = vmatpush1.bf16.msra.mxu0 %v3209
    %3229 = vmatprep.subr.bf16.mxu0 0
    %3230 = vmatpush1.bf16.msra.mxu0 %v3210
    %3231 = vmatprep.subr.bf16.mxu0 0
    %3232 = vmatpush1.bf16.msra.mxu0 %v3211
    %3233 = vmatprep.subr.bf16.mxu0 0
    %3234 = vmatpush1.bf16.msra.mxu0 %v3212
    %3235 = vmatprep.subr.bf16.mxu0 0
    %3236 = vmatpush1.bf16.msra.mxu0 %v3213
    %3237 = vmatprep.subr.bf16.mxu0 0
    %3238 = vmatpush1.bf16.msra.mxu0 %v3214
    %3239 = vmatprep.subr.bf16.mxu0 0
    %3240 = vmatpush1.bf16.msra.mxu0 0
    %3241 = vmatprep.subr.bf16.mxu0 0
    %3242 = vmatpush1.bf16.msra.mxu0 0
    %3243 = vmatprep.subr.bf16.mxu0 0
    %3244 = vmatpush1.bf16.msra.mxu0 0
    %3245 = vmatprep.subr.bf16.mxu0 0
    %3246 = vmatpush1.bf16.msra.mxu0 0
    %3247 = vmatprep.subr.bf16.mxu0 0
    %3248 = vmatpush1.bf16.msra.mxu0 0
    %3249 = vmatprep.subr.bf16.mxu0 0
    %3250 = vmatpush1.bf16.msra.mxu0 0
    %3251 = vmatprep.subr.bf16.mxu0 0
    %3252 = vmatpush1.bf16.msra.mxu0 0
    %3253 = vmatprep.subr.bf16.mxu0 0
    %3254 = vmatpush1.bf16.msra.mxu0 0
    %3255 = vmatprep.mubr.bf16.mxu0 0
    %3256 = vmatmul.mubr.bf16.gmra.mrb[0].mxu0 %v2695
    %v3257 = vpop.f32.mrb[0].mxu0
    %v3258 = vadd.f32 %v3173, %v3257
    %v3259 = vpop.f32.mrb[0].mxu0
    %v3260 = vpop.f32.mrb[0].mxu0
    %v3261 = vpop.f32.mrb[0].mxu0
    %3262 = vdwg.mxu0
    %s3263 = scalar_lea.vmem %s10, 320
    %v3264 = vld [vmem:[%s3263] sm:$0xf]
    %v3265 = vld [vmem:[%s3263 + $0x4] sm:$0xf]
    %v3266 = vld [vmem:[%s3263 + $0x8] sm:$0xf]
    %v3267 = vld [vmem:[%s3263 + $0xc] sm:$0xf]
    %v3268 = vld [vmem:[%s3263 + $0x10] sm:$0xf]
    %v3269 = vld [vmem:[%s3263 + $0x14] sm:$0xf]
    %v3270 = vld [vmem:[%s3263 + $0x18] sm:$0xf]
    %v3271 = vld [vmem:[%s3263 + $0x1c] sm:$0xf]
    %v3272 = vld [vmem:[%s3263 + $0x20] sm:$0xf]
    %v3273 = vld [vmem:[%s3263 + $0x24] sm:$0xf]
    %v3274 = vld [vmem:[%s3263 + $0x28] sm:$0xf]
    %v3275 = vld [vmem:[%s3263 + $0x2c] sm:$0xf]
    %v3276 = vld [vmem:[%s3263 + $0x30] sm:$0xf]
    %v3277 = vld [vmem:[%s3263 + $0x34] sm:$0xf]
    %v3278 = vld [vmem:[%s3263 + $0x38] sm:$0xf]
    %v3279 = vld [vmem:[%s3263 + $0x3c] sm:$0xf]
    %s3280 = scalar_lea.vmem %s13, 5
    %v3281 = vld [vmem:[%s3280] sm:$0x1]
    %v3283 = vlaneseq
    %v3284 = vshrl.u32 %v3283, 7
    %v3285 = vsub.s32 0, %v3284
    %v3286 = vrot.slane %v3281, %v3285
    %v3304 = vunpack.c.l.b16 %v3264
    %v3305 = vunpack.c.l.b16 %v3265
    %v3306 = vunpack.c.l.b16 %v3266
    %v3307 = vunpack.c.l.b16 %v3267
    %v3308 = vunpack.c.l.b16 %v3268
    %v3309 = vunpack.c.l.b16 %v3269
    %v3310 = vunpack.c.l.b16 %v3270
    %v3311 = vunpack.c.l.b16 %v3271
    %v3312 = vunpack.c.l.b16 %v3272
    %v3313 = vunpack.c.l.b16 %v3273
    %v3314 = vunpack.c.l.b16 %v3274
    %v3315 = vunpack.c.l.b16 %v3275
    %v3316 = vunpack.c.l.b16 %v3276
    %v3317 = vunpack.c.l.b16 %v3277
    %v3318 = vunpack.c.l.b16 %v3278
    %v3319 = vunpack.c.l.b16 %v3279
    %v3320 = vpack.c.b16 %v3305, %v3304
    %v3321 = vpack.c.b16 %v3307, %v3306
    %v3322 = vpack.c.b16 %v3309, %v3308
    %v3323 = vpack.c.b16 %v3311, %v3310
    %v3324 = vpack.c.b16 %v3313, %v3312
    %v3325 = vpack.c.b16 %v3315, %v3314
    %v3326 = vpack.c.b16 %v3317, %v3316
    %v3327 = vpack.c.b16 %v3319, %v3318
    %3336 = vmatprep.subr.bf16.mxu0 0
    %3337 = vmatpush1.bf16.msra.mxu0 %v3320
    %3338 = vmatprep.subr.bf16.mxu0 0
    %3339 = vmatpush1.bf16.msra.mxu0 %v3321
    %3340 = vmatprep.subr.bf16.mxu0 0
    %3341 = vmatpush1.bf16.msra.mxu0 %v3322
    %3342 = vmatprep.subr.bf16.mxu0 0
    %3343 = vmatpush1.bf16.msra.mxu0 %v3323
    %3344 = vmatprep.subr.bf16.mxu0 0
    %3345 = vmatpush1.bf16.msra.mxu0 %v3324
    %3346 = vmatprep.subr.bf16.mxu0 0
    %3347 = vmatpush1.bf16.msra.mxu0 %v3325
    %3348 = vmatprep.subr.bf16.mxu0 0
    %3349 = vmatpush1.bf16.msra.mxu0 %v3326
    %3350 = vmatprep.subr.bf16.mxu0 0
    %3351 = vmatpush1.bf16.msra.mxu0 %v3327
    %3352 = vmatprep.subr.bf16.mxu0 0
    %3353 = vmatpush1.bf16.msra.mxu0 0
    %3354 = vmatprep.subr.bf16.mxu0 0
    %3355 = vmatpush1.bf16.msra.mxu0 0
    %3356 = vmatprep.subr.bf16.mxu0 0
    %3357 = vmatpush1.bf16.msra.mxu0 0
    %3358 = vmatprep.subr.bf16.mxu0 0
    %3359 = vmatpush1.bf16.msra.mxu0 0
    %3360 = vmatprep.subr.bf16.mxu0 0
    %3361 = vmatpush1.bf16.msra.mxu0 0
    %3362 = vmatprep.subr.bf16.mxu0 0
    %3363 = vmatpush1.bf16.msra.mxu0 0
    %3364 = vmatprep.subr.bf16.mxu0 0
    %3365 = vmatpush1.bf16.msra.mxu0 0
    %3366 = vmatprep.subr.bf16.mxu0 0
    %3367 = vmatpush1.bf16.msra.mxu0 0
    %3368 = vmatprep.mubr.bf16.mxu0 0
    %3369 = vmatmul.mubr.bf16.gmra.mrb[0].mxu0 %v2695
    %v3370 = vpop.f32.mrb[0].mxu0
    %v3371 = vadd.f32 %v3286, %v3370
    %v3372 = vpop.f32.mrb[0].mxu0
    %v3373 = vpop.f32.mrb[0].mxu0
    %v3374 = vpop.f32.mrb[0].mxu0
    %3375 = vdwg.mxu0
    %s3376 = scalar_lea.vmem %s11, 320
    %v3377 = vld [vmem:[%s3376] sm:$0xf]
    %v3378 = vld [vmem:[%s3376 + $0x4] sm:$0xf]
    %v3379 = vld [vmem:[%s3376 + $0x8] sm:$0xf]
    %v3380 = vld [vmem:[%s3376 + $0xc] sm:$0xf]
    %v3381 = vld [vmem:[%s3376 + $0x10] sm:$0xf]
    %v3382 = vld [vmem:[%s3376 + $0x14] sm:$0xf]
    %v3383 = vld [vmem:[%s3376 + $0x18] sm:$0xf]
    %v3384 = vld [vmem:[%s3376 + $0x1c] sm:$0xf]
    %v3385 = vld [vmem:[%s3376 + $0x20] sm:$0xf]
    %v3386 = vld [vmem:[%s3376 + $0x24] sm:$0xf]
    %v3387 = vld [vmem:[%s3376 + $0x28] sm:$0xf]
    %v3388 = vld [vmem:[%s3376 + $0x2c] sm:$0xf]
    %v3389 = vld [vmem:[%s3376 + $0x30] sm:$0xf]
    %v3390 = vld [vmem:[%s3376 + $0x34] sm:$0xf]
    %v3391 = vld [vmem:[%s3376 + $0x38] sm:$0xf]
    %v3392 = vld [vmem:[%s3376 + $0x3c] sm:$0xf]
    %s3393 = scalar_lea.vmem %s14, 5
    %v3394 = vld [vmem:[%s3393] sm:$0x1]
    %v3396 = vlaneseq
    %v3397 = vshrl.u32 %v3396, 7
    %v3398 = vsub.s32 0, %v3397
    %v3399 = vrot.slane %v3394, %v3398
    %v3417 = vunpack.c.l.b16 %v3377
    %v3418 = vunpack.c.l.b16 %v3378
    %v3419 = vunpack.c.l.b16 %v3379
    %v3420 = vunpack.c.l.b16 %v3380
    %v3421 = vunpack.c.l.b16 %v3381
    %v3422 = vunpack.c.l.b16 %v3382
    %v3423 = vunpack.c.l.b16 %v3383
    %v3424 = vunpack.c.l.b16 %v3384
    %v3425 = vunpack.c.l.b16 %v3385
    %v3426 = vunpack.c.l.b16 %v3386
    %v3427 = vunpack.c.l.b16 %v3387
    %v3428 = vunpack.c.l.b16 %v3388
    %v3429 = vunpack.c.l.b16 %v3389
    %v3430 = vunpack.c.l.b16 %v3390
    %v3431 = vunpack.c.l.b16 %v3391
    %v3432 = vunpack.c.l.b16 %v3392
    %v3433 = vpack.c.b16 %v3418, %v3417
    %v3434 = vpack.c.b16 %v3420, %v3419
    %v3435 = vpack.c.b16 %v3422, %v3421
    %v3436 = vpack.c.b16 %v3424, %v3423
    %v3437 = vpack.c.b16 %v3426, %v3425
    %v3438 = vpack.c.b16 %v3428, %v3427
    %v3439 = vpack.c.b16 %v3430, %v3429
    %v3440 = vpack.c.b16 %v3432, %v3431
    %3449 = vmatprep.subr.bf16.mxu0 0
    %3450 = vmatpush1.bf16.msra.mxu0 %v3433
    %3451 = vmatprep.subr.bf16.mxu0 0
    %3452 = vmatpush1.bf16.msra.mxu0 %v3434
    %3453 = vmatprep.subr.bf16.mxu0 0
    %3454 = vmatpush1.bf16.msra.mxu0 %v3435
    %3455 = vmatprep.subr.bf16.mxu0 0
    %3456 = vmatpush1.bf16.msra.mxu0 %v3436
    %3457 = vmatprep.subr.bf16.mxu0 0
    %3458 = vmatpush1.bf16.msra.mxu0 %v3437
    %3459 = vmatprep.subr.bf16.mxu0 0
    %3460 = vmatpush1.bf16.msra.mxu0 %v3438
    %3461 = vmatprep.subr.bf16.mxu0 0
    %3462 = vmatpush1.bf16.msra.mxu0 %v3439
    %3463 = vmatprep.subr.bf16.mxu0 0
    %3464 = vmatpush1.bf16.msra.mxu0 %v3440
    %3465 = vmatprep.subr.bf16.mxu0 0
    %3466 = vmatpush1.bf16.msra.mxu0 0
    %3467 = vmatprep.subr.bf16.mxu0 0
    %3468 = vmatpush1.bf16.msra.mxu0 0
    %3469 = vmatprep.subr.bf16.mxu0 0
    %3470 = vmatpush1.bf16.msra.mxu0 0
    %3471 = vmatprep.subr.bf16.mxu0 0
    %3472 = vmatpush1.bf16.msra.mxu0 0
    %3473 = vmatprep.subr.bf16.mxu0 0
    %3474 = vmatpush1.bf16.msra.mxu0 0
    %3475 = vmatprep.subr.bf16.mxu0 0
    %3476 = vmatpush1.bf16.msra.mxu0 0
    %3477 = vmatprep.subr.bf16.mxu0 0
    %3478 = vmatpush1.bf16.msra.mxu0 0
    %3479 = vmatprep.subr.bf16.mxu0 0
    %3480 = vmatpush1.bf16.msra.mxu0 0
    %3481 = vmatprep.mubr.bf16.mxu0 0
    %3482 = vmatmul.mubr.bf16.gmra.mrb[0].mxu0 %v2695
    %v3483 = vpop.f32.mrb[0].mxu0
    %v3484 = vadd.f32 %v3399, %v3483
    %v3485 = vpop.f32.mrb[0].mxu0
    %v3486 = vpop.f32.mrb[0].mxu0
    %v3487 = vpop.f32.mrb[0].mxu0
    %3488 = vdwg.mxu0
    %v3489 = vpack.c.bf16 %v3258, %v3258
    %v3490 = vpack.c.bf16 %v3371, %v3371
    %v3492 = vsel %vm585, %v3489, 0
    %v3495 = vsel %vm585, %v3490, 0
    %3497 = vmatprep.subr.bf16.mxu0 0
    %3498 = vmatpush1.bf16.xpose.msra.mxu0 %v3495
    %3499 = vmatprep.subr.bf16.mxu0 0
    %3500 = vmatpush1.bf16.xpose.msra.mxu0 0
    %3501 = vmatprep.subr.bf16.mxu0 0
    %3502 = vmatpush1.bf16.xpose.msra.mxu0 0
    %3503 = vmatprep.subr.bf16.mxu0 0
    %3504 = vmatpush1.bf16.xpose.msra.mxu0 0
    %3505 = vmatprep.subr.bf16.mxu0 0
    %3506 = vmatpush1.bf16.xpose.msra.mxu0 0
    %3507 = vmatprep.subr.bf16.mxu0 0
    %3508 = vmatpush1.bf16.xpose.msra.mxu0 0
    %3509 = vmatprep.subr.bf16.mxu0 0
    %3510 = vmatpush1.bf16.xpose.msra.mxu0 0
    %3511 = vmatprep.subr.bf16.mxu0 0
    %3512 = vmatpush1.bf16.xpose.msra.mxu0 0
    %3513 = vmatprep.subr.bf16.mxu0 0
    %3514 = vmatpush1.bf16.xpose.msra.mxu0 0
    %3515 = vmatprep.subr.bf16.mxu0 0
    %3516 = vmatpush1.bf16.xpose.msra.mxu0 0
    %3517 = vmatprep.subr.bf16.mxu0 0
    %3518 = vmatpush1.bf16.xpose.msra.mxu0 0
    %3519 = vmatprep.subr.bf16.mxu0 0
    %3520 = vmatpush1.bf16.xpose.msra.mxu0 0
    %3521 = vmatprep.subr.bf16.mxu0 0
    %3522 = vmatpush1.bf16.xpose.msra.mxu0 0
    %3523 = vmatprep.subr.bf16.mxu0 0
    %3524 = vmatpush1.bf16.xpose.msra.mxu0 0
    %3525 = vmatprep.subr.bf16.mxu0 0
    %3526 = vmatpush1.bf16.xpose.msra.mxu0 0
    %3527 = vmatprep.subr.bf16.mxu0 0
    %3528 = vmatpush1.bf16.xpose.msra.mxu0 0
    %3529 = vmatprep.mubr.bf16.mxu0 0
    %3530 = vmatmul.mubr.bf16.gmra.mrb[0].mxu0 %v3492
    %v3531 = vpop.f32.mrb[0].mxu0
    %v3532 = vadd.f32 0.0, %v3531
    %v3533 = vpop.f32.mrb[0].mxu0
    %v3534 = vpop.f32.mrb[0].mxu0
    %v3535 = vpop.f32.mrb[0].mxu0
    %3536 = vdwg.mxu0
    %v3537 = vmul.f32 %v3532, 0.17677669
    %v3538 = vadd.f32 %v3537, %v81
    %v3539 = vsel %vm634, %v3538, -inf
    %3540 = vmax.xlane.f32.xlu0 %v3539
    %v3541 = vpop.xlane.xlu0 %3540
    %v3542 = vsub.f32 %v3538, %v3541
    %v3543 = vmul.f32 %v3542, 1.442695
    %v3544 = vpow.pop %v3543
    %v3545 = vsel %vm634, %v3544, 0.0
    %3546 = vadd.xlane.f32.xlu0 %v3545
    %v3547 = vpop.xlane.xlu0 %3546
    %v3548 = vrcp.pop %v3547
    %v3549 = vmul.f32 %v3544, %v3548
    %v3550 = vpack.c.bf16 %v3549, %v3549
    %v3551 = vpack.c.bf16 %v3484, %v3484
    %v3553 = vsel %vm634, %v3550, 0
    %v3556 = vsel %vm651, %v3551, 0
    %3558 = vmatprep.subr.bf16.mxu0 0
    %3559 = vmatpush1.bf16.msra.mxu0 %v3556
    %3560 = vmatprep.subr.bf16.mxu0 0
    %3561 = vmatpush1.bf16.msra.mxu0 0
    %3562 = vmatprep.subr.bf16.mxu0 0
    %3563 = vmatpush1.bf16.msra.mxu0 0
    %3564 = vmatprep.subr.bf16.mxu0 0
    %3565 = vmatpush1.bf16.msra.mxu0 0
    %3566 = vmatprep.subr.bf16.mxu0 0
    %3567 = vmatpush1.bf16.msra.mxu0 0
    %3568 = vmatprep.subr.bf16.mxu0 0
    %3569 = vmatpush1.bf16.msra.mxu0 0
    %3570 = vmatprep.subr.bf16.mxu0 0
    %3571 = vmatpush1.bf16.msra.mxu0 0
    %3572 = vmatprep.subr.bf16.mxu0 0
    %3573 = vmatpush1.bf16.msra.mxu0 0
    %3574 = vmatprep.subr.bf16.mxu0 0
    %3575 = vmatpush1.bf16.msra.mxu0 0
    %3576 = vmatprep.subr.bf16.mxu0 0
    %3577 = vmatpush1.bf16.msra.mxu0 0
    %3578 = vmatprep.subr.bf16.mxu0 0
    %3579 = vmatpush1.bf16.msra.mxu0 0
    %3580 = vmatprep.subr.bf16.mxu0 0
    %3581 = vmatpush1.bf16.msra.mxu0 0
    %3582 = vmatprep.subr.bf16.mxu0 0
    %3583 = vmatpush1.bf16.msra.mxu0 0
    %3584 = vmatprep.subr.bf16.mxu0 0
    %3585 = vmatpush1.bf16.msra.mxu0 0
    %3586 = vmatprep.subr.bf16.mxu0 0
    %3587 = vmatpush1.bf16.msra.mxu0 0
    %3588 = vmatprep.subr.bf16.mxu0 0
    %3589 = vmatpush1.bf16.msra.mxu0 0
    %3590 = vmatprep.mubr.bf16.mxu0 0
    %3591 = vmatmul.mubr.bf16.gmra.mrb[0].mxu0 %v3553
    %v3592 = vpop.f32.mrb[0].mxu0
    %v3593 = vadd.f32 0.0, %v3592
    %v3594 = vpop.f32.mrb[0].mxu0
    %v3595 = vpop.f32.mrb[0].mxu0
    %v3596 = vpop.f32.mrb[0].mxu0
    %3597 = vdwg.mxu0
    %v3598 = vpack.c.bf16 %v3593, %v3593
    %s3599 = scalar_lea.vmem %s15, 80
    %v3600 = vld [vmem:[%s3599] sm:$0xf]
    %v3601 = vld [vmem:[%s3599 + $0x4] sm:$0xf]
    %v3602 = vld [vmem:[%s3599 + $0x8] sm:$0xf]
    %v3603 = vld [vmem:[%s3599 + $0xc] sm:$0xf]
    %v3608 = vunpack.c.l.b16 %v3600
    %v3609 = vunpack.c.l.b16 %v3601
    %v3610 = vunpack.c.l.b16 %v3602
    %v3611 = vunpack.c.l.b16 %v3603
    %v3612 = vpack.c.b16 %v3609, %v3608
    %v3613 = vpack.c.b16 %v3611, %v3610
    %v3617 = vsel %vm585, %v3598, 0
    %3619 = vmatprep.subr.bf16.mxu0 0
    %3620 = vmatpush1.bf16.msra.mxu0 %v3612
    %3621 = vmatprep.subr.bf16.mxu0 0
    %3622 = vmatpush1.bf16.msra.mxu0 %v3613
    %3623 = vmatprep.subr.bf16.mxu0 0
    %3624 = vmatpush1.bf16.msra.mxu0 0
    %3625 = vmatprep.subr.bf16.mxu0 0
    %3626 = vmatpush1.bf16.msra.mxu0 0
    %3627 = vmatprep.subr.bf16.mxu0 0
    %3628 = vmatpush1.bf16.msra.mxu0 0
    %3629 = vmatprep.subr.bf16.mxu0 0
    %3630 = vmatpush1.bf16.msra.mxu0 0
    %3631 = vmatprep.subr.bf16.mxu0 0
    %3632 = vmatpush1.bf16.msra.mxu0 0
    %3633 = vmatprep.subr.bf16.mxu0 0
    %3634 = vmatpush1.bf16.msra.mxu0 0
    %3635 = vmatprep.subr.bf16.mxu0 0
    %3636 = vmatpush1.bf16.msra.mxu0 0
    %3637 = vmatprep.subr.bf16.mxu0 0
    %3638 = vmatpush1.bf16.msra.mxu0 0
    %3639 = vmatprep.subr.bf16.mxu0 0
    %3640 = vmatpush1.bf16.msra.mxu0 0
    %3641 = vmatprep.subr.bf16.mxu0 0
    %3642 = vmatpush1.bf16.msra.mxu0 0
    %3643 = vmatprep.subr.bf16.mxu0 0
    %3644 = vmatpush1.bf16.msra.mxu0 0
    %3645 = vmatprep.subr.bf16.mxu0 0
    %3646 = vmatpush1.bf16.msra.mxu0 0
    %3647 = vmatprep.subr.bf16.mxu0 0
    %3648 = vmatpush1.bf16.msra.mxu0 0
    %3649 = vmatprep.subr.bf16.mxu0 0
    %3650 = vmatpush1.bf16.msra.mxu0 0
    %3651 = vmatprep.mubr.bf16.mxu0 0
    %3652 = vmatmul.mubr.bf16.gmra.mrb[0].mxu0 %v3617
    %v3653 = vpop.f32.mrb[0].mxu0
    %v3654 = vadd.f32 0.0, %v3653
    %v3655 = vpop.f32.mrb[0].mxu0
    %v3656 = vpop.f32.mrb[0].mxu0
    %v3657 = vpop.f32.mrb[0].mxu0
    %3658 = vdwg.mxu0
    %v3663 = vunpack.c.l.b16 %v3146
    %v3664 = vunpack.c.l.b16 %v3147
    %v3665 = vunpack.c.l.b16 %v3148
    %v3666 = vunpack.c.l.b16 %v3149
    %v3667 = vpack.c.b16 %v3664, %v3663
    %v3668 = vpack.c.b16 %v3666, %v3665
    %v3672 = vsel %vm585, %v3144, 0
    %3674 = vmatprep.subr.bf16.mxu0 0
    %3675 = vmatpush1.bf16.msra.mxu0 %v3667
    %3676 = vmatprep.subr.bf16.mxu0 0
    %3677 = vmatpush1.bf16.msra.mxu0 %v3668
    %3678 = vmatprep.subr.bf16.mxu0 0
    %3679 = vmatpush1.bf16.msra.mxu0 0
    %3680 = vmatprep.subr.bf16.mxu0 0
    %3681 = vmatpush1.bf16.msra.mxu0 0
    %3682 = vmatprep.subr.bf16.mxu0 0
    %3683 = vmatpush1.bf16.msra.mxu0 0
    %3684 = vmatprep.subr.bf16.mxu0 0
    %3685 = vmatpush1.bf16.msra.mxu0 0
    %3686 = vmatprep.subr.bf16.mxu0 0
    %3687 = vmatpush1.bf16.msra.mxu0 0
    %3688 = vmatprep.subr.bf16.mxu0 0
    %3689 = vmatpush1.bf16.msra.mxu0 0
    %3690 = vmatprep.subr.bf16.mxu0 0
    %3691 = vmatpush1.bf16.msra.mxu0 0
    %3692 = vmatprep.subr.bf16.mxu0 0
    %3693 = vmatpush1.bf16.msra.mxu0 0
    %3694 = vmatprep.subr.bf16.mxu0 0
    %3695 = vmatpush1.bf16.msra.mxu0 0
    %3696 = vmatprep.subr.bf16.mxu0 0
    %3697 = vmatpush1.bf16.msra.mxu0 0
    %3698 = vmatprep.subr.bf16.mxu0 0
    %3699 = vmatpush1.bf16.msra.mxu0 0
    %3700 = vmatprep.subr.bf16.mxu0 0
    %3701 = vmatpush1.bf16.msra.mxu0 0
    %3702 = vmatprep.subr.bf16.mxu0 0
    %3703 = vmatpush1.bf16.msra.mxu0 0
    %3704 = vmatprep.subr.bf16.mxu0 0
    %3705 = vmatpush1.bf16.msra.mxu0 0
    %3706 = vmatprep.mubr.bf16.mxu0 0
    %3707 = vmatmul.mubr.bf16.gmra.mrb[0].mxu0 %v3672
    %v3708 = vpop.f32.mrb[0].mxu0
    %v3709 = vadd.f32 %v3654, %v3708
    %v3710 = vpop.f32.mrb[0].mxu0
    %v3711 = vpop.f32.mrb[0].mxu0
    %v3712 = vpop.f32.mrb[0].mxu0
    %3713 = vdwg.mxu0
    %s3714 = scalar_lea.vmem %s9, 384
    %v3715 = vld [vmem:[%s3714] sm:$0xf]
    %v3716 = vld [vmem:[%s3714 + $0x4] sm:$0xf]
    %v3717 = vld [vmem:[%s3714 + $0x8] sm:$0xf]
    %v3718 = vld [vmem:[%s3714 + $0xc] sm:$0xf]
    %v3719 = vld [vmem:[%s3714 + $0x10] sm:$0xf]
    %v3720 = vld [vmem:[%s3714 + $0x14] sm:$0xf]
    %v3721 = vld [vmem:[%s3714 + $0x18] sm:$0xf]
    %v3722 = vld [vmem:[%s3714 + $0x1c] sm:$0xf]
    %v3723 = vld [vmem:[%s3714 + $0x20] sm:$0xf]
    %v3724 = vld [vmem:[%s3714 + $0x24] sm:$0xf]
    %v3725 = vld [vmem:[%s3714 + $0x28] sm:$0xf]
    %v3726 = vld [vmem:[%s3714 + $0x2c] sm:$0xf]
    %v3727 = vld [vmem:[%s3714 + $0x30] sm:$0xf]
    %v3728 = vld [vmem:[%s3714 + $0x34] sm:$0xf]
    %v3729 = vld [vmem:[%s3714 + $0x38] sm:$0xf]
    %v3730 = vld [vmem:[%s3714 + $0x3c] sm:$0xf]
    %s3731 = scalar_lea.vmem %s12, 6
    %v3732 = vld [vmem:[%s3731] sm:$0x1]
    %v3734 = vlaneseq
    %v3735 = vshrl.u32 %v3734, 7
    %v3736 = vsub.s32 0, %v3735
    %v3737 = vrot.slane %v3732, %v3736
    %v3755 = vunpack.c.l.b16 %v3715
    %v3756 = vunpack.c.l.b16 %v3716
    %v3757 = vunpack.c.l.b16 %v3717
    %v3758 = vunpack.c.l.b16 %v3718
    %v3759 = vunpack.c.l.b16 %v3719
    %v3760 = vunpack.c.l.b16 %v3720
    %v3761 = vunpack.c.l.b16 %v3721
    %v3762 = vunpack.c.l.b16 %v3722
    %v3763 = vunpack.c.l.b16 %v3723
    %v3764 = vunpack.c.l.b16 %v3724
    %v3765 = vunpack.c.l.b16 %v3725
    %v3766 = vunpack.c.l.b16 %v3726
    %v3767 = vunpack.c.l.b16 %v3727
    %v3768 = vunpack.c.l.b16 %v3728
    %v3769 = vunpack.c.l.b16 %v3729
    %v3770 = vunpack.c.l.b16 %v3730
    %v3771 = vpack.c.b16 %v3756, %v3755
    %v3772 = vpack.c.b16 %v3758, %v3757
    %v3773 = vpack.c.b16 %v3760, %v3759
    %v3774 = vpack.c.b16 %v3762, %v3761
    %v3775 = vpack.c.b16 %v3764, %v3763
    %v3776 = vpack.c.b16 %v3766, %v3765
    %v3777 = vpack.c.b16 %v3768, %v3767
    %v3778 = vpack.c.b16 %v3770, %v3769
    %3787 = vmatprep.subr.bf16.mxu0 0
    %3788 = vmatpush1.bf16.msra.mxu0 %v3771
    %3789 = vmatprep.subr.bf16.mxu0 0
    %3790 = vmatpush1.bf16.msra.mxu0 %v3772
    %3791 = vmatprep.subr.bf16.mxu0 0
    %3792 = vmatpush1.bf16.msra.mxu0 %v3773
    %3793 = vmatprep.subr.bf16.mxu0 0
    %3794 = vmatpush1.bf16.msra.mxu0 %v3774
    %3795 = vmatprep.subr.bf16.mxu0 0
    %3796 = vmatpush1.bf16.msra.mxu0 %v3775
    %3797 = vmatprep.subr.bf16.mxu0 0
    %3798 = vmatpush1.bf16.msra.mxu0 %v3776
    %3799 = vmatprep.subr.bf16.mxu0 0
    %3800 = vmatpush1.bf16.msra.mxu0 %v3777
    %3801 = vmatprep.subr.bf16.mxu0 0
    %3802 = vmatpush1.bf16.msra.mxu0 %v3778
    %3803 = vmatprep.subr.bf16.mxu0 0
    %3804 = vmatpush1.bf16.msra.mxu0 0
    %3805 = vmatprep.subr.bf16.mxu0 0
    %3806 = vmatpush1.bf16.msra.mxu0 0
    %3807 = vmatprep.subr.bf16.mxu0 0
    %3808 = vmatpush1.bf16.msra.mxu0 0
    %3809 = vmatprep.subr.bf16.mxu0 0
    %3810 = vmatpush1.bf16.msra.mxu0 0
    %3811 = vmatprep.subr.bf16.mxu0 0
    %3812 = vmatpush1.bf16.msra.mxu0 0
    %3813 = vmatprep.subr.bf16.mxu0 0
    %3814 = vmatpush1.bf16.msra.mxu0 0
    %3815 = vmatprep.subr.bf16.mxu0 0
    %3816 = vmatpush1.bf16.msra.mxu0 0
    %3817 = vmatprep.subr.bf16.mxu0 0
    %3818 = vmatpush1.bf16.msra.mxu0 0
    %3819 = vmatprep.mubr.bf16.mxu0 0
    %3820 = vmatmul.mubr.bf16.gmra.mrb[0].mxu0 %v2695
    %v3821 = vpop.f32.mrb[0].mxu0
    %v3822 = vadd.f32 %v3737, %v3821
    %v3823 = vpop.f32.mrb[0].mxu0
    %v3824 = vpop.f32.mrb[0].mxu0
    %v3825 = vpop.f32.mrb[0].mxu0
    %3826 = vdwg.mxu0
    %s3827 = scalar_lea.vmem %s10, 384
    %v3828 = vld [vmem:[%s3827] sm:$0xf]
    %v3829 = vld [vmem:[%s3827 + $0x4] sm:$0xf]
    %v3830 = vld [vmem:[%s3827 + $0x8] sm:$0xf]
    %v3831 = vld [vmem:[%s3827 + $0xc] sm:$0xf]
    %v3832 = vld [vmem:[%s3827 + $0x10] sm:$0xf]
    %v3833 = vld [vmem:[%s3827 + $0x14] sm:$0xf]
    %v3834 = vld [vmem:[%s3827 + $0x18] sm:$0xf]
    %v3835 = vld [vmem:[%s3827 + $0x1c] sm:$0xf]
    %v3836 = vld [vmem:[%s3827 + $0x20] sm:$0xf]
    %v3837 = vld [vmem:[%s3827 + $0x24] sm:$0xf]
    %v3838 = vld [vmem:[%s3827 + $0x28] sm:$0xf]
    %v3839 = vld [vmem:[%s3827 + $0x2c] sm:$0xf]
    %v3840 = vld [vmem:[%s3827 + $0x30] sm:$0xf]
    %v3841 = vld [vmem:[%s3827 + $0x34] sm:$0xf]
    %v3842 = vld [vmem:[%s3827 + $0x38] sm:$0xf]
    %v3843 = vld [vmem:[%s3827 + $0x3c] sm:$0xf]
    %s3844 = scalar_lea.vmem %s13, 6
    %v3845 = vld [vmem:[%s3844] sm:$0x1]
    %v3847 = vlaneseq
    %v3848 = vshrl.u32 %v3847, 7
    %v3849 = vsub.s32 0, %v3848
    %v3850 = vrot.slane %v3845, %v3849
    %v3868 = vunpack.c.l.b16 %v3828
    %v3869 = vunpack.c.l.b16 %v3829
    %v3870 = vunpack.c.l.b16 %v3830
    %v3871 = vunpack.c.l.b16 %v3831
    %v3872 = vunpack.c.l.b16 %v3832
    %v3873 = vunpack.c.l.b16 %v3833
    %v3874 = vunpack.c.l.b16 %v3834
    %v3875 = vunpack.c.l.b16 %v3835
    %v3876 = vunpack.c.l.b16 %v3836
    %v3877 = vunpack.c.l.b16 %v3837
    %v3878 = vunpack.c.l.b16 %v3838
    %v3879 = vunpack.c.l.b16 %v3839
    %v3880 = vunpack.c.l.b16 %v3840
    %v3881 = vunpack.c.l.b16 %v3841
    %v3882 = vunpack.c.l.b16 %v3842
    %v3883 = vunpack.c.l.b16 %v3843
    %v3884 = vpack.c.b16 %v3869, %v3868
    %v3885 = vpack.c.b16 %v3871, %v3870
    %v3886 = vpack.c.b16 %v3873, %v3872
    %v3887 = vpack.c.b16 %v3875, %v3874
    %v3888 = vpack.c.b16 %v3877, %v3876
    %v3889 = vpack.c.b16 %v3879, %v3878
    %v3890 = vpack.c.b16 %v3881, %v3880
    %v3891 = vpack.c.b16 %v3883, %v3882
    %3900 = vmatprep.subr.bf16.mxu0 0
    %3901 = vmatpush1.bf16.msra.mxu0 %v3884
    %3902 = vmatprep.subr.bf16.mxu0 0
    %3903 = vmatpush1.bf16.msra.mxu0 %v3885
    %3904 = vmatprep.subr.bf16.mxu0 0
    %3905 = vmatpush1.bf16.msra.mxu0 %v3886
    %3906 = vmatprep.subr.bf16.mxu0 0
    %3907 = vmatpush1.bf16.msra.mxu0 %v3887
    %3908 = vmatprep.subr.bf16.mxu0 0
    %3909 = vmatpush1.bf16.msra.mxu0 %v3888
    %3910 = vmatprep.subr.bf16.mxu0 0
    %3911 = vmatpush1.bf16.msra.mxu0 %v3889
    %3912 = vmatprep.subr.bf16.mxu0 0
    %3913 = vmatpush1.bf16.msra.mxu0 %v3890
    %3914 = vmatprep.subr.bf16.mxu0 0
    %3915 = vmatpush1.bf16.msra.mxu0 %v3891
    %3916 = vmatprep.subr.bf16.mxu0 0
    %3917 = vmatpush1.bf16.msra.mxu0 0
    %3918 = vmatprep.subr.bf16.mxu0 0
    %3919 = vmatpush1.bf16.msra.mxu0 0
    %3920 = vmatprep.subr.bf16.mxu0 0
    %3921 = vmatpush1.bf16.msra.mxu0 0
    %3922 = vmatprep.subr.bf16.mxu0 0
    %3923 = vmatpush1.bf16.msra.mxu0 0
    %3924 = vmatprep.subr.bf16.mxu0 0
    %3925 = vmatpush1.bf16.msra.mxu0 0
    %3926 = vmatprep.subr.bf16.mxu0 0
    %3927 = vmatpush1.bf16.msra.mxu0 0
    %3928 = vmatprep.subr.bf16.mxu0 0
    %3929 = vmatpush1.bf16.msra.mxu0 0
    %3930 = vmatprep.subr.bf16.mxu0 0
    %3931 = vmatpush1.bf16.msra.mxu0 0
    %3932 = vmatprep.mubr.bf16.mxu0 0
    %3933 = vmatmul.mubr.bf16.gmra.mrb[0].mxu0 %v2695
    %v3934 = vpop.f32.mrb[0].mxu0
    %v3935 = vadd.f32 %v3850, %v3934
    %v3936 = vpop.f32.mrb[0].mxu0
    %v3937 = vpop.f32.mrb[0].mxu0
    %v3938 = vpop.f32.mrb[0].mxu0
    %3939 = vdwg.mxu0
    %s3940 = scalar_lea.vmem %s11, 384
    %v3941 = vld [vmem:[%s3940] sm:$0xf]
    %v3942 = vld [vmem:[%s3940 + $0x4] sm:$0xf]
    %v3943 = vld [vmem:[%s3940 + $0x8] sm:$0xf]
    %v3944 = vld [vmem:[%s3940 + $0xc] sm:$0xf]
    %v3945 = vld [vmem:[%s3940 + $0x10] sm:$0xf]
    %v3946 = vld [vmem:[%s3940 + $0x14] sm:$0xf]
    %v3947 = vld [vmem:[%s3940 + $0x18] sm:$0xf]
    %v3948 = vld [vmem:[%s3940 + $0x1c] sm:$0xf]
    %v3949 = vld [vmem:[%s3940 + $0x20] sm:$0xf]
    %v3950 = vld [vmem:[%s3940 + $0x24] sm:$0xf]
    %v3951 = vld [vmem:[%s3940 + $0x28] sm:$0xf]
    %v3952 = vld [vmem:[%s3940 + $0x2c] sm:$0xf]
    %v3953 = vld [vmem:[%s3940 + $0x30] sm:$0xf]
    %v3954 = vld [vmem:[%s3940 + $0x34] sm:$0xf]
    %v3955 = vld [vmem:[%s3940 + $0x38] sm:$0xf]
    %v3956 = vld [vmem:[%s3940 + $0x3c] sm:$0xf]
    %s3957 = scalar_lea.vmem %s14, 6
    %v3958 = vld [vmem:[%s3957] sm:$0x1]
    %v3960 = vlaneseq
    %v3961 = vshrl.u32 %v3960, 7
    %v3962 = vsub.s32 0, %v3961
    %v3963 = vrot.slane %v3958, %v3962
    %v3981 = vunpack.c.l.b16 %v3941
    %v3982 = vunpack.c.l.b16 %v3942
    %v3983 = vunpack.c.l.b16 %v3943
    %v3984 = vunpack.c.l.b16 %v3944
    %v3985 = vunpack.c.l.b16 %v3945
    %v3986 = vunpack.c.l.b16 %v3946
    %v3987 = vunpack.c.l.b16 %v3947
    %v3988 = vunpack.c.l.b16 %v3948
    %v3989 = vunpack.c.l.b16 %v3949
    %v3990 = vunpack.c.l.b16 %v3950
    %v3991 = vunpack.c.l.b16 %v3951
    %v3992 = vunpack.c.l.b16 %v3952
    %v3993 = vunpack.c.l.b16 %v3953
    %v3994 = vunpack.c.l.b16 %v3954
    %v3995 = vunpack.c.l.b16 %v3955
    %v3996 = vunpack.c.l.b16 %v3956
    %v3997 = vpack.c.b16 %v3982, %v3981
    %v3998 = vpack.c.b16 %v3984, %v3983
    %v3999 = vpack.c.b16 %v3986, %v3985
    %v4000 = vpack.c.b16 %v3988, %v3987
    %v4001 = vpack.c.b16 %v3990, %v3989
    %v4002 = vpack.c.b16 %v3992, %v3991
    %v4003 = vpack.c.b16 %v3994, %v3993
    %v4004 = vpack.c.b16 %v3996, %v3995
    %4013 = vmatprep.subr.bf16.mxu0 0
    %4014 = vmatpush1.bf16.msra.mxu0 %v3997
    %4015 = vmatprep.subr.bf16.mxu0 0
    %4016 = vmatpush1.bf16.msra.mxu0 %v3998
    %4017 = vmatprep.subr.bf16.mxu0 0
    %4018 = vmatpush1.bf16.msra.mxu0 %v3999
    %4019 = vmatprep.subr.bf16.mxu0 0
    %4020 = vmatpush1.bf16.msra.mxu0 %v4000
    %4021 = vmatprep.subr.bf16.mxu0 0
    %4022 = vmatpush1.bf16.msra.mxu0 %v4001
    %4023 = vmatprep.subr.bf16.mxu0 0
    %4024 = vmatpush1.bf16.msra.mxu0 %v4002
    %4025 = vmatprep.subr.bf16.mxu0 0
    %4026 = vmatpush1.bf16.msra.mxu0 %v4003
    %4027 = vmatprep.subr.bf16.mxu0 0
    %4028 = vmatpush1.bf16.msra.mxu0 %v4004
    %4029 = vmatprep.subr.bf16.mxu0 0
    %4030 = vmatpush1.bf16.msra.mxu0 0
    %4031 = vmatprep.subr.bf16.mxu0 0
    %4032 = vmatpush1.bf16.msra.mxu0 0
    %4033 = vmatprep.subr.bf16.mxu0 0
    %4034 = vmatpush1.bf16.msra.mxu0 0
    %4035 = vmatprep.subr.bf16.mxu0 0
    %4036 = vmatpush1.bf16.msra.mxu0 0
    %4037 = vmatprep.subr.bf16.mxu0 0
    %4038 = vmatpush1.bf16.msra.mxu0 0
    %4039 = vmatprep.subr.bf16.mxu0 0
    %4040 = vmatpush1.bf16.msra.mxu0 0
    %4041 = vmatprep.subr.bf16.mxu0 0
    %4042 = vmatpush1.bf16.msra.mxu0 0
    %4043 = vmatprep.subr.bf16.mxu0 0
    %4044 = vmatpush1.bf16.msra.mxu0 0
    %4045 = vmatprep.mubr.bf16.mxu0 0
    %4046 = vmatmul.mubr.bf16.gmra.mrb[0].mxu0 %v2695
    %v4047 = vpop.f32.mrb[0].mxu0
    %v4048 = vadd.f32 %v3963, %v4047
    %v4049 = vpop.f32.mrb[0].mxu0
    %v4050 = vpop.f32.mrb[0].mxu0
    %v4051 = vpop.f32.mrb[0].mxu0
    %4052 = vdwg.mxu0
    %v4053 = vpack.c.bf16 %v3822, %v3822
    %v4054 = vpack.c.bf16 %v3935, %v3935
    %v4056 = vsel %vm585, %v4053, 0
    %v4059 = vsel %vm585, %v4054, 0
    %4061 = vmatprep.subr.bf16.mxu0 0
    %4062 = vmatpush1.bf16.xpose.msra.mxu0 %v4059
    %4063 = vmatprep.subr.bf16.mxu0 0
    %4064 = vmatpush1.bf16.xpose.msra.mxu0 0
    %4065 = vmatprep.subr.bf16.mxu0 0
    %4066 = vmatpush1.bf16.xpose.msra.mxu0 0
    %4067 = vmatprep.subr.bf16.mxu0 0
    %4068 = vmatpush1.bf16.xpose.msra.mxu0 0
    %4069 = vmatprep.subr.bf16.mxu0 0
    %4070 = vmatpush1.bf16.xpose.msra.mxu0 0
    %4071 = vmatprep.subr.bf16.mxu0 0
    %4072 = vmatpush1.bf16.xpose.msra.mxu0 0
    %4073 = vmatprep.subr.bf16.mxu0 0
    %4074 = vmatpush1.bf16.xpose.msra.mxu0 0
    %4075 = vmatprep.subr.bf16.mxu0 0
    %4076 = vmatpush1.bf16.xpose.msra.mxu0 0
    %4077 = vmatprep.subr.bf16.mxu0 0
    %4078 = vmatpush1.bf16.xpose.msra.mxu0 0
    %4079 = vmatprep.subr.bf16.mxu0 0
    %4080 = vmatpush1.bf16.xpose.msra.mxu0 0
    %4081 = vmatprep.subr.bf16.mxu0 0
    %4082 = vmatpush1.bf16.xpose.msra.mxu0 0
    %4083 = vmatprep.subr.bf16.mxu0 0
    %4084 = vmatpush1.bf16.xpose.msra.mxu0 0
    %4085 = vmatprep.subr.bf16.mxu0 0
    %4086 = vmatpush1.bf16.xpose.msra.mxu0 0
    %4087 = vmatprep.subr.bf16.mxu0 0
    %4088 = vmatpush1.bf16.xpose.msra.mxu0 0
    %4089 = vmatprep.subr.bf16.mxu0 0
    %4090 = vmatpush1.bf16.xpose.msra.mxu0 0
    %4091 = vmatprep.subr.bf16.mxu0 0
    %4092 = vmatpush1.bf16.xpose.msra.mxu0 0
    %4093 = vmatprep.mubr.bf16.mxu0 0
    %4094 = vmatmul.mubr.bf16.gmra.mrb[0].mxu0 %v4056
    %v4095 = vpop.f32.mrb[0].mxu0
    %v4096 = vadd.f32 0.0, %v4095
    %v4097 = vpop.f32.mrb[0].mxu0
    %v4098 = vpop.f32.mrb[0].mxu0
    %v4099 = vpop.f32.mrb[0].mxu0
    %4100 = vdwg.mxu0
    %v4101 = vmul.f32 %v4096, 0.17677669
    %v4102 = vadd.f32 %v4101, %v81
    %v4103 = vsel %vm634, %v4102, -inf
    %4104 = vmax.xlane.f32.xlu0 %v4103
    %v4105 = vpop.xlane.xlu0 %4104
    %v4106 = vsub.f32 %v4102, %v4105
    %v4107 = vmul.f32 %v4106, 1.442695
    %v4108 = vpow.pop %v4107
    %v4109 = vsel %vm634, %v4108, 0.0
    %4110 = vadd.xlane.f32.xlu0 %v4109
    %v4111 = vpop.xlane.xlu0 %4110
    %v4112 = vrcp.pop %v4111
    %v4113 = vmul.f32 %v4108, %v4112
    %v4114 = vpack.c.bf16 %v4113, %v4113
    %v4115 = vpack.c.bf16 %v4048, %v4048
    %v4117 = vsel %vm634, %v4114, 0
    %v4120 = vsel %vm651, %v4115, 0
    %4122 = vmatprep.subr.bf16.mxu0 0
    %4123 = vmatpush1.bf16.msra.mxu0 %v4120
    %4124 = vmatprep.subr.bf16.mxu0 0
    %4125 = vmatpush1.bf16.msra.mxu0 0
    %4126 = vmatprep.subr.bf16.mxu0 0
    %4127 = vmatpush1.bf16.msra.mxu0 0
    %4128 = vmatprep.subr.bf16.mxu0 0
    %4129 = vmatpush1.bf16.msra.mxu0 0
    %4130 = vmatprep.subr.bf16.mxu0 0
    %4131 = vmatpush1.bf16.msra.mxu0 0
    %4132 = vmatprep.subr.bf16.mxu0 0
    %4133 = vmatpush1.bf16.msra.mxu0 0
    %4134 = vmatprep.subr.bf16.mxu0 0
    %4135 = vmatpush1.bf16.msra.mxu0 0
    %4136 = vmatprep.subr.bf16.mxu0 0
    %4137 = vmatpush1.bf16.msra.mxu0 0
    %4138 = vmatprep.subr.bf16.mxu0 0
    %4139 = vmatpush1.bf16.msra.mxu0 0
    %4140 = vmatprep.subr.bf16.mxu0 0
    %4141 = vmatpush1.bf16.msra.mxu0 0
    %4142 = vmatprep.subr.bf16.mxu0 0
    %4143 = vmatpush1.bf16.msra.mxu0 0
    %4144 = vmatprep.subr.bf16.mxu0 0
    %4145 = vmatpush1.bf16.msra.mxu0 0
    %4146 = vmatprep.subr.bf16.mxu0 0
    %4147 = vmatpush1.bf16.msra.mxu0 0
    %4148 = vmatprep.subr.bf16.mxu0 0
    %4149 = vmatpush1.bf16.msra.mxu0 0
    %4150 = vmatprep.subr.bf16.mxu0 0
    %4151 = vmatpush1.bf16.msra.mxu0 0
    %4152 = vmatprep.subr.bf16.mxu0 0
    %4153 = vmatpush1.bf16.msra.mxu0 0
    %4154 = vmatprep.mubr.bf16.mxu0 0
    %4155 = vmatmul.mubr.bf16.gmra.mrb[0].mxu0 %v4117
    %v4156 = vpop.f32.mrb[0].mxu0
    %v4157 = vadd.f32 0.0, %v4156
    %v4158 = vpop.f32.mrb[0].mxu0
    %v4159 = vpop.f32.mrb[0].mxu0
    %v4160 = vpop.f32.mrb[0].mxu0
    %4161 = vdwg.mxu0
    %v4162 = vpack.c.bf16 %v4157, %v4157
    %s4163 = scalar_lea.vmem %s15, 96
    %v4164 = vld [vmem:[%s4163] sm:$0xf]
    %v4165 = vld [vmem:[%s4163 + $0x4] sm:$0xf]
    %v4166 = vld [vmem:[%s4163 + $0x8] sm:$0xf]
    %v4167 = vld [vmem:[%s4163 + $0xc] sm:$0xf]
    %v4172 = vunpack.c.l.b16 %v4164
    %v4173 = vunpack.c.l.b16 %v4165
    %v4174 = vunpack.c.l.b16 %v4166
    %v4175 = vunpack.c.l.b16 %v4167
    %v4176 = vpack.c.b16 %v4173, %v4172
    %v4177 = vpack.c.b16 %v4175, %v4174
    %v4181 = vsel %vm585, %v4162, 0
    %4183 = vmatprep.subr.bf16.mxu0 0
    %4184 = vmatpush1.bf16.msra.mxu0 %v4176
    %4185 = vmatprep.subr.bf16.mxu0 0
    %4186 = vmatpush1.bf16.msra.mxu0 %v4177
    %4187 = vmatprep.subr.bf16.mxu0 0
    %4188 = vmatpush1.bf16.msra.mxu0 0
    %4189 = vmatprep.subr.bf16.mxu0 0
    %4190 = vmatpush1.bf16.msra.mxu0 0
    %4191 = vmatprep.subr.bf16.mxu0 0
    %4192 = vmatpush1.bf16.msra.mxu0 0
    %4193 = vmatprep.subr.bf16.mxu0 0
    %4194 = vmatpush1.bf16.msra.mxu0 0
    %4195 = vmatprep.subr.bf16.mxu0 0
    %4196 = vmatpush1.bf16.msra.mxu0 0
    %4197 = vmatprep.subr.bf16.mxu0 0
    %4198 = vmatpush1.bf16.msra.mxu0 0
    %4199 = vmatprep.subr.bf16.mxu0 0
    %4200 = vmatpush1.bf16.msra.mxu0 0
    %4201 = vmatprep.subr.bf16.mxu0 0
    %4202 = vmatpush1.bf16.msra.mxu0 0
    %4203 = vmatprep.subr.bf16.mxu0 0
    %4204 = vmatpush1.bf16.msra.mxu0 0
    %4205 = vmatprep.subr.bf16.mxu0 0
    %4206 = vmatpush1.bf16.msra.mxu0 0
    %4207 = vmatprep.subr.bf16.mxu0 0
    %4208 = vmatpush1.bf16.msra.mxu0 0
    %4209 = vmatprep.subr.bf16.mxu0 0
    %4210 = vmatpush1.bf16.msra.mxu0 0
    %4211 = vmatprep.subr.bf16.mxu0 0
    %4212 = vmatpush1.bf16.msra.mxu0 0
    %4213 = vmatprep.subr.bf16.mxu0 0
    %4214 = vmatpush1.bf16.msra.mxu0 0
    %4215 = vmatprep.mubr.bf16.mxu0 0
    %4216 = vmatmul.mubr.bf16.gmra.mrb[0].mxu0 %v4181
    %v4217 = vpop.f32.mrb[0].mxu0
    %v4218 = vadd.f32 0.0, %v4217
    %v4219 = vpop.f32.mrb[0].mxu0
    %v4220 = vpop.f32.mrb[0].mxu0
    %v4221 = vpop.f32.mrb[0].mxu0
    %4222 = vdwg.mxu0
    %v4223 = vadd.f32 %v3709, %v4218
    %s4224 = scalar_lea.vmem %s9, 448
    %v4225 = vld [vmem:[%s4224] sm:$0xf]
    %v4226 = vld [vmem:[%s4224 + $0x4] sm:$0xf]
    %v4227 = vld [vmem:[%s4224 + $0x8] sm:$0xf]
    %v4228 = vld [vmem:[%s4224 + $0xc] sm:$0xf]
    %v4229 = vld [vmem:[%s4224 + $0x10] sm:$0xf]
    %v4230 = vld [vmem:[%s4224 + $0x14] sm:$0xf]
    %v4231 = vld [vmem:[%s4224 + $0x18] sm:$0xf]
    %v4232 = vld [vmem:[%s4224 + $0x1c] sm:$0xf]
    %v4233 = vld [vmem:[%s4224 + $0x20] sm:$0xf]
    %v4234 = vld [vmem:[%s4224 + $0x24] sm:$0xf]
    %v4235 = vld [vmem:[%s4224 + $0x28] sm:$0xf]
    %v4236 = vld [vmem:[%s4224 + $0x2c] sm:$0xf]
    %v4237 = vld [vmem:[%s4224 + $0x30] sm:$0xf]
    %v4238 = vld [vmem:[%s4224 + $0x34] sm:$0xf]
    %v4239 = vld [vmem:[%s4224 + $0x38] sm:$0xf]
    %v4240 = vld [vmem:[%s4224 + $0x3c] sm:$0xf]
    %s4241 = scalar_lea.vmem %s12, 7
    %v4242 = vld [vmem:[%s4241] sm:$0x1]
    %v4244 = vlaneseq
    %v4245 = vshrl.u32 %v4244, 7
    %v4246 = vsub.s32 0, %v4245
    %v4247 = vrot.slane %v4242, %v4246
    %v4265 = vunpack.c.l.b16 %v4225
    %v4266 = vunpack.c.l.b16 %v4226
    %v4267 = vunpack.c.l.b16 %v4227
    %v4268 = vunpack.c.l.b16 %v4228
    %v4269 = vunpack.c.l.b16 %v4229
    %v4270 = vunpack.c.l.b16 %v4230
    %v4271 = vunpack.c.l.b16 %v4231
    %v4272 = vunpack.c.l.b16 %v4232
    %v4273 = vunpack.c.l.b16 %v4233
    %v4274 = vunpack.c.l.b16 %v4234
    %v4275 = vunpack.c.l.b16 %v4235
    %v4276 = vunpack.c.l.b16 %v4236
    %v4277 = vunpack.c.l.b16 %v4237
    %v4278 = vunpack.c.l.b16 %v4238
    %v4279 = vunpack.c.l.b16 %v4239
    %v4280 = vunpack.c.l.b16 %v4240
    %v4281 = vpack.c.b16 %v4266, %v4265
    %v4282 = vpack.c.b16 %v4268, %v4267
    %v4283 = vpack.c.b16 %v4270, %v4269
    %v4284 = vpack.c.b16 %v4272, %v4271
    %v4285 = vpack.c.b16 %v4274, %v4273
    %v4286 = vpack.c.b16 %v4276, %v4275
    %v4287 = vpack.c.b16 %v4278, %v4277
    %v4288 = vpack.c.b16 %v4280, %v4279
    %4297 = vmatprep.subr.bf16.mxu0 0
    %4298 = vmatpush1.bf16.msra.mxu0 %v4281
    %4299 = vmatprep.subr.bf16.mxu0 0
    %4300 = vmatpush1.bf16.msra.mxu0 %v4282
    %4301 = vmatprep.subr.bf16.mxu0 0
    %4302 = vmatpush1.bf16.msra.mxu0 %v4283
    %4303 = vmatprep.subr.bf16.mxu0 0
    %4304 = vmatpush1.bf16.msra.mxu0 %v4284
    %4305 = vmatprep.subr.bf16.mxu0 0
    %4306 = vmatpush1.bf16.msra.mxu0 %v4285
    %4307 = vmatprep.subr.bf16.mxu0 0
    %4308 = vmatpush1.bf16.msra.mxu0 %v4286
    %4309 = vmatprep.subr.bf16.mxu0 0
    %4310 = vmatpush1.bf16.msra.mxu0 %v4287
    %4311 = vmatprep.subr.bf16.mxu0 0
    %4312 = vmatpush1.bf16.msra.mxu0 %v4288
    %4313 = vmatprep.subr.bf16.mxu0 0
    %4314 = vmatpush1.bf16.msra.mxu0 0
    %4315 = vmatprep.subr.bf16.mxu0 0
    %4316 = vmatpush1.bf16.msra.mxu0 0
    %4317 = vmatprep.subr.bf16.mxu0 0
    %4318 = vmatpush1.bf16.msra.mxu0 0
    %4319 = vmatprep.subr.bf16.mxu0 0
    %4320 = vmatpush1.bf16.msra.mxu0 0
    %4321 = vmatprep.subr.bf16.mxu0 0
    %4322 = vmatpush1.bf16.msra.mxu0 0
    %4323 = vmatprep.subr.bf16.mxu0 0
    %4324 = vmatpush1.bf16.msra.mxu0 0
    %4325 = vmatprep.subr.bf16.mxu0 0
    %4326 = vmatpush1.bf16.msra.mxu0 0
    %4327 = vmatprep.subr.bf16.mxu0 0
    %4328 = vmatpush1.bf16.msra.mxu0 0
    %4329 = vmatprep.mubr.bf16.mxu0 0
    %4330 = vmatmul.mubr.bf16.gmra.mrb[0].mxu0 %v2695
    %v4331 = vpop.f32.mrb[0].mxu0
    %v4332 = vadd.f32 %v4247, %v4331
    %v4333 = vpop.f32.mrb[0].mxu0
    %v4334 = vpop.f32.mrb[0].mxu0
    %v4335 = vpop.f32.mrb[0].mxu0
    %4336 = vdwg.mxu0
    %s4337 = scalar_lea.vmem %s10, 448
    %v4338 = vld [vmem:[%s4337] sm:$0xf]
    %v4339 = vld [vmem:[%s4337 + $0x4] sm:$0xf]
    %v4340 = vld [vmem:[%s4337 + $0x8] sm:$0xf]
    %v4341 = vld [vmem:[%s4337 + $0xc] sm:$0xf]
    %v4342 = vld [vmem:[%s4337 + $0x10] sm:$0xf]
    %v4343 = vld [vmem:[%s4337 + $0x14] sm:$0xf]
    %v4344 = vld [vmem:[%s4337 + $0x18] sm:$0xf]
    %v4345 = vld [vmem:[%s4337 + $0x1c] sm:$0xf]
    %v4346 = vld [vmem:[%s4337 + $0x20] sm:$0xf]
    %v4347 = vld [vmem:[%s4337 + $0x24] sm:$0xf]
    %v4348 = vld [vmem:[%s4337 + $0x28] sm:$0xf]
    %v4349 = vld [vmem:[%s4337 + $0x2c] sm:$0xf]
    %v4350 = vld [vmem:[%s4337 + $0x30] sm:$0xf]
    %v4351 = vld [vmem:[%s4337 + $0x34] sm:$0xf]
    %v4352 = vld [vmem:[%s4337 + $0x38] sm:$0xf]
    %v4353 = vld [vmem:[%s4337 + $0x3c] sm:$0xf]
    %s4354 = scalar_lea.vmem %s13, 7
    %v4355 = vld [vmem:[%s4354] sm:$0x1]
    %v4357 = vlaneseq
    %v4358 = vshrl.u32 %v4357, 7
    %v4359 = vsub.s32 0, %v4358
    %v4360 = vrot.slane %v4355, %v4359
    %v4378 = vunpack.c.l.b16 %v4338
    %v4379 = vunpack.c.l.b16 %v4339
    %v4380 = vunpack.c.l.b16 %v4340
    %v4381 = vunpack.c.l.b16 %v4341
    %v4382 = vunpack.c.l.b16 %v4342
    %v4383 = vunpack.c.l.b16 %v4343
    %v4384 = vunpack.c.l.b16 %v4344
    %v4385 = vunpack.c.l.b16 %v4345
    %v4386 = vunpack.c.l.b16 %v4346
    %v4387 = vunpack.c.l.b16 %v4347
    %v4388 = vunpack.c.l.b16 %v4348
    %v4389 = vunpack.c.l.b16 %v4349
    %v4390 = vunpack.c.l.b16 %v4350
    %v4391 = vunpack.c.l.b16 %v4351
    %v4392 = vunpack.c.l.b16 %v4352
    %v4393 = vunpack.c.l.b16 %v4353
    %v4394 = vpack.c.b16 %v4379, %v4378
    %v4395 = vpack.c.b16 %v4381, %v4380
    %v4396 = vpack.c.b16 %v4383, %v4382
    %v4397 = vpack.c.b16 %v4385, %v4384
    %v4398 = vpack.c.b16 %v4387, %v4386
    %v4399 = vpack.c.b16 %v4389, %v4388
    %v4400 = vpack.c.b16 %v4391, %v4390
    %v4401 = vpack.c.b16 %v4393, %v4392
    %4410 = vmatprep.subr.bf16.mxu0 0
    %4411 = vmatpush1.bf16.msra.mxu0 %v4394
    %4412 = vmatprep.subr.bf16.mxu0 0
    %4413 = vmatpush1.bf16.msra.mxu0 %v4395
    %4414 = vmatprep.subr.bf16.mxu0 0
    %4415 = vmatpush1.bf16.msra.mxu0 %v4396
    %4416 = vmatprep.subr.bf16.mxu0 0
    %4417 = vmatpush1.bf16.msra.mxu0 %v4397
    %4418 = vmatprep.subr.bf16.mxu0 0
    %4419 = vmatpush1.bf16.msra.mxu0 %v4398
    %4420 = vmatprep.subr.bf16.mxu0 0
    %4421 = vmatpush1.bf16.msra.mxu0 %v4399
    %4422 = vmatprep.subr.bf16.mxu0 0
    %4423 = vmatpush1.bf16.msra.mxu0 %v4400
    %4424 = vmatprep.subr.bf16.mxu0 0
    %4425 = vmatpush1.bf16.msra.mxu0 %v4401
    %4426 = vmatprep.subr.bf16.mxu0 0
    %4427 = vmatpush1.bf16.msra.mxu0 0
    %4428 = vmatprep.subr.bf16.mxu0 0
    %4429 = vmatpush1.bf16.msra.mxu0 0
    %4430 = vmatprep.subr.bf16.mxu0 0
    %4431 = vmatpush1.bf16.msra.mxu0 0
    %4432 = vmatprep.subr.bf16.mxu0 0
    %4433 = vmatpush1.bf16.msra.mxu0 0
    %4434 = vmatprep.subr.bf16.mxu0 0
    %4435 = vmatpush1.bf16.msra.mxu0 0
    %4436 = vmatprep.subr.bf16.mxu0 0
    %4437 = vmatpush1.bf16.msra.mxu0 0
    %4438 = vmatprep.subr.bf16.mxu0 0
    %4439 = vmatpush1.bf16.msra.mxu0 0
    %4440 = vmatprep.subr.bf16.mxu0 0
    %4441 = vmatpush1.bf16.msra.mxu0 0
    %4442 = vmatprep.mubr.bf16.mxu0 0
    %4443 = vmatmul.mubr.bf16.gmra.mrb[0].mxu0 %v2695
    %v4444 = vpop.f32.mrb[0].mxu0
    %v4445 = vadd.f32 %v4360, %v4444
    %v4446 = vpop.f32.mrb[0].mxu0
    %v4447 = vpop.f32.mrb[0].mxu0
    %v4448 = vpop.f32.mrb[0].mxu0
    %4449 = vdwg.mxu0
    %s4450 = scalar_lea.vmem %s11, 448
    %v4451 = vld [vmem:[%s4450] sm:$0xf]
    %v4452 = vld [vmem:[%s4450 + $0x4] sm:$0xf]
    %v4453 = vld [vmem:[%s4450 + $0x8] sm:$0xf]
    %v4454 = vld [vmem:[%s4450 + $0xc] sm:$0xf]
    %v4455 = vld [vmem:[%s4450 + $0x10] sm:$0xf]
    %v4456 = vld [vmem:[%s4450 + $0x14] sm:$0xf]
    %v4457 = vld [vmem:[%s4450 + $0x18] sm:$0xf]
    %v4458 = vld [vmem:[%s4450 + $0x1c] sm:$0xf]
    %v4459 = vld [vmem:[%s4450 + $0x20] sm:$0xf]
    %v4460 = vld [vmem:[%s4450 + $0x24] sm:$0xf]
    %v4461 = vld [vmem:[%s4450 + $0x28] sm:$0xf]
    %v4462 = vld [vmem:[%s4450 + $0x2c] sm:$0xf]
    %v4463 = vld [vmem:[%s4450 + $0x30] sm:$0xf]
    %v4464 = vld [vmem:[%s4450 + $0x34] sm:$0xf]
    %v4465 = vld [vmem:[%s4450 + $0x38] sm:$0xf]
    %v4466 = vld [vmem:[%s4450 + $0x3c] sm:$0xf]
    %s4467 = scalar_lea.vmem %s14, 7
    %v4468 = vld [vmem:[%s4467] sm:$0x1]
    %v4470 = vlaneseq
    %v4471 = vshrl.u32 %v4470, 7
    %v4472 = vsub.s32 0, %v4471
    %v4473 = vrot.slane %v4468, %v4472
    %v4491 = vunpack.c.l.b16 %v4451
    %v4492 = vunpack.c.l.b16 %v4452
    %v4493 = vunpack.c.l.b16 %v4453
    %v4494 = vunpack.c.l.b16 %v4454
    %v4495 = vunpack.c.l.b16 %v4455
    %v4496 = vunpack.c.l.b16 %v4456
    %v4497 = vunpack.c.l.b16 %v4457
    %v4498 = vunpack.c.l.b16 %v4458
    %v4499 = vunpack.c.l.b16 %v4459
    %v4500 = vunpack.c.l.b16 %v4460
    %v4501 = vunpack.c.l.b16 %v4461
    %v4502 = vunpack.c.l.b16 %v4462
    %v4503 = vunpack.c.l.b16 %v4463
    %v4504 = vunpack.c.l.b16 %v4464
    %v4505 = vunpack.c.l.b16 %v4465
    %v4506 = vunpack.c.l.b16 %v4466
    %v4507 = vpack.c.b16 %v4492, %v4491
    %v4508 = vpack.c.b16 %v4494, %v4493
    %v4509 = vpack.c.b16 %v4496, %v4495
    %v4510 = vpack.c.b16 %v4498, %v4497
    %v4511 = vpack.c.b16 %v4500, %v4499
    %v4512 = vpack.c.b16 %v4502, %v4501
    %v4513 = vpack.c.b16 %v4504, %v4503
    %v4514 = vpack.c.b16 %v4506, %v4505
    %4523 = vmatprep.subr.bf16.mxu0 0
    %4524 = vmatpush1.bf16.msra.mxu0 %v4507
    %4525 = vmatprep.subr.bf16.mxu0 0
    %4526 = vmatpush1.bf16.msra.mxu0 %v4508
    %4527 = vmatprep.subr.bf16.mxu0 0
    %4528 = vmatpush1.bf16.msra.mxu0 %v4509
    %4529 = vmatprep.subr.bf16.mxu0 0
    %4530 = vmatpush1.bf16.msra.mxu0 %v4510
    %4531 = vmatprep.subr.bf16.mxu0 0
    %4532 = vmatpush1.bf16.msra.mxu0 %v4511
    %4533 = vmatprep.subr.bf16.mxu0 0
    %4534 = vmatpush1.bf16.msra.mxu0 %v4512
    %4535 = vmatprep.subr.bf16.mxu0 0
    %4536 = vmatpush1.bf16.msra.mxu0 %v4513
    %4537 = vmatprep.subr.bf16.mxu0 0
    %4538 = vmatpush1.bf16.msra.mxu0 %v4514
    %4539 = vmatprep.subr.bf16.mxu0 0
    %4540 = vmatpush1.bf16.msra.mxu0 0
    %4541 = vmatprep.subr.bf16.mxu0 0
    %4542 = vmatpush1.bf16.msra.mxu0 0
    %4543 = vmatprep.subr.bf16.mxu0 0
    %4544 = vmatpush1.bf16.msra.mxu0 0
    %4545 = vmatprep.subr.bf16.mxu0 0
    %4546 = vmatpush1.bf16.msra.mxu0 0
    %4547 = vmatprep.subr.bf16.mxu0 0
    %4548 = vmatpush1.bf16.msra.mxu0 0
    %4549 = vmatprep.subr.bf16.mxu0 0
    %4550 = vmatpush1.bf16.msra.mxu0 0
    %4551 = vmatprep.subr.bf16.mxu0 0
    %4552 = vmatpush1.bf16.msra.mxu0 0
    %4553 = vmatprep.subr.bf16.mxu0 0
    %4554 = vmatpush1.bf16.msra.mxu0 0
    %4555 = vmatprep.mubr.bf16.mxu0 0
    %4556 = vmatmul.mubr.bf16.gmra.mrb[0].mxu0 %v2695
    %v4557 = vpop.f32.mrb[0].mxu0
    %v4558 = vadd.f32 %v4473, %v4557
    %v4559 = vpop.f32.mrb[0].mxu0
    %v4560 = vpop.f32.mrb[0].mxu0
    %v4561 = vpop.f32.mrb[0].mxu0
    %4562 = vdwg.mxu0
    %v4563 = vpack.c.bf16 %v4332, %v4332
    %v4564 = vpack.c.bf16 %v4445, %v4445
    %v4566 = vsel %vm585, %v4563, 0
    %v4569 = vsel %vm585, %v4564, 0
    %4571 = vmatprep.subr.bf16.mxu0 0
    %4572 = vmatpush1.bf16.xpose.msra.mxu0 %v4569
    %4573 = vmatprep.subr.bf16.mxu0 0
    %4574 = vmatpush1.bf16.xpose.msra.mxu0 0
    %4575 = vmatprep.subr.bf16.mxu0 0
    %4576 = vmatpush1.bf16.xpose.msra.mxu0 0
    %4577 = vmatprep.subr.bf16.mxu0 0
    %4578 = vmatpush1.bf16.xpose.msra.mxu0 0
    %4579 = vmatprep.subr.bf16.mxu0 0
    %4580 = vmatpush1.bf16.xpose.msra.mxu0 0
    %4581 = vmatprep.subr.bf16.mxu0 0
    %4582 = vmatpush1.bf16.xpose.msra.mxu0 0
    %4583 = vmatprep.subr.bf16.mxu0 0
    %4584 = vmatpush1.bf16.xpose.msra.mxu0 0
    %4585 = vmatprep.subr.bf16.mxu0 0
    %4586 = vmatpush1.bf16.xpose.msra.mxu0 0
    %4587 = vmatprep.subr.bf16.mxu0 0
    %4588 = vmatpush1.bf16.xpose.msra.mxu0 0
    %4589 = vmatprep.subr.bf16.mxu0 0
    %4590 = vmatpush1.bf16.xpose.msra.mxu0 0
    %4591 = vmatprep.subr.bf16.mxu0 0
    %4592 = vmatpush1.bf16.xpose.msra.mxu0 0
    %4593 = vmatprep.subr.bf16.mxu0 0
    %4594 = vmatpush1.bf16.xpose.msra.mxu0 0
    %4595 = vmatprep.subr.bf16.mxu0 0
    %4596 = vmatpush1.bf16.xpose.msra.mxu0 0
    %4597 = vmatprep.subr.bf16.mxu0 0
    %4598 = vmatpush1.bf16.xpose.msra.mxu0 0
    %4599 = vmatprep.subr.bf16.mxu0 0
    %4600 = vmatpush1.bf16.xpose.msra.mxu0 0
    %4601 = vmatprep.subr.bf16.mxu0 0
    %4602 = vmatpush1.bf16.xpose.msra.mxu0 0
    %4603 = vmatprep.mubr.bf16.mxu0 0
    %4604 = vmatmul.mubr.bf16.gmra.mrb[0].mxu0 %v4566
    %v4605 = vpop.f32.mrb[0].mxu0
    %v4606 = vadd.f32 0.0, %v4605
    %v4607 = vpop.f32.mrb[0].mxu0
    %v4608 = vpop.f32.mrb[0].mxu0
    %v4609 = vpop.f32.mrb[0].mxu0
    %4610 = vdwg.mxu0
    %v4611 = vmul.f32 %v4606, 0.17677669
    %v4612 = vadd.f32 %v4611, %v81
    %v4613 = vsel %vm634, %v4612, -inf
    %4614 = vmax.xlane.f32.xlu0 %v4613
    %v4615 = vpop.xlane.xlu0 %4614
    %v4616 = vsub.f32 %v4612, %v4615
    %v4617 = vmul.f32 %v4616, 1.442695
    %v4618 = vpow.pop %v4617
    %v4619 = vsel %vm634, %v4618, 0.0
    %4620 = vadd.xlane.f32.xlu0 %v4619
    %v4621 = vpop.xlane.xlu0 %4620
    %v4622 = vrcp.pop %v4621
    %v4623 = vmul.f32 %v4618, %v4622
    %v4624 = vpack.c.bf16 %v4623, %v4623
    %v4625 = vpack.c.bf16 %v4558, %v4558
    %v4627 = vsel %vm634, %v4624, 0
    %v4630 = vsel %vm651, %v4625, 0
    %4632 = vmatprep.subr.bf16.mxu0 0
    %4633 = vmatpush1.bf16.msra.mxu0 %v4630
    %4634 = vmatprep.subr.bf16.mxu0 0
    %4635 = vmatpush1.bf16.msra.mxu0 0
    %4636 = vmatprep.subr.bf16.mxu0 0
    %4637 = vmatpush1.bf16.msra.mxu0 0
    %4638 = vmatprep.subr.bf16.mxu0 0
    %4639 = vmatpush1.bf16.msra.mxu0 0
    %4640 = vmatprep.subr.bf16.mxu0 0
    %4641 = vmatpush1.bf16.msra.mxu0 0
    %4642 = vmatprep.subr.bf16.mxu0 0
    %4643 = vmatpush1.bf16.msra.mxu0 0
    %4644 = vmatprep.subr.bf16.mxu0 0
    %4645 = vmatpush1.bf16.msra.mxu0 0
    %4646 = vmatprep.subr.bf16.mxu0 0
    %4647 = vmatpush1.bf16.msra.mxu0 0
    %4648 = vmatprep.subr.bf16.mxu0 0
    %4649 = vmatpush1.bf16.msra.mxu0 0
    %4650 = vmatprep.subr.bf16.mxu0 0
    %4651 = vmatpush1.bf16.msra.mxu0 0
    %4652 = vmatprep.subr.bf16.mxu0 0
    %4653 = vmatpush1.bf16.msra.mxu0 0
    %4654 = vmatprep.subr.bf16.mxu0 0
    %4655 = vmatpush1.bf16.msra.mxu0 0
    %4656 = vmatprep.subr.bf16.mxu0 0
    %4657 = vmatpush1.bf16.msra.mxu0 0
    %4658 = vmatprep.subr.bf16.mxu0 0
    %4659 = vmatpush1.bf16.msra.mxu0 0
    %4660 = vmatprep.subr.bf16.mxu0 0
    %4661 = vmatpush1.bf16.msra.mxu0 0
    %4662 = vmatprep.subr.bf16.mxu0 0
    %4663 = vmatpush1.bf16.msra.mxu0 0
    %4664 = vmatprep.mubr.bf16.mxu0 0
    %4665 = vmatmul.mubr.bf16.gmra.mrb[0].mxu0 %v4627
    %v4666 = vpop.f32.mrb[0].mxu0
    %v4667 = vadd.f32 0.0, %v4666
    %v4668 = vpop.f32.mrb[0].mxu0
    %v4669 = vpop.f32.mrb[0].mxu0
    %v4670 = vpop.f32.mrb[0].mxu0
    %4671 = vdwg.mxu0
    %v4672 = vpack.c.bf16 %v4667, %v4667
    %s4673 = scalar_lea.vmem %s15, 112
    %v4674 = vld [vmem:[%s4673] sm:$0xf]
    %v4675 = vld [vmem:[%s4673 + $0x4] sm:$0xf]
    %v4676 = vld [vmem:[%s4673 + $0x8] sm:$0xf]
    %v4677 = vld [vmem:[%s4673 + $0xc] sm:$0xf]
    %v4682 = vunpack.c.l.b16 %v4674
    %v4683 = vunpack.c.l.b16 %v4675
    %v4684 = vunpack.c.l.b16 %v4676
    %v4685 = vunpack.c.l.b16 %v4677
    %v4686 = vpack.c.b16 %v4683, %v4682
    %v4687 = vpack.c.b16 %v4685, %v4684
    %v4691 = vsel %vm585, %v4672, 0
    %4693 = vmatprep.subr.bf16.mxu0 0
    %4694 = vmatpush1.bf16.msra.mxu0 %v4686
    %4695 = vmatprep.subr.bf16.mxu0 0
    %4696 = vmatpush1.bf16.msra.mxu0 %v4687
    %4697 = vmatprep.subr.bf16.mxu0 0
    %4698 = vmatpush1.bf16.msra.mxu0 0
    %4699 = vmatprep.subr.bf16.mxu0 0
    %4700 = vmatpush1.bf16.msra.mxu0 0
    %4701 = vmatprep.subr.bf16.mxu0 0
    %4702 = vmatpush1.bf16.msra.mxu0 0
    %4703 = vmatprep.subr.bf16.mxu0 0
    %4704 = vmatpush1.bf16.msra.mxu0 0
    %4705 = vmatprep.subr.bf16.mxu0 0
    %4706 = vmatpush1.bf16.msra.mxu0 0
    %4707 = vmatprep.subr.bf16.mxu0 0
    %4708 = vmatpush1.bf16.msra.mxu0 0
    %4709 = vmatprep.subr.bf16.mxu0 0
    %4710 = vmatpush1.bf16.msra.mxu0 0
    %4711 = vmatprep.subr.bf16.mxu0 0
    %4712 = vmatpush1.bf16.msra.mxu0 0
    %4713 = vmatprep.subr.bf16.mxu0 0
    %4714 = vmatpush1.bf16.msra.mxu0 0
    %4715 = vmatprep.subr.bf16.mxu0 0
    %4716 = vmatpush1.bf16.msra.mxu0 0
    %4717 = vmatprep.subr.bf16.mxu0 0
    %4718 = vmatpush1.bf16.msra.mxu0 0
    %4719 = vmatprep.subr.bf16.mxu0 0
    %4720 = vmatpush1.bf16.msra.mxu0 0
    %4721 = vmatprep.subr.bf16.mxu0 0
    %4722 = vmatpush1.bf16.msra.mxu0 0
    %4723 = vmatprep.subr.bf16.mxu0 0
    %4724 = vmatpush1.bf16.msra.mxu0 0
    %4725 = vmatprep.mubr.bf16.mxu0 0
    %4726 = vmatmul.mubr.bf16.gmra.mrb[0].mxu0 %v4691
    %v4727 = vpop.f32.mrb[0].mxu0
    %v4728 = vadd.f32 0.0, %v4727
    %v4729 = vpop.f32.mrb[0].mxu0
    %v4730 = vpop.f32.mrb[0].mxu0
    %v4731 = vpop.f32.mrb[0].mxu0
    %4732 = vdwg.mxu0
    %v4733 = vadd.f32 %v4223, %v4728
    %v4734 = vadd.f32 %v2665, %v4733
    %s4735 = scalar_lea.vmem %s16, 1
    %v4736 = vld [vmem:[%s4735] sm:$0x1]
    %v4738 = vlaneseq
    %v4739 = vshrl.u32 %v4738, 7
    %v4740 = vsub.s32 0, %v4739
    %v4741 = vrot.slane %v4736, %v4740
    %v4743 = vadd.f32 %v4734, %v4741
    %s4744 = scalar_lea.vmem %s17, 1
    %v4745 = vld [vmem:[%s4744] sm:$0x1]
    %s4746 = scalar_lea.vmem %s18, 1
    %v4747 = vld [vmem:[%s4746] sm:$0x1]
    %4748 = vadd.xlane.f32.xlu0 %v4743
    %v4749 = vpop.xlane.xlu0 %4748
    %v4750 = vmul.f32 %v4749, %v225
    %v4751 = vsub.f32 %v4743, %v4750
    %v4752 = vmul.f32 %v4751, %v4751
    %4753 = vadd.xlane.f32.xlu0 %v4752
    %v4754 = vpop.xlane.xlu0 %4753
    %v4755 = vmul.f32 %v4754, %v225
    %v4756 = vadd.f32 %v4755, 1e-05
    %v4757 = vrsqrt.pop %v4756
    %v4758 = vmul.f32 %v4751, %v4757
    %v4760 = vlaneseq
    %v4761 = vshrl.u32 %v4760, 7
    %v4762 = vsub.s32 0, %v4761
    %v4763 = vrot.slane %v4745, %v4762
    %v4765 = vmul.f32 %v4758, %v4763
    %v4767 = vlaneseq
    %v4768 = vshrl.u32 %v4767, 7
    %v4769 = vsub.s32 0, %v4768
    %v4770 = vrot.slane %v4747, %v4769
    %v4772 = vadd.f32 %v4765, %v4770
    %v4773 = vpack.c.bf16 %v4772, %v4772
    %s4774 = scalar_lea.vmem %s19, 128
    %v4775 = vld [vmem:[%s4774] sm:$0xff]
    %v4776 = vld [vmem:[%s4774 + $0x8] sm:$0xff]
    %v4777 = vld [vmem:[%s4774 + $0x10] sm:$0xff]
    %v4778 = vld [vmem:[%s4774 + $0x18] sm:$0xff]
    %v4779 = vld [vmem:[%s4774 + $0x20] sm:$0xff]
    %v4780 = vld [vmem:[%s4774 + $0x28] sm:$0xff]
    %v4781 = vld [vmem:[%s4774 + $0x30] sm:$0xff]
    %v4782 = vld [vmem:[%s4774 + $0x38] sm:$0xff]
    %v4783 = vld [vmem:[%s4774 + $0x40] sm:$0xff]
    %v4784 = vld [vmem:[%s4774 + $0x48] sm:$0xff]
    %v4785 = vld [vmem:[%s4774 + $0x50] sm:$0xff]
    %v4786 = vld [vmem:[%s4774 + $0x58] sm:$0xff]
    %v4787 = vld [vmem:[%s4774 + $0x60] sm:$0xff]
    %v4788 = vld [vmem:[%s4774 + $0x68] sm:$0xff]
    %v4789 = vld [vmem:[%s4774 + $0x70] sm:$0xff]
    %v4790 = vld [vmem:[%s4774 + $0x78] sm:$0xff]
    %s4791 = scalar_lea.vmem %s20, 2
    %v4792 = vld [vmem:[%s4791] sm:$0x3]
    %v4794 = vlaneseq
    %v4795 = vshrl.u32 %v4794, 7
    %v4796 = vsub.s32 0, %v4795
    %v4797 = vrot.slane %v4792, %v4796
    %v4798 = vlaneseq
    %v4799 = vshrl.u32 %v4798, 7
    %v4800 = vsub.s32 1, %v4799
    %v4801 = vrot.slane %v4792, %v4800
    %v4820 = vunpack.c.l.b16 %v4775
    %v4821 = vunpack.c.h.b16 %v4775
    %v4822 = vunpack.c.l.b16 %v4776
    %v4823 = vunpack.c.h.b16 %v4776
    %v4824 = vunpack.c.l.b16 %v4777
    %v4825 = vunpack.c.h.b16 %v4777
    %v4826 = vunpack.c.l.b16 %v4778
    %v4827 = vunpack.c.h.b16 %v4778
    %v4828 = vunpack.c.l.b16 %v4779
    %v4829 = vunpack.c.h.b16 %v4779
    %v4830 = vunpack.c.l.b16 %v4780
    %v4831 = vunpack.c.h.b16 %v4780
    %v4832 = vunpack.c.l.b16 %v4781
    %v4833 = vunpack.c.h.b16 %v4781
    %v4834 = vunpack.c.l.b16 %v4782
    %v4835 = vunpack.c.h.b16 %v4782
    %v4836 = vunpack.c.l.b16 %v4783
    %v4837 = vunpack.c.h.b16 %v4783
    %v4838 = vunpack.c.l.b16 %v4784
    %v4839 = vunpack.c.h.b16 %v4784
    %v4840 = vunpack.c.l.b16 %v4785
    %v4841 = vunpack.c.h.b16 %v4785
    %v4842 = vunpack.c.l.b16 %v4786
    %v4843 = vunpack.c.h.b16 %v4786
    %v4844 = vunpack.c.l.b16 %v4787
    %v4845 = vunpack.c.h.b16 %v4787
    %v4846 = vunpack.c.l.b16 %v4788
    %v4847 = vunpack.c.h.b16 %v4788
    %v4848 = vunpack.c.l.b16 %v4789
    %v4849 = vunpack.c.h.b16 %v4789
    %v4850 = vunpack.c.l.b16 %v4790
    %v4851 = vunpack.c.h.b16 %v4790
    %v4852 = vpack.c.b16 %v4822, %v4820
    %v4853 = vpack.c.b16 %v4823, %v4821
    %v4854 = vpack.c.b16 %v4826, %v4824
    %v4855 = vpack.c.b16 %v4827, %v4825
    %v4856 = vpack.c.b16 %v4830, %v4828
    %v4857 = vpack.c.b16 %v4831, %v4829
    %v4858 = vpack.c.b16 %v4834, %v4832
    %v4859 = vpack.c.b16 %v4835, %v4833
    %v4860 = vpack.c.b16 %v4838, %v4836
    %v4861 = vpack.c.b16 %v4839, %v4837
    %v4862 = vpack.c.b16 %v4842, %v4840
    %v4863 = vpack.c.b16 %v4843, %v4841
    %v4864 = vpack.c.b16 %v4846, %v4844
    %v4865 = vpack.c.b16 %v4847, %v4845
    %v4866 = vpack.c.b16 %v4850, %v4848
    %v4867 = vpack.c.b16 %v4851, %v4849
    %4884 = vmatprep.subr.bf16.mxu0 %v4853
    %4885 = vmatpush1.bf16.msra.mxu0 %v4852
    %4886 = vmatprep.subr.bf16.mxu0 %v4855
    %4887 = vmatpush1.bf16.msra.mxu0 %v4854
    %4888 = vmatprep.subr.bf16.mxu0 %v4857
    %4889 = vmatpush1.bf16.msra.mxu0 %v4856
    %4890 = vmatprep.subr.bf16.mxu0 %v4859
    %4891 = vmatpush1.bf16.msra.mxu0 %v4858
    %4892 = vmatprep.subr.bf16.mxu0 %v4861
    %4893 = vmatpush1.bf16.msra.mxu0 %v4860
    %4894 = vmatprep.subr.bf16.mxu0 %v4863
    %4895 = vmatpush1.bf16.msra.mxu0 %v4862
    %4896 = vmatprep.subr.bf16.mxu0 %v4865
    %4897 = vmatpush1.bf16.msra.mxu0 %v4864
    %4898 = vmatprep.subr.bf16.mxu0 %v4867
    %4899 = vmatpush1.bf16.msra.mxu0 %v4866
    %4900 = vmatprep.subr.bf16.mxu0 0
    %4901 = vmatpush1.bf16.msra.mxu0 0
    %4902 = vmatprep.subr.bf16.mxu0 0
    %4903 = vmatpush1.bf16.msra.mxu0 0
    %4904 = vmatprep.subr.bf16.mxu0 0
    %4905 = vmatpush1.bf16.msra.mxu0 0
    %4906 = vmatprep.subr.bf16.mxu0 0
    %4907 = vmatpush1.bf16.msra.mxu0 0
    %4908 = vmatprep.subr.bf16.mxu0 0
    %4909 = vmatpush1.bf16.msra.mxu0 0
    %4910 = vmatprep.subr.bf16.mxu0 0
    %4911 = vmatpush1.bf16.msra.mxu0 0
    %4912 = vmatprep.subr.bf16.mxu0 0
    %4913 = vmatpush1.bf16.msra.mxu0 0
    %4914 = vmatprep.subr.bf16.mxu0 0
    %4915 = vmatpush1.bf16.msra.mxu0 0
    %4916 = vmatprep.mubr.bf16.mxu0 0
    %4917 = vmatmul.mubr.bf16.gmra.mrb[0].mxu0 %v4773
    %v4918 = vpop.f32.mrb[0].mxu0
    %v4919 = vadd.f32 %v4797, %v4918
    %v4920 = vpop.f32.mrb[0].mxu0
    %v4921 = vadd.f32 %v4801, %v4920
    %v4922 = vpop.f32.mrb[0].mxu0
    %v4923 = vpop.f32.mrb[0].mxu0
    %4924 = vdwg.mxu0
    %v4925 = vmul.f32 %v4919, %v4919
    %v4926 = vmul.f32 %v4921, %v4921
    %v4927 = vmul.f32 %v4919, %v4925
    %v4928 = vmul.f32 %v4921, %v4926
    %v4929 = vmul.f32 %v4927, 0.044715
    %v4930 = vmul.f32 %v4928, 0.044715
    %v4931 = vadd.f32 %v4919, %v4929
    %v4932 = vadd.f32 %v4921, %v4930
    %v4933 = vmul.f32 %v4931, 0.7978846
    %v4934 = vmul.f32 %v4932, 0.7978846
    %v4935 = vtanh.pop %v4933
    %v4936 = vtanh.pop %v4934
    %v4937 = vadd.f32 %v4935, 1.0
    %v4938 = vadd.f32 %v4936, 1.0
    %v4939 = vmul.f32 %v4937, 0.5
    %v4940 = vmul.f32 %v4938, 0.5
    %v4941 = vmul.f32 %v4919, %v4939
    %v4942 = vmul.f32 %v4921, %v4940
    %v4943 = vpack.c.bf16 %v4941, %v4941
    %v4944 = vpack.c.bf16 %v4942, %v4942
    %s4945 = scalar_lea.vmem %s21, 128
    %v4946 = vld [vmem:[%s4945] sm:$0xf]
    %v4947 = vld [vmem:[%s4945 + $0x4] sm:$0xf]
    %v4948 = vld [vmem:[%s4945 + $0x8] sm:$0xf]
    %v4949 = vld [vmem:[%s4945 + $0xc] sm:$0xf]
    %v4950 = vld [vmem:[%s4945 + $0x10] sm:$0xf]
    %v4951 = vld [vmem:[%s4945 + $0x14] sm:$0xf]
    %v4952 = vld [vmem:[%s4945 + $0x18] sm:$0xf]
    %v4953 = vld [vmem:[%s4945 + $0x1c] sm:$0xf]
    %v4954 = vld [vmem:[%s4945 + $0x20] sm:$0xf]
    %v4955 = vld [vmem:[%s4945 + $0x24] sm:$0xf]
    %v4956 = vld [vmem:[%s4945 + $0x28] sm:$0xf]
    %v4957 = vld [vmem:[%s4945 + $0x2c] sm:$0xf]
    %v4958 = vld [vmem:[%s4945 + $0x30] sm:$0xf]
    %v4959 = vld [vmem:[%s4945 + $0x34] sm:$0xf]
    %v4960 = vld [vmem:[%s4945 + $0x38] sm:$0xf]
    %v4961 = vld [vmem:[%s4945 + $0x3c] sm:$0xf]
    %v4962 = vld [vmem:[%s4945 + $0x40] sm:$0xf]
    %v4963 = vld [vmem:[%s4945 + $0x44] sm:$0xf]
    %v4964 = vld [vmem:[%s4945 + $0x48] sm:$0xf]
    %v4965 = vld [vmem:[%s4945 + $0x4c] sm:$0xf]
    %v4966 = vld [vmem:[%s4945 + $0x50] sm:$0xf]
    %v4967 = vld [vmem:[%s4945 + $0x54] sm:$0xf]
    %v4968 = vld [vmem:[%s4945 + $0x58] sm:$0xf]
    %v4969 = vld [vmem:[%s4945 + $0x5c] sm:$0xf]
    %v4970 = vld [vmem:[%s4945 + $0x60] sm:$0xf]
    %v4971 = vld [vmem:[%s4945 + $0x64] sm:$0xf]
    %v4972 = vld [vmem:[%s4945 + $0x68] sm:$0xf]
    %v4973 = vld [vmem:[%s4945 + $0x6c] sm:$0xf]
    %v4974 = vld [vmem:[%s4945 + $0x70] sm:$0xf]
    %v4975 = vld [vmem:[%s4945 + $0x74] sm:$0xf]
    %v4976 = vld [vmem:[%s4945 + $0x78] sm:$0xf]
    %v4977 = vld [vmem:[%s4945 + $0x7c] sm:$0xf]
    %s4978 = scalar_lea.vmem %s22, 1
    %v4979 = vld [vmem:[%s4978] sm:$0x1]
    %v4981 = vlaneseq
    %v4982 = vshrl.u32 %v4981, 7
    %v4983 = vsub.s32 0, %v4982
    %v4984 = vrot.slane %v4979, %v4983
    %v5018 = vunpack.c.l.b16 %v4946
    %v5019 = vunpack.c.l.b16 %v4947
    %v5020 = vunpack.c.l.b16 %v4948
    %v5021 = vunpack.c.l.b16 %v4949
    %v5022 = vunpack.c.l.b16 %v4950
    %v5023 = vunpack.c.l.b16 %v4951
    %v5024 = vunpack.c.l.b16 %v4952
    %v5025 = vunpack.c.l.b16 %v4953
    %v5026 = vunpack.c.l.b16 %v4954
    %v5027 = vunpack.c.l.b16 %v4955
    %v5028 = vunpack.c.l.b16 %v4956
    %v5029 = vunpack.c.l.b16 %v4957
    %v5030 = vunpack.c.l.b16 %v4958
    %v5031 = vunpack.c.l.b16 %v4959
    %v5032 = vunpack.c.l.b16 %v4960
    %v5033 = vunpack.c.l.b16 %v4961
    %v5034 = vunpack.c.l.b16 %v4962
    %v5035 = vunpack.c.l.b16 %v4963
    %v5036 = vunpack.c.l.b16 %v4964
    %v5037 = vunpack.c.l.b16 %v4965
    %v5038 = vunpack.c.l.b16 %v4966
    %v5039 = vunpack.c.l.b16 %v4967
    %v5040 = vunpack.c.l.b16 %v4968
    %v5041 = vunpack.c.l.b16 %v4969
    %v5042 = vunpack.c.l.b16 %v4970
    %v5043 = vunpack.c.l.b16 %v4971
    %v5044 = vunpack.c.l.b16 %v4972
    %v5045 = vunpack.c.l.b16 %v4973
    %v5046 = vunpack.c.l.b16 %v4974
    %v5047 = vunpack.c.l.b16 %v4975
    %v5048 = vunpack.c.l.b16 %v4976
    %v5049 = vunpack.c.l.b16 %v4977
    %v5050 = vpack.c.b16 %v5019, %v5018
    %v5051 = vpack.c.b16 %v5021, %v5020
    %v5052 = vpack.c.b16 %v5023, %v5022
    %v5053 = vpack.c.b16 %v5025, %v5024
    %v5054 = vpack.c.b16 %v5027, %v5026
    %v5055 = vpack.c.b16 %v5029, %v5028
    %v5056 = vpack.c.b16 %v5031, %v5030
    %v5057 = vpack.c.b16 %v5033, %v5032
    %v5058 = vpack.c.b16 %v5035, %v5034
    %v5059 = vpack.c.b16 %v5037, %v5036
    %v5060 = vpack.c.b16 %v5039, %v5038
    %v5061 = vpack.c.b16 %v5041, %v5040
    %v5062 = vpack.c.b16 %v5043, %v5042
    %v5063 = vpack.c.b16 %v5045, %v5044
    %v5064 = vpack.c.b16 %v5047, %v5046
    %v5065 = vpack.c.b16 %v5049, %v5048
    %5082 = vmatprep.subr.bf16.mxu0 0
    %5083 = vmatpush1.bf16.msra.mxu0 %v5050
    %5084 = vmatprep.subr.bf16.mxu0 0
    %5085 = vmatpush1.bf16.msra.mxu0 %v5051
    %5086 = vmatprep.subr.bf16.mxu0 0
    %5087 = vmatpush1.bf16.msra.mxu0 %v5052
    %5088 = vmatprep.subr.bf16.mxu0 0
    %5089 = vmatpush1.bf16.msra.mxu0 %v5053
    %5090 = vmatprep.subr.bf16.mxu0 0
    %5091 = vmatpush1.bf16.msra.mxu0 %v5054
    %5092 = vmatprep.subr.bf16.mxu0 0
    %5093 = vmatpush1.bf16.msra.mxu0 %v5055
    %5094 = vmatprep.subr.bf16.mxu0 0
    %5095 = vmatpush1.bf16.msra.mxu0 %v5056
    %5096 = vmatprep.subr.bf16.mxu0 0
    %5097 = vmatpush1.bf16.msra.mxu0 %v5057
    %5098 = vmatprep.subr.bf16.mxu0 0
    %5099 = vmatpush1.bf16.msra.mxu0 %v5058
    %5100 = vmatprep.subr.bf16.mxu0 0
    %5101 = vmatpush1.bf16.msra.mxu0 %v5059
    %5102 = vmatprep.subr.bf16.mxu0 0
    %5103 = vmatpush1.bf16.msra.mxu0 %v5060
    %5104 = vmatprep.subr.bf16.mxu0 0
    %5105 = vmatpush1.bf16.msra.mxu0 %v5061
    %5106 = vmatprep.subr.bf16.mxu0 0
    %5107 = vmatpush1.bf16.msra.mxu0 %v5062
    %5108 = vmatprep.subr.bf16.mxu0 0
    %5109 = vmatpush1.bf16.msra.mxu0 %v5063
    %5110 = vmatprep.subr.bf16.mxu0 0
    %5111 = vmatpush1.bf16.msra.mxu0 %v5064
    %5112 = vmatprep.subr.bf16.mxu0 0
    %5113 = vmatpush1.bf16.msra.mxu0 %v5065
    %5114 = vmatprep.mubr.bf16.mxu0 %v4944
    %5115 = vmatmul.mubr.bf16.gmra.mrb[0].mxu0 %v4943
    %v5116 = vpop.f32.mrb[0].mxu0
    %v5117 = vadd.f32 %v4984, %v5116
    %v5118 = vpop.f32.mrb[0].mxu0
    %v5119 = vpop.f32.mrb[0].mxu0
    %v5120 = vpop.f32.mrb[0].mxu0
    %5121 = vdwg.mxu0
    %v5122 = vadd.f32 %v4743, %v5117
    %s5123 = ssub.s32 %s120, 1
    %v5124 = vstv %s5123
    %vm5125 = vcmp.eq.s32.totalorder %v77, %v5124
    %v5126 = vsel %vm5125, %v5122, 0.0
    %v5127 = vrot.slane %v5126, 4
    %v5128 = vadd.f32 %v5126, %v5127
    %v5129 = vrot.slane %v5128, 2
    %v5130 = vadd.f32 %v5128, %v5129
    %v5131 = vrot.slane %v5130, 1
    %v5132 = vadd.f32 %v5130, %v5131
    %5133 = vadd.xlane.f32.xlu0 %v5132
    %v5134 = vpop.xlane.xlu0 %5133
    %v5135 = vmul.f32 %v5134, %v225
    %v5136 = vsub.f32 %v5132, %v5135
    %v5137 = vmul.f32 %v5136, %v5136
    %5138 = vadd.xlane.f32.xlu0 %v5137
    %v5139 = vpop.xlane.xlu0 %5138
    %v5140 = vmul.f32 %v5139, %v225
    %v5141 = vadd.f32 %v5140, 1e-05
    %v5142 = vrsqrt.pop %v5141
    %v5143 = vmul.f32 %v5136, %v5142
    %v5144 = vmul.f32 %v5143, %v115
    %v5145 = vadd.f32 %v5144, %v116
    %v5146 = vpack.c.bf16 %v5145, %v5145
    %v5163 = vunpack.c.l.b16 %v98
    %v5164 = vunpack.c.l.b16 %v99
    %v5165 = vunpack.c.l.b16 %v100
    %v5166 = vunpack.c.l.b16 %v101
    %v5167 = vunpack.c.l.b16 %v102
    %v5168 = vunpack.c.l.b16 %v103
    %v5169 = vunpack.c.l.b16 %v104
    %v5170 = vunpack.c.l.b16 %v105
    %v5171 = vunpack.c.l.b16 %v106
    %v5172 = vunpack.c.l.b16 %v107
    %v5173 = vunpack.c.l.b16 %v108
    %v5174 = vunpack.c.l.b16 %v109
    %v5175 = vunpack.c.l.b16 %v110
    %v5176 = vunpack.c.l.b16 %v111
    %v5177 = vunpack.c.l.b16 %v112
    %v5178 = vunpack.c.l.b16 %v113
    %v5179 = vpack.c.b16 %v5164, %v5163
    %v5180 = vpack.c.b16 %v5166, %v5165
    %v5181 = vpack.c.b16 %v5168, %v5167
    %v5182 = vpack.c.b16 %v5170, %v5169
    %v5183 = vpack.c.b16 %v5172, %v5171
    %v5184 = vpack.c.b16 %v5174, %v5173
    %v5185 = vpack.c.b16 %v5176, %v5175
    %v5186 = vpack.c.b16 %v5178, %v5177
    %5195 = vmatprep.subr.bf16.mxu0 0
    %5196 = vmatpush1.bf16.msra.mxu0 %v5179
    %5197 = vmatprep.subr.bf16.mxu0 0
    %5198 = vmatpush1.bf16.msra.mxu0 %v5180
    %5199 = vmatprep.subr.bf16.mxu0 0
    %5200 = vmatpush1.bf16.msra.mxu0 %v5181
    %5201 = vmatprep.subr.bf16.mxu0 0
    %5202 = vmatpush1.bf16.msra.mxu0 %v5182
    %5203 = vmatprep.subr.bf16.mxu0 0
    %5204 = vmatpush1.bf16.msra.mxu0 %v5183
    %5205 = vmatprep.subr.bf16.mxu0 0
    %5206 = vmatpush1.bf16.msra.mxu0 %v5184
    %5207 = vmatprep.subr.bf16.mxu0 0
    %5208 = vmatpush1.bf16.msra.mxu0 %v5185
    %5209 = vmatprep.subr.bf16.mxu0 0
    %5210 = vmatpush1.bf16.msra.mxu0 %v5186
    %5211 = vmatprep.subr.bf16.mxu0 0
    %5212 = vmatpush1.bf16.msra.mxu0 0
    %5213 = vmatprep.subr.bf16.mxu0 0
    %5214 = vmatpush1.bf16.msra.mxu0 0
    %5215 = vmatprep.subr.bf16.mxu0 0
    %5216 = vmatpush1.bf16.msra.mxu0 0
    %5217 = vmatprep.subr.bf16.mxu0 0
    %5218 = vmatpush1.bf16.msra.mxu0 0
    %5219 = vmatprep.subr.bf16.mxu0 0
    %5220 = vmatpush1.bf16.msra.mxu0 0
    %5221 = vmatprep.subr.bf16.mxu0 0
    %5222 = vmatpush1.bf16.msra.mxu0 0
    %5223 = vmatprep.subr.bf16.mxu0 0
    %5224 = vmatpush1.bf16.msra.mxu0 0
    %5225 = vmatprep.subr.bf16.mxu0 0
    %5226 = vmatpush1.bf16.msra.mxu0 0
    %5227 = vmatprep.mubr.bf16.mxu0 0
    %5228 = vmatmul.mubr.bf16.gmra.mrb[0].mxu0 %v5146
    %v5229 = vpop.f32.mrb[0].mxu0
    %v5230 = vadd.f32 0.0, %v5229
    %v5231 = vpop.f32.mrb[0].mxu0
    %v5232 = vpop.f32.mrb[0].mxu0
    %v5233 = vpop.f32.mrb[0].mxu0
    %5234 = vdwg.mxu0
    %vm5235 = vcmask 1040384
    %v5236 = vsel %vm5235, %v5230, -inf
    %5237 = vmax.xlane.f32.xlu0 %v5236
    %v5238 = vpop.xlane.xlu0 %5237
    %vm5239 = vcmp.eq.f32.partialorder %v5230, %v5238
    %v5240 = vsel %vm5239, %v79, 128
    %v5241 = vsel %vm5235, %v5240, 2147483647
    %v5242 = vand.u32 %v5241, 65535
    %v5243 = vshra.s32 %v5241, 16
    %v5244 = vcvt.s32.f32 %v5242
    %v5245 = vcvt.s32.f32 %v5243
    %5246 = vmin.xlane.f32.xlu0 %v5245
    %v5247 = vpop.xlane.xlu0 %5246
    %vm5248 = vcmp.eq.f32.partialorder %v5245, %v5247
    %v5249 = vsel %vm5248, %v5244, inf
    %5250 = vmin.xlane.f32.xlu0 %v5249
    %v5251 = vpop.xlane.xlu0 %5250
    %v5252 = vcvt.f32.s32 %v5251
    %v5253 = vcvt.f32.s32 %v5247
    %v5254 = vshll.u32 %v5253, 16
    %v5255 = vadd.s32 %v5254, %v5252
    %v5256 = vstv %s120
    %vm5257 = vcmp.eq.s32.totalorder %v77, %v5256
    %v5258 = vlaneseq
    %v5259 = vshrl.u32 %v5258, 7
    %v5260 = vsub.s32 0, %v5259
    %v5261 = vrot.slane %v5255, %v5260
    %v5262 = vsel %vm5257, %v5261, %v125
  $region98: #{generate.1} parent=0 // loop_footer
    %s122 = sadd.s32 %s120, 1
  $region99: #{generate.1} parent=0 // loop_footer_branch
    %119 = sbr.rel target = $region95
  $region100: #{generate.1} parent=0 // loop_exit
    _
  %vm5263 = vcmask 7168
  %5264 = vst.msk [vmem:[%s23] sm:$0xff] %vm5263, %v125
  // Predicated region
  $region101: #{generate.1} parent=0 // pred_check
    _
  $region102: #{generate.1} parent=0 // pred_check_branch
    %5266 = sbr.rel (0) target = $region104
  $region103: #{generate.1} parent=0 // pred_region
    _
  $region104: #{generate.1} parent=0 // pred_fallthru
    _
  // Predicated region
  $region105: #{generate.1} parent=0 // pred_check
    _
  $region106: #{generate.1} parent=0 // pred_check_branch
    %5268 = sbr.rel (0) target = $region108
  $region107: #{generate.1} parent=0 // pred_region
    _
  $region108: #{generate.1} parent=0 // pred_fallthru
    _

</llo_original>
